<compile_context>
chip_gen: v5e
topology: v5e:2x2
jax: 0.10.0
libtpu: 0.0.40
codegen_flags: <defaults>
</compile_context>

<pallas_src>
import jax
import jax.numpy as jnp
from jax import lax
from jax.experimental import pallas as pl
from jax.experimental.pallas import tpu as pltpu


# ------------------------------- fused kernel ------------------------------ #

def _make_bottleneck_kernel(H, W, Ho, Wo, stride, Cp, Pp, Op, compute_dtype):
    s = stride

    def kernel(x_ref, w1_ref, b1_ref, w2_ref, b2_ref, w3_ref, b3_ref,
               wd_ref, bd_ref, o_ref, act1_ref, acc_ref):
        # x_ref:    (1, H, W, Cp)        input tile (one batch element)
        # w1_ref:   (Cp, Pp)             conv1 weight * bn1 scale
        # w2_ref:   (9, Pp, Pp)          conv2 taps (ky*3+kx) * bn2 scale
        # w3_ref:   (Pp, Op)             conv3 weight * bn3 scale
        # wd_ref:   (Cp, Op)             downsample weight * ds-bn scale
        # b*_ref:   (1, C)               folded BN biases (f32)
        # act1_ref: VMEM (H+2, W+2, Pp)  conv1 output, zero-padded for conv2
        # acc_ref:  VMEM (Ho*Wo, Pp)     f32 accumulator for the 3x3 taps
        x = x_ref[0]                                          # (H, W, Cp)

        # ---- conv1 (1x1) + bn1 + relu -> zero-padded VMEM scratch -------- #
        a1 = jnp.dot(x.reshape(H * W, Cp), w1_ref[...],
                     preferred_element_type=jnp.float32)
        a1 = jnp.maximum(a1 + b1_ref[...], 0.0).astype(compute_dtype)
        act1_ref[...] = jnp.zeros_like(act1_ref)              # spatial pad = 1
        act1_ref[1:H + 1, 1:W + 1, :] = a1.reshape(H, W, Pp)

        # ---- conv2 (3x3, stride, pad=1) + bn2 + relu --------------------- #
        acc_ref[...] = jnp.zeros_like(acc_ref)
        act1 = act1_ref[...]                                  # (H+2, W+2, Pp)
        for ky in range(3):                                   # static unroll
            for kx in range(3):
                tap = act1[ky:ky + (Ho - 1) * s + 1:s,
                           kx:kx + (Wo - 1) * s + 1:s, :]     # (Ho, Wo, Pp)
                acc_ref[...] += jnp.dot(
                    tap.reshape(Ho * Wo, Pp), w2_ref[ky * 3 + kx],
                    preferred_element_type=jnp.float32)
        a2 = jnp.maximum(acc_ref[...] + b2_ref[...], 0.0).astype(compute_dtype)

        # ---- conv3 (1x1)+bn3 ; downsample (1x1, stride)+bn ; add ; relu -- #
        main = jnp.dot(a2, w3_ref[...],
                       preferred_element_type=jnp.float32) + b3_ref[...]
        xds = x[0:(Ho - 1) * s + 1:s, 0:(Wo - 1) * s + 1:s, :]
        iden = jnp.dot(xds.reshape(Ho * Wo, Cp), wd_ref[...],
                       preferred_element_type=jnp.float32) + bd_ref[...]
        o_ref[0] = jnp.maximum(main + iden, 0.0).astype(o_ref.dtype)

    return kernel


# ------------------------------ forward wrapper ----------------------------- #

def _round_up(x, m):
    return (x + m - 1) // m * m


def bottleneck_forward(x_nchw, params, stride=1, compute_dtype=jnp.float32,
                       eps=1e-5):
    x = jnp.transpose(x_nchw, (0, 2, 3, 1)).astype(jnp.float32)   # NHWC
    N, H, W, Cin = x.shape
    planes = params["conv1_w"].shape[0]
    cout = params["conv3_w"].shape[0]
    s = int(stride)
    Ho = (H - 1) // s + 1
    Wo = (W - 1) // s + 1

    LANE = 128
    Cp, Pp, Op = (_round_up(c, LANE) for c in (Cin, planes, cout))

    # ---- fold BN (inference) into conv weights / per-channel bias -------- #
    def fold(w_oihw, g, b, m, v):
        scale = g / jnp.sqrt(v + eps)
        return w_oihw * scale[:, None, None, None], b - m * scale

    w1f, b1 = fold(params["conv1_w"], params["bn1_g"], params["bn1_b"],
                   params["bn1_m"], params["bn1_v"])
    w2f, b2 = fold(params["conv2_w"], params["bn2_g"], params["bn2_b"],
                   params["bn2_m"], params["bn2_v"])
    w3f, b3 = fold(params["conv3_w"], params["bn3_g"], params["bn3_b"],
                   params["bn3_m"], params["bn3_v"])
    wdf, bd = fold(params["ds_w"], params["dsbn_g"], params["dsbn_b"],
                   params["dsbn_m"], params["dsbn_v"])

    def mat1x1(w, ip, op):
        m = jnp.transpose(w[:, :, 0, 0], (1, 0))                  # (I, O)
        return jnp.pad(m, ((0, ip - m.shape[0]),
                           (0, op - m.shape[1]))).astype(compute_dtype)

    w1m = mat1x1(w1f, Cp, Pp)
    w3m = mat1x1(w3f, Pp, Op)
    wdm = mat1x1(wdf, Cp, Op)

    w2m = jnp.transpose(w2f, (2, 3, 1, 0)).reshape(9, planes, planes)
    w2m = jnp.pad(w2m, ((0, 0), (0, Pp - planes),
                        (0, Pp - planes))).astype(compute_dtype)

    def vec(b, op):
        return jnp.pad(b, (0, op - b.shape[0])).reshape(1, op).astype(jnp.float32)

    b1v, b2v = vec(b1, Pp), vec(b2, Pp)
    b3v, bdv = vec(b3, Op), vec(bd, Op)

    xp = jnp.pad(x, ((0, 0), (0, 0), (0, 0), (0, Cp - Cin))).astype(compute_dtype)

    kernel = _make_bottleneck_kernel(H, W, Ho, Wo, s, Cp, Pp, Op, compute_dtype)

    in_specs = [
        pl.BlockSpec((1, H, W, Cp), lambda n: (n, 0, 0, 0)),      # x (per image)
        pl.BlockSpec((Cp, Pp),      lambda n: (0, 0)),            # weights stay
        pl.BlockSpec((1, Pp),       lambda n: (0, 0)),            # resident in
        pl.BlockSpec((9, Pp, Pp),   lambda n: (0, 0, 0)),         # VMEM across
        pl.BlockSpec((1, Pp),       lambda n: (0, 0)),            # grid steps
        pl.BlockSpec((Pp, Op),      lambda n: (0, 0)),
        pl.BlockSpec((1, Op),       lambda n: (0, 0)),
        pl.BlockSpec((Cp, Op),      lambda n: (0, 0)),
        pl.BlockSpec((1, Op),       lambda n: (0, 0)),
    ]
    out_specs = pl.BlockSpec((1, Ho * Wo, Op), lambda n: (n, 0, 0))

    itemsize = jnp.dtype(compute_dtype).itemsize
    m1, m2 = N * H * W, N * Ho * Wo
    flops = 2 * (m1 * Cp * Pp + 9 * m2 * Pp * Pp + m2 * Pp * Op + m2 * Cp * Op)
    bytes_accessed = (m1 * Cp * itemsize
                      + (Cp * Pp + 9 * Pp * Pp + Pp * Op + Cp * Op) * itemsize
                      + m2 * Op * 4)

    out = pl.pallas_call(
        kernel,
        grid=(N,),
        in_specs=in_specs,
        out_specs=out_specs,
        out_shape=jax.ShapeDtypeStruct((N, Ho * Wo, Op), jnp.float32),
        scratch_shapes=[pltpu.VMEM((H + 2, W + 2, Pp), compute_dtype),
                        pltpu.VMEM((Ho * Wo, Pp), jnp.float32)],
        compiler_params=pltpu.CompilerParams(
            dimension_semantics=("parallel",),
            vmem_limit_bytes=32 * 1024 * 1024),
        cost_estimate=pl.CostEstimate(flops=flops, transcendentals=0,
                                      bytes_accessed=bytes_accessed),
    )(xp, w1m, b1v, w2m, b2v, w3m, b3v, wdm, bdv)

    out = out[:, :, :cout].reshape(N, Ho, Wo, cout)
    return jnp.transpose(out, (0, 3, 1, 2)).astype(jnp.float32)   # back to NCHW


# --------------------------- pure-JAX reference ----------------------------- #

def bottleneck_reference(x_nchw, params, stride=1, eps=1e-5):
    x = jnp.transpose(x_nchw, (0, 2, 3, 1)).astype(jnp.float32)

    def conv(inp, w_oihw, st, pad):
        w = jnp.transpose(w_oihw, (2, 3, 1, 0))                   # OIHW -> HWIO
        return lax.conv_general_dilated(
            inp, w, (st, st), [(pad, pad), (pad, pad)],
            dimension_numbers=("NHWC", "HWIO", "NHWC"))

    def bn(inp, g, b, m, v):
        return (inp - m) / jnp.sqrt(v + eps) * g + b

    out = jax.nn.relu(bn(conv(x, params["conv1_w"], 1, 0),
                         params["bn1_g"], params["bn1_b"],
                         params["bn1_m"], params["bn1_v"]))
    out = jax.nn.relu(bn(conv(out, params["conv2_w"], stride, 1),
                         params["bn2_g"], params["bn2_b"],
                         params["bn2_m"], params["bn2_v"]))
    out = bn(conv(out, params["conv3_w"], 1, 0),
             params["bn3_g"], params["bn3_b"], params["bn3_m"], params["bn3_v"])
    iden = bn(conv(x, params["ds_w"], stride, 0),
              params["dsbn_g"], params["dsbn_b"],
              params["dsbn_m"], params["dsbn_v"])
    out = jax.nn.relu(out + iden)
    return jnp.transpose(out, (0, 3, 1, 2))


# ------------------------------- param init -------------------------------- #

def init_params(key, inplanes, planes, expansion=1):
    cout = planes * expansion
    ks = jax.random.split(key, 20)

    def bn_params(kg, kb, km, kv, c):
        return (jax.random.uniform(kg, (c,), jnp.float32, 0.5, 1.5),
                jax.random.normal(kb, (c,), jnp.float32) * 0.1,
                jax.random.normal(km, (c,), jnp.float32) * 0.1,
                jax.random.uniform(kv, (c,), jnp.float32, 0.5, 1.5))

    p = {
        "conv1_w": jax.random.normal(ks[0], (planes, inplanes, 1, 1), jnp.float32) * 0.2,
        "conv2_w": jax.random.normal(ks[1], (planes, planes, 3, 3), jnp.float32) * 0.2,
        "conv3_w": jax.random.normal(ks[2], (cout, planes, 1, 1), jnp.float32) * 0.2,
        "ds_w":    jax.random.normal(ks[3], (cout, inplanes, 1, 1), jnp.float32) * 0.2,
    }
    p["bn1_g"], p["bn1_b"], p["bn1_m"], p["bn1_v"] = bn_params(ks[4], ks[5], ks[6], ks[7], planes)
    p["bn2_g"], p["bn2_b"], p["bn2_m"], p["bn2_v"] = bn_params(ks[8], ks[9], ks[10], ks[11], planes)
    p["bn3_g"], p["bn3_b"], p["bn3_m"], p["bn3_v"] = bn_params(ks[12], ks[13], ks[14], ks[15], cout)
    p["dsbn_g"], p["dsbn_b"], p["dsbn_m"], p["dsbn_v"] = bn_params(ks[16], ks[17], ks[18], ks[19], cout)
    return p


# ---------------------------------- main ------------------------------------ #

if __name__ == "__main__":
    key = jax.random.PRNGKey(0)
    kx, kp = jax.random.split(key)

    inplanes, planes, stride = 4, 4, 1
    x = jax.random.normal(kx, (2, inplanes, 16, 16), jnp.float32)
    params = init_params(kp, inplanes, planes)

    ref = bottleneck_reference(x, params, stride=stride)

    # f32 path: tight correctness check against pure-JAX reference.
    out = jax.block_until_ready(
        bottleneck_forward(x, params, stride=stride, compute_dtype=jnp.float32))
    assert out.shape == ref.shape == (2, planes, 16, 16), out.shape
    max_err = float(jnp.max(jnp.abs(out - ref)))
    assert jnp.allclose(out, ref, atol=1e-4, rtol=1e-4), f"f32 max_err={max_err}"

    # bf16 MXU path (f32 accumulate): loose sanity check.
    out_bf16 = jax.block_until_ready(
        bottleneck_forward(x, params, stride=stride, compute_dtype=jnp.bfloat16))
    max_err_bf16 = float(jnp.max(jnp.abs(out_bf16 - ref)))
    assert max_err_bf16 < 0.5, f"bf16 max_err={max_err_bf16}"

    print("KERNEL_OK")
</pallas_src>

<mosaic_0001>
module attributes {stable_mosaic.version = 11 : i64} {
  func.func @kernel(%arg0: i32, %arg1: memref<1x16x16x128xf32, #tpu.memory_space<vmem>>, %arg2: memref<128x128xf32, #tpu.memory_space<vmem>>, %arg3: memref<1x128xf32, #tpu.memory_space<vmem>>, %arg4: memref<9x128x128xf32, #tpu.memory_space<vmem>>, %arg5: memref<1x128xf32, #tpu.memory_space<vmem>>, %arg6: memref<128x128xf32, #tpu.memory_space<vmem>>, %arg7: memref<1x128xf32, #tpu.memory_space<vmem>>, %arg8: memref<128x128xf32, #tpu.memory_space<vmem>>, %arg9: memref<1x128xf32, #tpu.memory_space<vmem>>, %arg10: memref<1x256x128xf32, #tpu.memory_space<vmem>>, %arg11: memref<18x18x128xf32, #tpu.memory_space<vmem>>, %arg12: memref<256x128xf32, #tpu.memory_space<vmem>>) attributes {dimension_semantics = [#tpu.dimension_semantics<parallel>], iteration_bounds = array<i64: 2>, scalar_prefetch = 0 : i64, scratch_operands = 2 : i64, tpu.core_type = #tpu.core_type<tc>, window_params = [{transform_indices = @transform_0, window_bounds = array<i64: 1, 16, 16, 128>}, {pipeline_mode = #tpu.pipeline_mode<synchronous>, transform_indices = @transform_1, window_bounds = array<i64: 128, 128>}, {pipeline_mode = #tpu.pipeline_mode<synchronous>, transform_indices = @transform_2, window_bounds = array<i64: 1, 128>}, {pipeline_mode = #tpu.pipeline_mode<synchronous>, transform_indices = @transform_3, window_bounds = array<i64: 9, 128, 128>}, {pipeline_mode = #tpu.pipeline_mode<synchronous>, transform_indices = @transform_4, window_bounds = array<i64: 1, 128>}, {pipeline_mode = #tpu.pipeline_mode<synchronous>, transform_indices = @transform_5, window_bounds = array<i64: 128, 128>}, {pipeline_mode = #tpu.pipeline_mode<synchronous>, transform_indices = @transform_6, window_bounds = array<i64: 1, 128>}, {pipeline_mode = #tpu.pipeline_mode<synchronous>, transform_indices = @transform_7, window_bounds = array<i64: 128, 128>}, {pipeline_mode = #tpu.pipeline_mode<synchronous>, transform_indices = @transform_8, window_bounds = array<i64: 1, 128>}, {transform_indices = @transform_9, window_bounds = array<i64: 1, 256, 128>}]} {
    %c0 = arith.constant 0 : index
    %c0_0 = arith.constant 0 : index
    %c0_1 = arith.constant 0 : index
    %c0_2 = arith.constant 0 : index
    %0 = vector.load %arg1[%c0, %c0_0, %c0_1, %c0_2] : memref<1x16x16x128xf32, #tpu.memory_space<vmem>>, vector<1x16x16x128xf32>
    %1 = vector.shape_cast %0 : vector<1x16x16x128xf32> to vector<16x16x128xf32>
    %2 = vector.shape_cast %1 : vector<16x16x128xf32> to vector<256x128xf32>
    %c0_3 = arith.constant 0 : index
    %c0_4 = arith.constant 0 : index
    %3 = vector.load %arg2[%c0_3, %c0_4] : memref<128x128xf32, #tpu.memory_space<vmem>>, vector<128x128xf32>
    %cst = arith.constant dense<0.000000e+00> : vector<256x128xf32>
    %4 = tpu.matmul %2, %3, %cst {dimension_numbers = #tpu.dot_dimension_numbers<[1], [0], [0], [1], [0, 0, 1, 1], [], []>} : vector<256x128xf32>, vector<128x128xf32>, vector<256x128xf32> -> vector<256x128xf32>
    %c0_5 = arith.constant 0 : index
    %c0_6 = arith.constant 0 : index
    %5 = vector.load %arg3[%c0_5, %c0_6] : memref<1x128xf32, #tpu.memory_space<vmem>>, vector<1x128xf32>
    %6 = vector.broadcast %5 : vector<1x128xf32> to vector<256x128xf32>
    %7 = arith.addf %4, %6 : vector<256x128xf32>
    %cst_7 = arith.constant 0.000000e+00 : f32
    %8 = vector.broadcast %cst_7 : f32 to vector<256x128xf32>
    %9 = arith.maximumf %7, %8 : vector<256x128xf32>
    %cst_8 = arith.constant 0.000000e+00 : f32
    %10 = vector.broadcast %cst_8 : f32 to vector<18x18x128xf32>
    %c0_9 = arith.constant 0 : index
    %c0_10 = arith.constant 0 : index
    %c0_11 = arith.constant 0 : index
    %11 = vector.load %arg11[%c0_9, %c0_10, %c0_11] : memref<18x18x128xf32, #tpu.memory_space<vmem>>, vector<18x18x128xf32>
    tpu.vector_store %arg11[%c0_9, %c0_10, %c0_11], %10 {strides = array<i32>} : memref<18x18x128xf32, #tpu.memory_space<vmem>>, vector<18x18x128xf32>,
    %12 = vector.shape_cast %9 : vector<256x128xf32> to vector<16x16x128xf32>
    %c1 = arith.constant 1 : index
    %c1_12 = arith.constant 1 : index
    %c0_13 = arith.constant 0 : index
    %13 = vector.load %arg11[%c1, %c1_12, %c0_13] : memref<18x18x128xf32, #tpu.memory_space<vmem>>, vector<16x16x128xf32>
    tpu.vector_store %arg11[%c1, %c1_12, %c0_13], %12 {strides = array<i32>} : memref<18x18x128xf32, #tpu.memory_space<vmem>>, vector<16x16x128xf32>,
    %cst_14 = arith.constant 0.000000e+00 : f32
    %14 = vector.broadcast %cst_14 : f32 to vector<256x128xf32>
    %c0_15 = arith.constant 0 : index
    %c0_16 = arith.constant 0 : index
    %15 = vector.load %arg12[%c0_15, %c0_16] : memref<256x128xf32, #tpu.memory_space<vmem>>, vector<256x128xf32>
    tpu.vector_store %arg12[%c0_15, %c0_16], %14 {strides = array<i32>} : memref<256x128xf32, #tpu.memory_space<vmem>>, vector<256x128xf32>,
    %c0_17 = arith.constant 0 : index
    %c0_18 = arith.constant 0 : index
    %c0_19 = arith.constant 0 : index
    %16 = vector.load %arg11[%c0_17, %c0_18, %c0_19] : memref<18x18x128xf32, #tpu.memory_space<vmem>>, vector<18x18x128xf32>
    %17 = vector.extract_strided_slice %16 {offsets = [0, 0, 0], sizes = [16, 16, 128], strides = [1, 1, 1]} : vector<18x18x128xf32> to vector<16x16x128xf32>
    %c0_20 = arith.constant 0 : index
    %c0_21 = arith.constant 0 : index
    %18 = vector.load %arg12[%c0_20, %c0_21] : memref<256x128xf32, #tpu.memory_space<vmem>>, vector<256x128xf32>
    %19 = vector.shape_cast %17 : vector<16x16x128xf32> to vector<256x128xf32>
    %c0_22 = arith.constant 0 : index
    %c0_23 = arith.constant 0 : index
    %c0_24 = arith.constant 0 : index
    %20 = vector.load %arg4[%c0_22, %c0_23, %c0_24] : memref<9x128x128xf32, #tpu.memory_space<vmem>>, vector<1x128x128xf32>
    %21 = vector.shape_cast %20 : vector<1x128x128xf32> to vector<128x128xf32>
    %cst_25 = arith.constant dense<0.000000e+00> : vector<256x128xf32>
    %22 = tpu.matmul %19, %21, %cst_25 {dimension_numbers = #tpu.dot_dimension_numbers<[1], [0], [0], [1], [0, 0, 1, 1], [], []>} : vector<256x128xf32>, vector<128x128xf32>, vector<256x128xf32> -> vector<256x128xf32>
    %23 = arith.addf %18, %22 : vector<256x128xf32>
    %c0_26 = arith.constant 0 : index
    %c0_27 = arith.constant 0 : index
    %24 = vector.load %arg12[%c0_26, %c0_27] : memref<256x128xf32, #tpu.memory_space<vmem>>, vector<256x128xf32>
    tpu.vector_store %arg12[%c0_26, %c0_27], %23 {strides = array<i32>} : memref<256x128xf32, #tpu.memory_space<vmem>>, vector<256x128xf32>,
    %25 = vector.extract_strided_slice %16 {offsets = [0, 1, 0], sizes = [16, 16, 128], strides = [1, 1, 1]} : vector<18x18x128xf32> to vector<16x16x128xf32>
    %c0_28 = arith.constant 0 : index
    %c0_29 = arith.constant 0 : index
    %26 = vector.load %arg12[%c0_28, %c0_29] : memref<256x128xf32, #tpu.memory_space<vmem>>, vector<256x128xf32>
    %27 = vector.shape_cast %25 : vector<16x16x128xf32> to vector<256x128xf32>
    %c1_30 = arith.constant 1 : index
    %c0_31 = arith.constant 0 : index
    %c0_32 = arith.constant 0 : index
    %28 = vector.load %arg4[%c1_30, %c0_31, %c0_32] : memref<9x128x128xf32, #tpu.memory_space<vmem>>, vector<1x128x128xf32>
    %29 = vector.shape_cast %28 : vector<1x128x128xf32> to vector<128x128xf32>
    %cst_33 = arith.constant dense<0.000000e+00> : vector<256x128xf32>
    %30 = tpu.matmul %27, %29, %cst_33 {dimension_numbers = #tpu.dot_dimension_numbers<[1], [0], [0], [1], [0, 0, 1, 1], [], []>} : vector<256x128xf32>, vector<128x128xf32>, vector<256x128xf32> -> vector<256x128xf32>
    %31 = arith.addf %26, %30 : vector<256x128xf32>
    %c0_34 = arith.constant 0 : index
    %c0_35 = arith.constant 0 : index
    %32 = vector.load %arg12[%c0_34, %c0_35] : memref<256x128xf32, #tpu.memory_space<vmem>>, vector<256x128xf32>
    tpu.vector_store %arg12[%c0_34, %c0_35], %31 {strides = array<i32>} : memref<256x128xf32, #tpu.memory_space<vmem>>, vector<256x128xf32>,
    %33 = vector.extract_strided_slice %16 {offsets = [0, 2, 0], sizes = [16, 16, 128], strides = [1, 1, 1]} : vector<18x18x128xf32> to vector<16x16x128xf32>
    %c0_36 = arith.constant 0 : index
    %c0_37 = arith.constant 0 : index
    %34 = vector.load %arg12[%c0_36, %c0_37] : memref<256x128xf32, #tpu.memory_space<vmem>>, vector<256x128xf32>
    %35 = vector.shape_cast %33 : vector<16x16x128xf32> to vector<256x128xf32>
    %c2 = arith.constant 2 : index
    %c0_38 = arith.constant 0 : index
    %c0_39 = arith.constant 0 : index
    %36 = vector.load %arg4[%c2, %c0_38, %c0_39] : memref<9x128x128xf32, #tpu.memory_space<vmem>>, vector<1x128x128xf32>
    %37 = vector.shape_cast %36 : vector<1x128x128xf32> to vector<128x128xf32>
    %cst_40 = arith.constant dense<0.000000e+00> : vector<256x128xf32>
    %38 = tpu.matmul %35, %37, %cst_40 {dimension_numbers = #tpu.dot_dimension_numbers<[1], [0], [0], [1], [0, 0, 1, 1], [], []>} : vector<256x128xf32>, vector<128x128xf32>, vector<256x128xf32> -> vector<256x128xf32>
    %39 = arith.addf %34, %38 : vector<256x128xf32>
    %c0_41 = arith.constant 0 : index
    %c0_42 = arith.constant 0 : index
    %40 = vector.load %arg12[%c0_41, %c0_42] : memref<256x128xf32, #tpu.memory_space<vmem>>, vector<256x128xf32>
    tpu.vector_store %arg12[%c0_41, %c0_42], %39 {strides = array<i32>} : memref<256x128xf32, #tpu.memory_space<vmem>>, vector<256x128xf32>,
    %41 = vector.extract_strided_slice %16 {offsets = [1, 0, 0], sizes = [16, 16, 128], strides = [1, 1, 1]} : vector<18x18x128xf32> to vector<16x16x128xf32>
    %c0_43 = arith.constant 0 : index
    %c0_44 = arith.constant 0 : index
    %42 = vector.load %arg12[%c0_43, %c0_44] : memref<256x128xf32, #tpu.memory_space<vmem>>, vector<256x128xf32>
    %43 = vector.shape_cast %41 : vector<16x16x128xf32> to vector<256x128xf32>
    %c3 = arith.constant 3 : index
    %c0_45 = arith.constant 0 : index
    %c0_46 = arith.constant 0 : index
    %44 = vector.load %arg4[%c3, %c0_45, %c0_46] : memref<9x128x128xf32, #tpu.memory_space<vmem>>, vector<1x128x128xf32>
    %45 = vector.shape_cast %44 : vector<1x128x128xf32> to vector<128x128xf32>
    %cst_47 = arith.constant dense<0.000000e+00> : vector<256x128xf32>
    %46 = tpu.matmul %43, %45, %cst_47 {dimension_numbers = #tpu.dot_dimension_numbers<[1], [0], [0], [1], [0, 0, 1, 1], [], []>} : vector<256x128xf32>, vector<128x128xf32>, vector<256x128xf32> -> vector<256x128xf32>
    %47 = arith.addf %42, %46 : vector<256x128xf32>
    %c0_48 = arith.constant 0 : index
    %c0_49 = arith.constant 0 : index
    %48 = vector.load %arg12[%c0_48, %c0_49] : memref<256x128xf32, #tpu.memory_space<vmem>>, vector<256x128xf32>
    tpu.vector_store %arg12[%c0_48, %c0_49], %47 {strides = array<i32>} : memref<256x128xf32, #tpu.memory_space<vmem>>, vector<256x128xf32>,
    %49 = vector.extract_strided_slice %16 {offsets = [1, 1, 0], sizes = [16, 16, 128], strides = [1, 1, 1]} : vector<18x18x128xf32> to vector<16x16x128xf32>
    %c0_50 = arith.constant 0 : index
    %c0_51 = arith.constant 0 : index
    %50 = vector.load %arg12[%c0_50, %c0_51] : memref<256x128xf32, #tpu.memory_space<vmem>>, vector<256x128xf32>
    %51 = vector.shape_cast %49 : vector<16x16x128xf32> to vector<256x128xf32>
    %c4 = arith.constant 4 : index
    %c0_52 = arith.constant 0 : index
    %c0_53 = arith.constant 0 : index
    %52 = vector.load %arg4[%c4, %c0_52, %c0_53] : memref<9x128x128xf32, #tpu.memory_space<vmem>>, vector<1x128x128xf32>
    %53 = vector.shape_cast %52 : vector<1x128x128xf32> to vector<128x128xf32>
    %cst_54 = arith.constant dense<0.000000e+00> : vector<256x128xf32>
    %54 = tpu.matmul %51, %53, %cst_54 {dimension_numbers = #tpu.dot_dimension_numbers<[1], [0], [0], [1], [0, 0, 1, 1], [], []>} : vector<256x128xf32>, vector<128x128xf32>, vector<256x128xf32> -> vector<256x128xf32>
    %55 = arith.addf %50, %54 : vector<256x128xf32>
    %c0_55 = arith.constant 0 : index
    %c0_56 = arith.constant 0 : index
    %56 = vector.load %arg12[%c0_55, %c0_56] : memref<256x128xf32, #tpu.memory_space<vmem>>, vector<256x128xf32>
    tpu.vector_store %arg12[%c0_55, %c0_56], %55 {strides = array<i32>} : memref<256x128xf32, #tpu.memory_space<vmem>>, vector<256x128xf32>,
    %57 = vector.extract_strided_slice %16 {offsets = [1, 2, 0], sizes = [16, 16, 128], strides = [1, 1, 1]} : vector<18x18x128xf32> to vector<16x16x128xf32>
    %c0_57 = arith.constant 0 : index
    %c0_58 = arith.constant 0 : index
    %58 = vector.load %arg12[%c0_57, %c0_58] : memref<256x128xf32, #tpu.memory_space<vmem>>, vector<256x128xf32>
    %59 = vector.shape_cast %57 : vector<16x16x128xf32> to vector<256x128xf32>
    %c5 = arith.constant 5 : index
    %c0_59 = arith.constant 0 : index
    %c0_60 = arith.constant 0 : index
    %60 = vector.load %arg4[%c5, %c0_59, %c0_60] : memref<9x128x128xf32, #tpu.memory_space<vmem>>, vector<1x128x128xf32>
    %61 = vector.shape_cast %60 : vector<1x128x128xf32> to vector<128x128xf32>
    %cst_61 = arith.constant dense<0.000000e+00> : vector<256x128xf32>
    %62 = tpu.matmul %59, %61, %cst_61 {dimension_numbers = #tpu.dot_dimension_numbers<[1], [0], [0], [1], [0, 0, 1, 1], [], []>} : vector<256x128xf32>, vector<128x128xf32>, vector<256x128xf32> -> vector<256x128xf32>
    %63 = arith.addf %58, %62 : vector<256x128xf32>
    %c0_62 = arith.constant 0 : index
    %c0_63 = arith.constant 0 : index
    %64 = vector.load %arg12[%c0_62, %c0_63] : memref<256x128xf32, #tpu.memory_space<vmem>>, vector<256x128xf32>
    tpu.vector_store %arg12[%c0_62, %c0_63], %63 {strides = array<i32>} : memref<256x128xf32, #tpu.memory_space<vmem>>, vector<256x128xf32>,
    %65 = vector.extract_strided_slice %16 {offsets = [2, 0, 0], sizes = [16, 16, 128], strides = [1, 1, 1]} : vector<18x18x128xf32> to vector<16x16x128xf32>
    %c0_64 = arith.constant 0 : index
    %c0_65 = arith.constant 0 : index
    %66 = vector.load %arg12[%c0_64, %c0_65] : memref<256x128xf32, #tpu.memory_space<vmem>>, vector<256x128xf32>
    %67 = vector.shape_cast %65 : vector<16x16x128xf32> to vector<256x128xf32>
    %c6 = arith.constant 6 : index
    %c0_66 = arith.constant 0 : index
    %c0_67 = arith.constant 0 : index
    %68 = vector.load %arg4[%c6, %c0_66, %c0_67] : memref<9x128x128xf32, #tpu.memory_space<vmem>>, vector<1x128x128xf32>
    %69 = vector.shape_cast %68 : vector<1x128x128xf32> to vector<128x128xf32>
    %cst_68 = arith.constant dense<0.000000e+00> : vector<256x128xf32>
    %70 = tpu.matmul %67, %69, %cst_68 {dimension_numbers = #tpu.dot_dimension_numbers<[1], [0], [0], [1], [0, 0, 1, 1], [], []>} : vector<256x128xf32>, vector<128x128xf32>, vector<256x128xf32> -> vector<256x128xf32>
    %71 = arith.addf %66, %70 : vector<256x128xf32>
    %c0_69 = arith.constant 0 : index
    %c0_70 = arith.constant 0 : index
    %72 = vector.load %arg12[%c0_69, %c0_70] : memref<256x128xf32, #tpu.memory_space<vmem>>, vector<256x128xf32>
    tpu.vector_store %arg12[%c0_69, %c0_70], %71 {strides = array<i32>} : memref<256x128xf32, #tpu.memory_space<vmem>>, vector<256x128xf32>,
    %73 = vector.extract_strided_slice %16 {offsets = [2, 1, 0], sizes = [16, 16, 128], strides = [1, 1, 1]} : vector<18x18x128xf32> to vector<16x16x128xf32>
    %c0_71 = arith.constant 0 : index
    %c0_72 = arith.constant 0 : index
    %74 = vector.load %arg12[%c0_71, %c0_72] : memref<256x128xf32, #tpu.memory_space<vmem>>, vector<256x128xf32>
    %75 = vector.shape_cast %73 : vector<16x16x128xf32> to vector<256x128xf32>
    %c7 = arith.constant 7 : index
    %c0_73 = arith.constant 0 : index
    %c0_74 = arith.constant 0 : index
    %76 = vector.load %arg4[%c7, %c0_73, %c0_74] : memref<9x128x128xf32, #tpu.memory_space<vmem>>, vector<1x128x128xf32>
    %77 = vector.shape_cast %76 : vector<1x128x128xf32> to vector<128x128xf32>
    %cst_75 = arith.constant dense<0.000000e+00> : vector<256x128xf32>
    %78 = tpu.matmul %75, %77, %cst_75 {dimension_numbers = #tpu.dot_dimension_numbers<[1], [0], [0], [1], [0, 0, 1, 1], [], []>} : vector<256x128xf32>, vector<128x128xf32>, vector<256x128xf32> -> vector<256x128xf32>
    %79 = arith.addf %74, %78 : vector<256x128xf32>
    %c0_76 = arith.constant 0 : index
    %c0_77 = arith.constant 0 : index
    %80 = vector.load %arg12[%c0_76, %c0_77] : memref<256x128xf32, #tpu.memory_space<vmem>>, vector<256x128xf32>
    tpu.vector_store %arg12[%c0_76, %c0_77], %79 {strides = array<i32>} : memref<256x128xf32, #tpu.memory_space<vmem>>, vector<256x128xf32>,
    %81 = vector.extract_strided_slice %16 {offsets = [2, 2, 0], sizes = [16, 16, 128], strides = [1, 1, 1]} : vector<18x18x128xf32> to vector<16x16x128xf32>
    %c0_78 = arith.constant 0 : index
    %c0_79 = arith.constant 0 : index
    %82 = vector.load %arg12[%c0_78, %c0_79] : memref<256x128xf32, #tpu.memory_space<vmem>>, vector<256x128xf32>
    %83 = vector.shape_cast %81 : vector<16x16x128xf32> to vector<256x128xf32>
    %c8 = arith.constant 8 : index
    %c0_80 = arith.constant 0 : index
    %c0_81 = arith.constant 0 : index
    %84 = vector.load %arg4[%c8, %c0_80, %c0_81] : memref<9x128x128xf32, #tpu.memory_space<vmem>>, vector<1x128x128xf32>
    %85 = vector.shape_cast %84 : vector<1x128x128xf32> to vector<128x128xf32>
    %cst_82 = arith.constant dense<0.000000e+00> : vector<256x128xf32>
    %86 = tpu.matmul %83, %85, %cst_82 {dimension_numbers = #tpu.dot_dimension_numbers<[1], [0], [0], [1], [0, 0, 1, 1], [], []>} : vector<256x128xf32>, vector<128x128xf32>, vector<256x128xf32> -> vector<256x128xf32>
    %87 = arith.addf %82, %86 : vector<256x128xf32>
    %c0_83 = arith.constant 0 : index
    %c0_84 = arith.constant 0 : index
    %88 = vector.load %arg12[%c0_83, %c0_84] : memref<256x128xf32, #tpu.memory_space<vmem>>, vector<256x128xf32>
    tpu.vector_store %arg12[%c0_83, %c0_84], %87 {strides = array<i32>} : memref<256x128xf32, #tpu.memory_space<vmem>>, vector<256x128xf32>,
    %c0_85 = arith.constant 0 : index
    %c0_86 = arith.constant 0 : index
    %89 = vector.load %arg12[%c0_85, %c0_86] : memref<256x128xf32, #tpu.memory_space<vmem>>, vector<256x128xf32>
    %c0_87 = arith.constant 0 : index
    %c0_88 = arith.constant 0 : index
    %90 = vector.load %arg5[%c0_87, %c0_88] : memref<1x128xf32, #tpu.memory_space<vmem>>, vector<1x128xf32>
    %91 = vector.broadcast %90 : vector<1x128xf32> to vector<256x128xf32>
    %92 = arith.addf %89, %91 : vector<256x128xf32>
    %cst_89 = arith.constant 0.000000e+00 : f32
    %93 = vector.broadcast %cst_89 : f32 to vector<256x128xf32>
    %94 = arith.maximumf %92, %93 : vector<256x128xf32>
    %c0_90 = arith.constant 0 : index
    %c0_91 = arith.constant 0 : index
    %95 = vector.load %arg6[%c0_90, %c0_91] : memref<128x128xf32, #tpu.memory_space<vmem>>, vector<128x128xf32>
    %cst_92 = arith.constant dense<0.000000e+00> : vector<256x128xf32>
    %96 = tpu.matmul %94, %95, %cst_92 {dimension_numbers = #tpu.dot_dimension_numbers<[1], [0], [0], [1], [0, 0, 1, 1], [], []>} : vector<256x128xf32>, vector<128x128xf32>, vector<256x128xf32> -> vector<256x128xf32>
    %c0_93 = arith.constant 0 : index
    %c0_94 = arith.constant 0 : index
    %97 = vector.load %arg7[%c0_93, %c0_94] : memref<1x128xf32, #tpu.memory_space<vmem>>, vector<1x128xf32>
    %98 = vector.broadcast %97 : vector<1x128xf32> to vector<256x128xf32>
    %99 = arith.addf %96, %98 : vector<256x128xf32>
    %100 = vector.shape_cast %1 : vector<16x16x128xf32> to vector<256x128xf32>
    %c0_95 = arith.constant 0 : index
    %c0_96 = arith.constant 0 : index
    %101 = vector.load %arg8[%c0_95, %c0_96] : memref<128x128xf32, #tpu.memory_space<vmem>>, vector<128x128xf32>
    %cst_97 = arith.constant dense<0.000000e+00> : vector<256x128xf32>
    %102 = tpu.matmul %100, %101, %cst_97 {dimension_numbers = #tpu.dot_dimension_numbers<[1], [0], [0], [1], [0, 0, 1, 1], [], []>} : vector<256x128xf32>, vector<128x128xf32>, vector<256x128xf32> -> vector<256x128xf32>
    %c0_98 = arith.constant 0 : index
    %c0_99 = arith.constant 0 : index
    %103 = vector.load %arg9[%c0_98, %c0_99] : memref<1x128xf32, #tpu.memory_space<vmem>>, vector<1x128xf32>
    %104 = vector.broadcast %103 : vector<1x128xf32> to vector<256x128xf32>
    %105 = arith.addf %102, %104 : vector<256x128xf32>
    %106 = arith.addf %99, %105 : vector<256x128xf32>
    %cst_100 = arith.constant 0.000000e+00 : f32
    %107 = vector.broadcast %cst_100 : f32 to vector<256x128xf32>
    %108 = arith.maximumf %106, %107 : vector<256x128xf32>
    %c0_101 = arith.constant 0 : index
    %c0_102 = arith.constant 0 : index
    %c0_103 = arith.constant 0 : index
    %109 = vector.load %arg10[%c0_101, %c0_102, %c0_103] : memref<1x256x128xf32, #tpu.memory_space<vmem>>, vector<1x256x128xf32>
    %110 = vector.shape_cast %109 : vector<1x256x128xf32> to vector<256x128xf32>
    %111 = vector.shape_cast %108 : vector<256x128xf32> to vector<1x256x128xf32>
    tpu.vector_store %arg10[%c0_101, %c0_102, %c0_103], %111 {strides = array<i32>} : memref<1x256x128xf32, #tpu.memory_space<vmem>>, vector<1x256x128xf32>,
    return
  }
  func.func @transform_0(%arg0: i32) -> (i32, i32, i32, i32) {
    %c0_i32 = arith.constant 0 : i32
    %c0_i32_0 = arith.constant 0 : i32
    %c0_i32_1 = arith.constant 0 : i32
    %c0_i32_2 = arith.constant 0 : i32
    return %arg0, %c0_i32, %c0_i32_0, %c0_i32_1 : i32, i32, i32, i32
  }
  func.func @transform_1(%arg0: i32) -> (i32, i32) {
    %c0_i32 = arith.constant 0 : i32
    %c0_i32_0 = arith.constant 0 : i32
    %c0_i32_1 = arith.constant 0 : i32
    return %c0_i32, %c0_i32_0 : i32, i32
  }
  func.func @transform_2(%arg0: i32) -> (i32, i32) {
    %c0_i32 = arith.constant 0 : i32
    %c0_i32_0 = arith.constant 0 : i32
    %c0_i32_1 = arith.constant 0 : i32
    return %c0_i32, %c0_i32_0 : i32, i32
  }
  func.func @transform_3(%arg0: i32) -> (i32, i32, i32) {
    %c0_i32 = arith.constant 0 : i32
    %c0_i32_0 = arith.constant 0 : i32
    %c0_i32_1 = arith.constant 0 : i32
    %c0_i32_2 = arith.constant 0 : i32
    return %c0_i32, %c0_i32_0, %c0_i32_1 : i32, i32, i32
  }
  func.func @transform_4(%arg0: i32) -> (i32, i32) {
    %c0_i32 = arith.constant 0 : i32
    %c0_i32_0 = arith.constant 0 : i32
    %c0_i32_1 = arith.constant 0 : i32
    return %c0_i32, %c0_i32_0 : i32, i32
  }
  func.func @transform_5(%arg0: i32) -> (i32, i32) {
    %c0_i32 = arith.constant 0 : i32
    %c0_i32_0 = arith.constant 0 : i32
    %c0_i32_1 = arith.constant 0 : i32
    return %c0_i32, %c0_i32_0 : i32, i32
  }
  func.func @transform_6(%arg0: i32) -> (i32, i32) {
    %c0_i32 = arith.constant 0 : i32
    %c0_i32_0 = arith.constant 0 : i32
    %c0_i32_1 = arith.constant 0 : i32
    return %c0_i32, %c0_i32_0 : i32, i32
  }
  func.func @transform_7(%arg0: i32) -> (i32, i32) {
    %c0_i32 = arith.constant 0 : i32
    %c0_i32_0 = arith.constant 0 : i32
    %c0_i32_1 = arith.constant 0 : i32
    return %c0_i32, %c0_i32_0 : i32, i32
  }
  func.func @transform_8(%arg0: i32) -> (i32, i32) {
    %c0_i32 = arith.constant 0 : i32
    %c0_i32_0 = arith.constant 0 : i32
    %c0_i32_1 = arith.constant 0 : i32
    return %c0_i32, %c0_i32_0 : i32, i32
  }
  func.func @transform_9(%arg0: i32) -> (i32, i32, i32) {
    %c0_i32 = arith.constant 0 : i32
    %c0_i32_0 = arith.constant 0 : i32
    %c0_i32_1 = arith.constant 0 : i32
    return %arg0, %c0_i32, %c0_i32_0 : i32, i32, i32
  }
}

</mosaic_0001>

<llo_original>
// kernel: tpu_custom_call.1
$region0: #{tpu_custom_call.1}
  #allocation0 [shape = 'u32[]', space=smem, size = 0x4, offset = 0x4, fixed_abs, tag = 'smem constant byte address 0x4 - core index']
  #allocation1 [shape = 'u32[72,128]{1,0:T(1,128)}', space=vmem, size = 0x9000, scoped, tag = 'internal scratch']
  #allocation2 [shape = 'f32[18,18,128]{2,1,0:T(8,128)}', space=vmem, size = 0x36000, scoped, tag = 'scratch operand']
  #allocation3 [shape = 'f32[256,128]{1,0:T(8,128)}', space=vmem, size = 0x20000, scoped, tag = 'scratch operand']
  %s0 = inlined_call_operand.hbm [shape: f32[2,16,16,128], index: 0, kind: input, shape index: {}]
  %s1 = inlined_call_operand.hbm [shape: f32[128,128], index: 1, kind: input, shape index: {}]
  %s2 = inlined_call_operand.vmem [shape: f32[1,128], index: 2, kind: input, shape index: {}]
  %s3 = inlined_call_operand.hbm [shape: f32[9,128,128], index: 3, kind: input, shape index: {}]
  %s4 = inlined_call_operand.vmem [shape: f32[1,128], index: 4, kind: input, shape index: {}]
  %s5 = inlined_call_operand.hbm [shape: f32[128,128], index: 5, kind: input, shape index: {}]
  %s6 = inlined_call_operand.vmem [shape: f32[1,128], index: 6, kind: input, shape index: {}]
  %s7 = inlined_call_operand.hbm [shape: f32[128,128], index: 7, kind: input, shape index: {}]
  %s8 = inlined_call_operand.vmem [shape: f32[1,128], index: 8, kind: input, shape index: {}]
  %s9 = inlined_call_operand.hbm [shape: f32[2,256,128], index: 9, kind: output, shape index: {}]
  %s10 = sld [smem:[#allocation0]]
  $region89: #{tpu_custom_call.1} parent=0
    _
  %s12 = ssub.s32 1, %s10
  %s13 = scalar_select 0, %s12, %s10
  $region1: #{tpu_custom_call.1} parent=0
    #allocation4 [shape = 'u8[262144]{0}', space=vmem, size = 0x40000, scoped, tag = 'input window, operand 0']
    #allocation5 [shape = 's32[2]{0}', space=sflag, size = 0x8, scoped, tag = 'scoped memory for tpu_custom_call.1']
    #allocation6 [shape = 's32[2]{0}', space=sflag, size = 0x8, scoped, tag = 'scoped memory for tpu_custom_call.1']
    #allocation7 [shape = 'u8[65536]{0}', space=vmem, size = 0x10000, scoped, tag = 'input window, operand 1, single buffered']
    #allocation8 [shape = 's32[1]{0}', space=sflag, size = 0x4, scoped, tag = 'scoped memory for tpu_custom_call.1']
    #allocation9 [shape = 'u8[589824]{0}', space=vmem, size = 0x90000, scoped, tag = 'input window, operand 3, single buffered']
    #allocation10 [shape = 'u8[65536]{0}', space=vmem, size = 0x10000, scoped, tag = 'input window, operand 5, single buffered']
    #allocation11 [shape = 's32[1]{0}', space=sflag, size = 0x4, scoped, tag = 'scoped memory for tpu_custom_call.1']
    #allocation12 [shape = 'u8[65536]{0}', space=vmem, size = 0x10000, scoped, tag = 'input window, operand 7, single buffered']
    #allocation13 [shape = 'u8[262144]{0}', space=vmem, size = 0x40000, scoped, tag = 'output window, operand 0']
    %14 = vsyncpa [#allocation5], 0
    %s15 = scalar_lea.sflag [#allocation5], 1
    %16 = vsyncpa %s15, 0
    %17 = vsyncpa [#allocation8], 0
    %18 = vsyncpa [#allocation11], 0
    %19 = vsyncpa [#allocation6], 0
    %s20 = scalar_lea.sflag [#allocation6], 1
    %21 = vsyncpa %s20, 0
    loop: start=0, step=1, limit=4
    $region2: #{tpu_custom_call.1} parent=1 // loop_pre_header
      _
    $region3: #{tpu_custom_call.1} parent=1 // loop_header
      %s23 = sphi 0, %s27
      %p24 = scmp.ge.s32.totalorder %s23, 4
      %s33 = sphi 0, %s35
      %s36 = sphi 0, %s33
      %s37 = sphi 0, %s36
      %s53 = sphi 0, %s37
      %s57 = sphi 0, %s57
      %s59 = sphi 0, %s57
      %s60 = sphi 0, %s59
      %s74 = sphi 0, %s60
      %s78 = sphi 0, %s78
      %s80 = sphi 0, %s78
      %s81 = sphi 0, %s80
      %s95 = sphi 0, %s81
      %s99 = sphi 0, %s99
      %s101 = sphi 0, %s99
      %s102 = sphi 0, %s101
      %s116 = sphi 0, %s102
      %s120 = sphi 0, %s120
      %s122 = sphi 0, %s120
      %s123 = sphi 0, %s122
      %s137 = sphi 0, %s123
      %s141 = sphi 0, %s141
      %s143 = sphi 0, %s141
      %s144 = sphi 0, %s143
      %s158 = sphi 0, %s144
      %s162 = sphi 0, %s162
      %s164 = sphi 0, %s162
      %s165 = sphi 0, %s164
      %s179 = sphi 0, %s165
      %s183 = sphi 0, %s183
      %s185 = sphi 0, %s183
      %s186 = sphi 0, %s185
      %s200 = sphi 0, %s186
      %s204 = sphi 0, %s204
      %s206 = sphi 0, %s204
      %s207 = sphi 0, %s206
      %s221 = sphi 0, %s207
      %s227 = sphi 0, %s229
      %s230 = sphi 0, %s227
      %s231 = sphi 0, %s230
      %s247 = sphi 0, %s231
    $region4: #{tpu_custom_call.1} parent=1 // loop_header_branch
      %26 = sbr.rel (%p24) target = $region8
    $region5: #{tpu_custom_call.1} parent=1 // loop_body
      %s28 = ssub.s32 %s23, 1
      %s29 = ssub.s32 %s23, 2
      %s30 = sadd.s32 %s23, 1
      %s31 = ssub.s32 %s23, %s30
      %p32 = scmp.eq.s32.totalorder %s31, 0
      %s34 = sadd.s32 %s33, 1
      %s35 = scalar_select %p32, %s33, %s34
      %p38 = pneg %p32
      %p39 = scmp.eq.s32.totalorder %s23, 1
      %p40 = por %p38, %p39
      %p41 = scmp.ne.s32.totalorder %s33, %s36
      %p42 = scmp.eq.s32.totalorder %s23, 0
      %p43 = por %p41, %p42
      %p44 = scmp.ne.s32.totalorder %s33, %s36
      %p45 = scmp.eq.s32.totalorder %s28, 1
      %p46 = por %p44, %p45
      %p47 = scmp.ne.s32.totalorder %s36, %s37
      %p48 = scmp.eq.s32.totalorder %s28, 0
      %p49 = por %p47, %p48
      %p50 = scmp.ne.s32.totalorder %s36, %s37
      %p51 = scmp.eq.s32.totalorder %s29, 1
      %p52 = por %p50, %p51
      %p54 = scmp.ne.s32.totalorder %s37, %s53
      %p55 = scmp.eq.s32.totalorder %s29, 0
      %p56 = por %p54, %p55
      %s58 = sadd.s32 %s57, 1
      %p61 = scmp.eq.s32.totalorder %s23, 1
      %p62 = scmp.ne.s32.totalorder %s57, %s59
      %p63 = scmp.eq.s32.totalorder %s23, 0
      %p64 = por %p62, %p63
      %p65 = scmp.ne.s32.totalorder %s57, %s59
      %p66 = scmp.eq.s32.totalorder %s28, 1
      %p67 = por %p65, %p66
      %p68 = scmp.ne.s32.totalorder %s59, %s60
      %p69 = scmp.eq.s32.totalorder %s28, 0
      %p70 = por %p68, %p69
      %p71 = scmp.ne.s32.totalorder %s59, %s60
      %p72 = scmp.eq.s32.totalorder %s29, 1
      %p73 = por %p71, %p72
      %p75 = scmp.ne.s32.totalorder %s60, %s74
      %p76 = scmp.eq.s32.totalorder %s29, 0
      %p77 = por %p75, %p76
      %s79 = sadd.s32 %s78, 1
      %p82 = scmp.eq.s32.totalorder %s23, 1
      %p83 = scmp.ne.s32.totalorder %s78, %s80
      %p84 = scmp.eq.s32.totalorder %s23, 0
      %p85 = por %p83, %p84
      %p86 = scmp.ne.s32.totalorder %s78, %s80
      %p87 = scmp.eq.s32.totalorder %s28, 1
      %p88 = por %p86, %p87
      %p89 = scmp.ne.s32.totalorder %s80, %s81
      %p90 = scmp.eq.s32.totalorder %s28, 0
      %p91 = por %p89, %p90
      %p92 = scmp.ne.s32.totalorder %s80, %s81
      %p93 = scmp.eq.s32.totalorder %s29, 1
      %p94 = por %p92, %p93
      %p96 = scmp.ne.s32.totalorder %s81, %s95
      %p97 = scmp.eq.s32.totalorder %s29, 0
      %p98 = por %p96, %p97
      %s100 = sadd.s32 %s99, 1
      %p103 = scmp.eq.s32.totalorder %s23, 1
      %p104 = scmp.ne.s32.totalorder %s99, %s101
      %p105 = scmp.eq.s32.totalorder %s23, 0
      %p106 = por %p104, %p105
      %p107 = scmp.ne.s32.totalorder %s99, %s101
      %p108 = scmp.eq.s32.totalorder %s28, 1
      %p109 = por %p107, %p108
      %p110 = scmp.ne.s32.totalorder %s101, %s102
      %p111 = scmp.eq.s32.totalorder %s28, 0
      %p112 = por %p110, %p111
      %p113 = scmp.ne.s32.totalorder %s101, %s102
      %p114 = scmp.eq.s32.totalorder %s29, 1
      %p115 = por %p113, %p114
      %p117 = scmp.ne.s32.totalorder %s102, %s116
      %p118 = scmp.eq.s32.totalorder %s29, 0
      %p119 = por %p117, %p118
      %s121 = sadd.s32 %s120, 1
      %p124 = scmp.eq.s32.totalorder %s23, 1
      %p125 = scmp.ne.s32.totalorder %s120, %s122
      %p126 = scmp.eq.s32.totalorder %s23, 0
      %p127 = por %p125, %p126
      %p128 = scmp.ne.s32.totalorder %s120, %s122
      %p129 = scmp.eq.s32.totalorder %s28, 1
      %p130 = por %p128, %p129
      %p131 = scmp.ne.s32.totalorder %s122, %s123
      %p132 = scmp.eq.s32.totalorder %s28, 0
      %p133 = por %p131, %p132
      %p134 = scmp.ne.s32.totalorder %s122, %s123
      %p135 = scmp.eq.s32.totalorder %s29, 1
      %p136 = por %p134, %p135
      %p138 = scmp.ne.s32.totalorder %s123, %s137
      %p139 = scmp.eq.s32.totalorder %s29, 0
      %p140 = por %p138, %p139
      %s142 = sadd.s32 %s141, 1
      %p145 = scmp.eq.s32.totalorder %s23, 1
      %p146 = scmp.ne.s32.totalorder %s141, %s143
      %p147 = scmp.eq.s32.totalorder %s23, 0
      %p148 = por %p146, %p147
      %p149 = scmp.ne.s32.totalorder %s141, %s143
      %p150 = scmp.eq.s32.totalorder %s28, 1
      %p151 = por %p149, %p150
      %p152 = scmp.ne.s32.totalorder %s143, %s144
      %p153 = scmp.eq.s32.totalorder %s28, 0
      %p154 = por %p152, %p153
      %p155 = scmp.ne.s32.totalorder %s143, %s144
      %p156 = scmp.eq.s32.totalorder %s29, 1
      %p157 = por %p155, %p156
      %p159 = scmp.ne.s32.totalorder %s144, %s158
      %p160 = scmp.eq.s32.totalorder %s29, 0
      %p161 = por %p159, %p160
      %s163 = sadd.s32 %s162, 1
      %p166 = scmp.eq.s32.totalorder %s23, 1
      %p167 = scmp.ne.s32.totalorder %s162, %s164
      %p168 = scmp.eq.s32.totalorder %s23, 0
      %p169 = por %p167, %p168
      %p170 = scmp.ne.s32.totalorder %s162, %s164
      %p171 = scmp.eq.s32.totalorder %s28, 1
      %p172 = por %p170, %p171
      %p173 = scmp.ne.s32.totalorder %s164, %s165
      %p174 = scmp.eq.s32.totalorder %s28, 0
      %p175 = por %p173, %p174
      %p176 = scmp.ne.s32.totalorder %s164, %s165
      %p177 = scmp.eq.s32.totalorder %s29, 1
      %p178 = por %p176, %p177
      %p180 = scmp.ne.s32.totalorder %s165, %s179
      %p181 = scmp.eq.s32.totalorder %s29, 0
      %p182 = por %p180, %p181
      %s184 = sadd.s32 %s183, 1
      %p187 = scmp.eq.s32.totalorder %s23, 1
      %p188 = scmp.ne.s32.totalorder %s183, %s185
      %p189 = scmp.eq.s32.totalorder %s23, 0
      %p190 = por %p188, %p189
      %p191 = scmp.ne.s32.totalorder %s183, %s185
      %p192 = scmp.eq.s32.totalorder %s28, 1
      %p193 = por %p191, %p192
      %p194 = scmp.ne.s32.totalorder %s185, %s186
      %p195 = scmp.eq.s32.totalorder %s28, 0
      %p196 = por %p194, %p195
      %p197 = scmp.ne.s32.totalorder %s185, %s186
      %p198 = scmp.eq.s32.totalorder %s29, 1
      %p199 = por %p197, %p198
      %p201 = scmp.ne.s32.totalorder %s186, %s200
      %p202 = scmp.eq.s32.totalorder %s29, 0
      %p203 = por %p201, %p202
      %s205 = sadd.s32 %s204, 1
      %p208 = scmp.eq.s32.totalorder %s23, 1
      %p209 = scmp.ne.s32.totalorder %s204, %s206
      %p210 = scmp.eq.s32.totalorder %s23, 0
      %p211 = por %p209, %p210
      %p212 = scmp.ne.s32.totalorder %s204, %s206
      %p213 = scmp.eq.s32.totalorder %s28, 1
      %p214 = por %p212, %p213
      %p215 = scmp.ne.s32.totalorder %s206, %s207
      %p216 = scmp.eq.s32.totalorder %s28, 0
      %p217 = por %p215, %p216
      %p218 = scmp.ne.s32.totalorder %s206, %s207
      %p219 = scmp.eq.s32.totalorder %s29, 1
      %p220 = por %p218, %p219
      %p222 = scmp.ne.s32.totalorder %s207, %s221
      %p223 = scmp.eq.s32.totalorder %s29, 0
      %p224 = por %p222, %p223
      %s225 = ssub.s32 %s23, %s30
      %p226 = scmp.eq.s32.totalorder %s225, 0
      %s228 = sadd.s32 %s227, 1
      %s229 = scalar_select %p226, %s227, %s228
      %p232 = pneg %p226
      %p233 = scmp.eq.s32.totalorder %s23, 1
      %p234 = por %p232, %p233
      %p235 = scmp.ne.s32.totalorder %s227, %s230
      %p236 = scmp.eq.s32.totalorder %s23, 0
      %p237 = por %p235, %p236
      %p238 = scmp.ne.s32.totalorder %s227, %s230
      %p239 = scmp.eq.s32.totalorder %s28, 1
      %p240 = por %p238, %p239
      %p241 = scmp.ne.s32.totalorder %s230, %s231
      %p242 = scmp.eq.s32.totalorder %s28, 0
      %p243 = por %p241, %p242
      %p244 = scmp.ne.s32.totalorder %s230, %s231
      %p245 = scmp.eq.s32.totalorder %s29, 1
      %p246 = por %p244, %p245
      %p248 = scmp.ne.s32.totalorder %s231, %s247
      %p249 = scmp.eq.s32.totalorder %s29, 0
      %p250 = por %p248, %p249
      %p251 = scmp.le.s32.totalorder 1, %s23
      %p252 = scmp.lt.s32.totalorder %s23, 3
      %p253 = pnand %p251, %p252
      %p254 = pneg %p253
      // Predicated region
      $region9: #{tpu_custom_call.1} parent=5 // pred_check
        _
      $region10: #{tpu_custom_call.1} parent=5 // pred_check_branch
        %256 = sbr.rel (%p253) target = $region12
      $region11: #{tpu_custom_call.1} parent=5 // pred_region
        %s257 = ssub.s32 %s23, 1
        // Predicated region
        $region13: #{tpu_custom_call.1} parent=11 // pred_check
          %p258 = pneg %p70
        $region14: #{tpu_custom_call.1} parent=11 // pred_check_branch
          %260 = sbr.rel (%p258) target = $region16
        $region15: #{tpu_custom_call.1} parent=11 // pred_region
          %262 = vsyncadd [#allocation8], 0
          %s263 = sshll.u32 %s1, 4
          %s264 = int_to_ptr.hbm [resolvable:$true] %s263
          %s265 = sshll.u32 [#allocation7], 4
          %s266 = int_to_ptr.vmem [resolvable:$true] %s265
          %271 = dma.hbm_to_vmem [thread:$0]  %s264, 2048, %s266, [#allocation8], 128, 128, 8
        $region16: #{tpu_custom_call.1} parent=11 // pred_fallthru
          _
        // Predicated region
        $region17: #{tpu_custom_call.1} parent=11 // pred_check
          %p272 = pneg %p91
        $region18: #{tpu_custom_call.1} parent=11 // pred_check_branch
          %274 = sbr.rel (%p272) target = $region20
        $region19: #{tpu_custom_call.1} parent=11 // pred_region
          _
        $region20: #{tpu_custom_call.1} parent=11 // pred_fallthru
          _
        // Predicated region
        $region21: #{tpu_custom_call.1} parent=11 // pred_check
          %p275 = pneg %p112
        $region22: #{tpu_custom_call.1} parent=11 // pred_check_branch
          %277 = sbr.rel (%p275) target = $region24
        $region23: #{tpu_custom_call.1} parent=11 // pred_region
          %279 = vsyncadd [#allocation8], 0
          %s280 = sshll.u32 %s3, 4
          %s281 = int_to_ptr.hbm [resolvable:$true] %s280
          %s282 = sshll.u32 [#allocation9], 4
          %s283 = int_to_ptr.vmem [resolvable:$true] %s282
          %288 = dma.hbm_to_vmem [thread:$0]  %s281, 18432, %s283, [#allocation8], 128, 128, 8
        $region24: #{tpu_custom_call.1} parent=11 // pred_fallthru
          _
        // Predicated region
        $region25: #{tpu_custom_call.1} parent=11 // pred_check
          %p289 = pneg %p133
        $region26: #{tpu_custom_call.1} parent=11 // pred_check_branch
          %291 = sbr.rel (%p289) target = $region28
        $region27: #{tpu_custom_call.1} parent=11 // pred_region
          _
        $region28: #{tpu_custom_call.1} parent=11 // pred_fallthru
          _
        // Predicated region
        $region29: #{tpu_custom_call.1} parent=11 // pred_check
          %p292 = pneg %p154
        $region30: #{tpu_custom_call.1} parent=11 // pred_check_branch
          %294 = sbr.rel (%p292) target = $region32
        $region31: #{tpu_custom_call.1} parent=11 // pred_region
          %296 = vsyncadd [#allocation11], 0
          %s297 = sshll.u32 %s5, 4
          %s298 = int_to_ptr.hbm [resolvable:$true] %s297
          %s299 = sshll.u32 [#allocation10], 4
          %s300 = int_to_ptr.vmem [resolvable:$true] %s299
          %305 = dma.hbm_to_vmem [thread:$0]  %s298, 2048, %s300, [#allocation11], 128, 128, 8
        $region32: #{tpu_custom_call.1} parent=11 // pred_fallthru
          _
        // Predicated region
        $region33: #{tpu_custom_call.1} parent=11 // pred_check
          %p306 = pneg %p175
        $region34: #{tpu_custom_call.1} parent=11 // pred_check_branch
          %308 = sbr.rel (%p306) target = $region36
        $region35: #{tpu_custom_call.1} parent=11 // pred_region
          _
        $region36: #{tpu_custom_call.1} parent=11 // pred_fallthru
          _
        // Predicated region
        $region37: #{tpu_custom_call.1} parent=11 // pred_check
          %p309 = pneg %p196
        $region38: #{tpu_custom_call.1} parent=11 // pred_check_branch
          %311 = sbr.rel (%p309) target = $region40
        $region39: #{tpu_custom_call.1} parent=11 // pred_region
          %313 = vsyncadd [#allocation11], 0
          %s314 = sshll.u32 %s7, 4
          %s315 = int_to_ptr.hbm [resolvable:$true] %s314
          %s316 = sshll.u32 [#allocation12], 4
          %s317 = int_to_ptr.vmem [resolvable:$true] %s316
          %322 = dma.hbm_to_vmem [thread:$0]  %s315, 2048, %s317, [#allocation11], 128, 128, 8
        $region40: #{tpu_custom_call.1} parent=11 // pred_fallthru
          _
        // Predicated region
        $region41: #{tpu_custom_call.1} parent=11 // pred_check
          %p323 = pneg %p217
        $region42: #{tpu_custom_call.1} parent=11 // pred_check_branch
          %325 = sbr.rel (%p323) target = $region44
        $region43: #{tpu_custom_call.1} parent=11 // pred_region
          _
        $region44: #{tpu_custom_call.1} parent=11 // pred_fallthru
          _
      $region12: #{tpu_custom_call.1} parent=5 // pred_fallthru
        _
      %p326 = scmp.lt.s32.totalorder %s23, 2
      // Predicated region
      $region45: #{tpu_custom_call.1} parent=5 // pred_check
        %p327 = pneg %p326
      $region46: #{tpu_custom_call.1} parent=5 // pred_check_branch
        %329 = sbr.rel (%p327) target = $region48
      $region47: #{tpu_custom_call.1} parent=5 // pred_region
        // Predicated region
        $region49: #{tpu_custom_call.1} parent=47 // pred_check
          %p330 = pneg %p43
        $region50: #{tpu_custom_call.1} parent=47 // pred_check_branch
          %332 = sbr.rel (%p330) target = $region52
        $region51: #{tpu_custom_call.1} parent=47 // pred_region
          %s333 = sand.u32 %s33, 1
          %s334 = scalar_lea.sflag [#allocation5], %s333
          %s335 = sand.u32 %s33, 1
          %s336 = smul.addr %s335, 256
          %s337 = scalar_lea.vmem [#allocation4], %s336
          %339 = vsyncadd %s334, 0
          %s340 = smul.addr %s23, 32
          %s341 = smul.addr %s340, 8
          %s342 = scalar_lea.hbm %s0, %s341
          %s343 = sshll.u32 %s342, 4
          %s344 = int_to_ptr.hbm [resolvable:$true] %s343
          %s345 = sshll.u32 %s337, 4
          %s346 = int_to_ptr.vmem [resolvable:$true] %s345
          %351 = dma.hbm_to_vmem [thread:$0]  %s344, 4096, %s346, %s334, 128, 128, 8
        $region52: #{tpu_custom_call.1} parent=47 // pred_fallthru
          _
      $region48: #{tpu_custom_call.1} parent=5 // pred_fallthru
        _
      %p352 = scmp.le.s32.totalorder 1, %s23
      %p353 = scmp.lt.s32.totalorder %s23, 3
      %p354 = pnand %p352, %p353
      %p355 = pneg %p354
      // Predicated region
      $region53: #{tpu_custom_call.1} parent=5 // pred_check
        _
      $region54: #{tpu_custom_call.1} parent=5 // pred_check_branch
        %357 = sbr.rel (%p354) target = $region56
      $region55: #{tpu_custom_call.1} parent=5 // pred_region
        %s358 = ssub.s32 %s23, 1
        %s359 = sand.u32 %s36, 1
        %s360 = scalar_lea.sflag [#allocation5], %s359
        %s361 = sand.u32 %s36, 1
        %s362 = smul.addr %s361, 256
        %s363 = scalar_lea.vmem [#allocation4], %s362
        // Predicated region
        $region57: #{tpu_custom_call.1} parent=55 // pred_check
          %p364 = pneg %p49
        $region58: #{tpu_custom_call.1} parent=55 // pred_check_branch
          %366 = sbr.rel (%p364) target = $region60
        $region59: #{tpu_custom_call.1} parent=55 // pred_region
          %368 = dma.done %s360, 4096
        $region60: #{tpu_custom_call.1} parent=55 // pred_fallthru
          _
        // Predicated region
        $region61: #{tpu_custom_call.1} parent=55 // pred_check
          %p369 = pneg %p70
        $region62: #{tpu_custom_call.1} parent=55 // pred_check_branch
          %371 = sbr.rel (%p369) target = $region64
        $region63: #{tpu_custom_call.1} parent=55 // pred_region
          %373 = dma.done [#allocation8], 2048
        $region64: #{tpu_custom_call.1} parent=55 // pred_fallthru
          _
        // Predicated region
        $region65: #{tpu_custom_call.1} parent=55 // pred_check
          %p374 = pneg %p112
        $region66: #{tpu_custom_call.1} parent=55 // pred_check_branch
          %376 = sbr.rel (%p374) target = $region68
        $region67: #{tpu_custom_call.1} parent=55 // pred_region
          %378 = dma.done [#allocation8], 18432
        $region68: #{tpu_custom_call.1} parent=55 // pred_fallthru
          _
        // Predicated region
        $region69: #{tpu_custom_call.1} parent=55 // pred_check
          %p379 = pneg %p154
        $region70: #{tpu_custom_call.1} parent=55 // pred_check_branch
          %381 = sbr.rel (%p379) target = $region72
        $region71: #{tpu_custom_call.1} parent=55 // pred_region
          %383 = dma.done [#allocation11], 2048
        $region72: #{tpu_custom_call.1} parent=55 // pred_fallthru
          _
        // Predicated region
        $region73: #{tpu_custom_call.1} parent=55 // pred_check
          %p384 = pneg %p196
        $region74: #{tpu_custom_call.1} parent=55 // pred_check_branch
          %386 = sbr.rel (%p384) target = $region76
        $region75: #{tpu_custom_call.1} parent=55 // pred_region
          %388 = dma.done [#allocation11], 2048
        $region76: #{tpu_custom_call.1} parent=55 // pred_fallthru
          _
        %s389 = sand.u32 %s36, 1
        %s390 = scalar_lea.sflag [#allocation5], %s389
        %s391 = sand.u32 %s36, 1
        %s392 = smul.addr %s391, 256
        %s393 = scalar_lea.vmem [#allocation4], %s392
        %p394 = pneg %p49
        %p395 = pneg %p46
        %p396 = pneg %p70
        %p397 = pneg %p67
        %p398 = pneg %p91
        %p399 = pneg %p88
        %p400 = pneg %p112
        %p401 = pneg %p109
        %p402 = pneg %p133
        %p403 = pneg %p130
        %p404 = pneg %p154
        %p405 = pneg %p151
        %p406 = pneg %p175
        %p407 = pneg %p172
        %p408 = pneg %p196
        %p409 = pneg %p193
        %p410 = pneg %p217
        %p411 = pneg %p214
        %p412 = pneg %p243
        %p413 = pneg %p240
        %s414 = sand.u32 %s230, 1
        %s415 = scalar_lea.sflag [#allocation6], %s414
        %s416 = sand.u32 %s230, 1
        %s417 = smul.addr %s416, 256
        %s418 = scalar_lea.vmem [#allocation13], %s417
        %v419 = vld [vmem:[%s363] sm:$0xff]
        %v420 = vld [vmem:[%s363 + $0x8] sm:$0xff]
        %v421 = vld [vmem:[%s363 + $0x10] sm:$0xff]
        %v422 = vld [vmem:[%s363 + $0x18] sm:$0xff]
        %v423 = vld [vmem:[%s363 + $0x20] sm:$0xff]
        %v424 = vld [vmem:[%s363 + $0x28] sm:$0xff]
        %v425 = vld [vmem:[%s363 + $0x30] sm:$0xff]
        %v426 = vld [vmem:[%s363 + $0x38] sm:$0xff]
        %v427 = vld [vmem:[%s363 + $0x40] sm:$0xff]
        %v428 = vld [vmem:[%s363 + $0x48] sm:$0xff]
        %v429 = vld [vmem:[%s363 + $0x50] sm:$0xff]
        %v430 = vld [vmem:[%s363 + $0x58] sm:$0xff]
        %v431 = vld [vmem:[%s363 + $0x60] sm:$0xff]
        %v432 = vld [vmem:[%s363 + $0x68] sm:$0xff]
        %v433 = vld [vmem:[%s363 + $0x70] sm:$0xff]
        %v434 = vld [vmem:[%s363 + $0x78] sm:$0xff]
        %v435 = vld [vmem:[%s363 + $0x80] sm:$0xff]
        %v436 = vld [vmem:[%s363 + $0x88] sm:$0xff]
        %v437 = vld [vmem:[%s363 + $0x90] sm:$0xff]
        %v438 = vld [vmem:[%s363 + $0x98] sm:$0xff]
        %v439 = vld [vmem:[%s363 + $0xa0] sm:$0xff]
        %v440 = vld [vmem:[%s363 + $0xa8] sm:$0xff]
        %v441 = vld [vmem:[%s363 + $0xb0] sm:$0xff]
        %v442 = vld [vmem:[%s363 + $0xb8] sm:$0xff]
        %v443 = vld [vmem:[%s363 + $0xc0] sm:$0xff]
        %v444 = vld [vmem:[%s363 + $0xc8] sm:$0xff]
        %v445 = vld [vmem:[%s363 + $0xd0] sm:$0xff]
        %v446 = vld [vmem:[%s363 + $0xd8] sm:$0xff]
        %v447 = vld [vmem:[%s363 + $0xe0] sm:$0xff]
        %v448 = vld [vmem:[%s363 + $0xe8] sm:$0xff]
        %v449 = vld [vmem:[%s363 + $0xf0] sm:$0xff]
        %v450 = vld [vmem:[%s363 + $0xf8] sm:$0xff]
        %v451 = vld [vmem:[#allocation7] sm:$0xff]
        %v452 = vld [vmem:[#allocation7 + $0x8] sm:$0xff]
        %v453 = vld [vmem:[#allocation7 + $0x10] sm:$0xff]
        %v454 = vld [vmem:[#allocation7 + $0x18] sm:$0xff]
        %v455 = vld [vmem:[#allocation7 + $0x20] sm:$0xff]
        %v456 = vld [vmem:[#allocation7 + $0x28] sm:$0xff]
        %v457 = vld [vmem:[#allocation7 + $0x30] sm:$0xff]
        %v458 = vld [vmem:[#allocation7 + $0x38] sm:$0xff]
        %v459 = vld [vmem:[#allocation7 + $0x40] sm:$0xff]
        %v460 = vld [vmem:[#allocation7 + $0x48] sm:$0xff]
        %v461 = vld [vmem:[#allocation7 + $0x50] sm:$0xff]
        %v462 = vld [vmem:[#allocation7 + $0x58] sm:$0xff]
        %v463 = vld [vmem:[#allocation7 + $0x60] sm:$0xff]
        %v464 = vld [vmem:[#allocation7 + $0x68] sm:$0xff]
        %v465 = vld [vmem:[#allocation7 + $0x70] sm:$0xff]
        %v466 = vld [vmem:[#allocation7 + $0x78] sm:$0xff]
        %v467 = vld [vmem:[%s2] sm:$0x1]
        %v469 = vperm.slane %v467, 0
        %471 = vmatpush.msra.mxu0 %v466
        %472 = vmatpush.msra.mxu0 %v465
        %473 = vmatpush.msra.mxu0 %v464
        %474 = vmatpush.msra.mxu0 %v463
        %475 = vmatpush.msra.mxu0 %v462
        %476 = vmatpush.msra.mxu0 %v461
        %477 = vmatpush.msra.mxu0 %v460
        %478 = vmatpush.msra.mxu0 %v459
        %479 = vmatpush.msra.mxu0 %v458
        %480 = vmatpush.msra.mxu0 %v457
        %481 = vmatpush.msra.mxu0 %v456
        %482 = vmatpush.msra.mxu0 %v455
        %483 = vmatpush.msra.mxu0 %v454
        %484 = vmatpush.msra.mxu0 %v453
        %485 = vmatpush.msra.mxu0 %v452
        %486 = vmatpush.msra.mxu0 %v451
        %487 = vmatmul.f32.gmra.mxu0 %v419
        %v488 = vpop.f32.mrf.mxu0
        %v489 = vadd.f32 %v469, %v488
        %490 = vmatmul.f32.gmra.mxu0 %v420
        %v491 = vpop.f32.mrf.mxu0
        %v492 = vadd.f32 %v469, %v491
        %493 = vmatmul.f32.gmra.mxu0 %v421
        %v494 = vpop.f32.mrf.mxu0
        %v495 = vadd.f32 %v469, %v494
        %496 = vmatmul.f32.gmra.mxu0 %v422
        %v497 = vpop.f32.mrf.mxu0
        %v498 = vadd.f32 %v469, %v497
        %499 = vmatmul.f32.gmra.mxu0 %v423
        %v500 = vpop.f32.mrf.mxu0
        %v501 = vadd.f32 %v469, %v500
        %502 = vmatmul.f32.gmra.mxu0 %v424
        %v503 = vpop.f32.mrf.mxu0
        %v504 = vadd.f32 %v469, %v503
        %505 = vmatmul.f32.gmra.mxu0 %v425
        %v506 = vpop.f32.mrf.mxu0
        %v507 = vadd.f32 %v469, %v506
        %508 = vmatmul.f32.gmra.mxu0 %v426
        %v509 = vpop.f32.mrf.mxu0
        %v510 = vadd.f32 %v469, %v509
        %511 = vmatmul.f32.gmra.mxu0 %v427
        %v512 = vpop.f32.mrf.mxu0
        %v513 = vadd.f32 %v469, %v512
        %514 = vmatmul.f32.gmra.mxu0 %v428
        %v515 = vpop.f32.mrf.mxu0
        %v516 = vadd.f32 %v469, %v515
        %517 = vmatmul.f32.gmra.mxu0 %v429
        %v518 = vpop.f32.mrf.mxu0
        %v519 = vadd.f32 %v469, %v518
        %520 = vmatmul.f32.gmra.mxu0 %v430
        %v521 = vpop.f32.mrf.mxu0
        %v522 = vadd.f32 %v469, %v521
        %523 = vmatmul.f32.gmra.mxu0 %v431
        %v524 = vpop.f32.mrf.mxu0
        %v525 = vadd.f32 %v469, %v524
        %526 = vmatmul.f32.gmra.mxu0 %v432
        %v527 = vpop.f32.mrf.mxu0
        %v528 = vadd.f32 %v469, %v527
        %529 = vmatmul.f32.gmra.mxu0 %v433
        %v530 = vpop.f32.mrf.mxu0
        %v531 = vadd.f32 %v469, %v530
        %532 = vmatmul.f32.gmra.mxu0 %v434
        %v533 = vpop.f32.mrf.mxu0
        %v534 = vadd.f32 %v469, %v533
        %535 = vmatmul.f32.gmra.mxu0 %v435
        %v536 = vpop.f32.mrf.mxu0
        %v537 = vadd.f32 %v469, %v536
        %538 = vmatmul.f32.gmra.mxu0 %v436
        %v539 = vpop.f32.mrf.mxu0
        %v540 = vadd.f32 %v469, %v539
        %541 = vmatmul.f32.gmra.mxu0 %v437
        %v542 = vpop.f32.mrf.mxu0
        %v543 = vadd.f32 %v469, %v542
        %544 = vmatmul.f32.gmra.mxu0 %v438
        %v545 = vpop.f32.mrf.mxu0
        %v546 = vadd.f32 %v469, %v545
        %547 = vmatmul.f32.gmra.mxu0 %v439
        %v548 = vpop.f32.mrf.mxu0
        %v549 = vadd.f32 %v469, %v548
        %550 = vmatmul.f32.gmra.mxu0 %v440
        %v551 = vpop.f32.mrf.mxu0
        %v552 = vadd.f32 %v469, %v551
        %553 = vmatmul.f32.gmra.mxu0 %v441
        %v554 = vpop.f32.mrf.mxu0
        %v555 = vadd.f32 %v469, %v554
        %556 = vmatmul.f32.gmra.mxu0 %v442
        %v557 = vpop.f32.mrf.mxu0
        %v558 = vadd.f32 %v469, %v557
        %559 = vmatmul.f32.gmra.mxu0 %v443
        %v560 = vpop.f32.mrf.mxu0
        %v561 = vadd.f32 %v469, %v560
        %562 = vmatmul.f32.gmra.mxu0 %v444
        %v563 = vpop.f32.mrf.mxu0
        %v564 = vadd.f32 %v469, %v563
        %565 = vmatmul.f32.gmra.mxu0 %v445
        %v566 = vpop.f32.mrf.mxu0
        %v567 = vadd.f32 %v469, %v566
        %568 = vmatmul.f32.gmra.mxu0 %v446
        %v569 = vpop.f32.mrf.mxu0
        %v570 = vadd.f32 %v469, %v569
        %571 = vmatmul.f32.gmra.mxu0 %v447
        %v572 = vpop.f32.mrf.mxu0
        %v573 = vadd.f32 %v469, %v572
        %574 = vmatmul.f32.gmra.mxu0 %v448
        %v575 = vpop.f32.mrf.mxu0
        %v576 = vadd.f32 %v469, %v575
        %577 = vmatmul.f32.gmra.mxu0 %v449
        %v578 = vpop.f32.mrf.mxu0
        %v579 = vadd.f32 %v469, %v578
        %580 = vmatmul.f32.gmra.mxu0 %v450
        %v581 = vpop.f32.mrf.mxu0
        %v582 = vadd.f32 %v469, %v581
        %583 = vdwg.mxu0
        %v584 = vmax.f32 %v489, 0.0
        %v585 = vmax.f32 %v492, 0.0
        %v586 = vmax.f32 %v495, 0.0
        %v587 = vmax.f32 %v498, 0.0
        %v588 = vmax.f32 %v501, 0.0
        %v589 = vmax.f32 %v504, 0.0
        %v590 = vmax.f32 %v507, 0.0
        %v591 = vmax.f32 %v510, 0.0
        %v592 = vmax.f32 %v513, 0.0
        %v593 = vmax.f32 %v516, 0.0
        %v594 = vmax.f32 %v519, 0.0
        %v595 = vmax.f32 %v522, 0.0
        %v596 = vmax.f32 %v525, 0.0
        %v597 = vmax.f32 %v528, 0.0
        %v598 = vmax.f32 %v531, 0.0
        %v599 = vmax.f32 %v534, 0.0
        %v600 = vmax.f32 %v537, 0.0
        %v601 = vmax.f32 %v540, 0.0
        %v602 = vmax.f32 %v543, 0.0
        %v603 = vmax.f32 %v546, 0.0
        %v604 = vmax.f32 %v549, 0.0
        %v605 = vmax.f32 %v552, 0.0
        %v606 = vmax.f32 %v555, 0.0
        %v607 = vmax.f32 %v558, 0.0
        %v608 = vmax.f32 %v561, 0.0
        %v609 = vmax.f32 %v564, 0.0
        %v610 = vmax.f32 %v567, 0.0
        %v611 = vmax.f32 %v570, 0.0
        %v612 = vmax.f32 %v573, 0.0
        %v613 = vmax.f32 %v576, 0.0
        %v614 = vmax.f32 %v579, 0.0
        %v615 = vmax.f32 %v582, 0.0
        %616 = vst [vmem:[#allocation2] sm:$0xff] 0.0
        %617 = vst [vmem:[#allocation2 + $0x8] sm:$0xff] 0.0
        %618 = vst [vmem:[#allocation2 + $0x10] sm:$0x3] 0.0
        %619 = vst [vmem:[#allocation2 + $0x18] sm:$0xff] 0.0
        %620 = vst [vmem:[#allocation2 + $0x20] sm:$0xff] 0.0
        %621 = vst [vmem:[#allocation2 + $0x28] sm:$0x3] 0.0
        %622 = vst [vmem:[#allocation2 + $0x30] sm:$0xff] 0.0
        %623 = vst [vmem:[#allocation2 + $0x38] sm:$0xff] 0.0
        %624 = vst [vmem:[#allocation2 + $0x40] sm:$0x3] 0.0
        %625 = vst [vmem:[#allocation2 + $0x48] sm:$0xff] 0.0
        %626 = vst [vmem:[#allocation2 + $0x50] sm:$0xff] 0.0
        %627 = vst [vmem:[#allocation2 + $0x58] sm:$0x3] 0.0
        %628 = vst [vmem:[#allocation2 + $0x60] sm:$0xff] 0.0
        %629 = vst [vmem:[#allocation2 + $0x68] sm:$0xff] 0.0
        %630 = vst [vmem:[#allocation2 + $0x70] sm:$0x3] 0.0
        %631 = vst [vmem:[#allocation2 + $0x78] sm:$0xff] 0.0
        %632 = vst [vmem:[#allocation2 + $0x80] sm:$0xff] 0.0
        %633 = vst [vmem:[#allocation2 + $0x88] sm:$0x3] 0.0
        %634 = vst [vmem:[#allocation2 + $0x90] sm:$0xff] 0.0
        %635 = vst [vmem:[#allocation2 + $0x98] sm:$0xff] 0.0
        %636 = vst [vmem:[#allocation2 + $0xa0] sm:$0x3] 0.0
        %637 = vst [vmem:[#allocation2 + $0xa8] sm:$0xff] 0.0
        %638 = vst [vmem:[#allocation2 + $0xb0] sm:$0xff] 0.0
        %639 = vst [vmem:[#allocation2 + $0xb8] sm:$0x3] 0.0
        %640 = vst [vmem:[#allocation2 + $0xc0] sm:$0xff] 0.0
        %641 = vst [vmem:[#allocation2 + $0xc8] sm:$0xff] 0.0
        %642 = vst [vmem:[#allocation2 + $0xd0] sm:$0x3] 0.0
        %643 = vst [vmem:[#allocation2 + $0xd8] sm:$0xff] 0.0
        %644 = vst [vmem:[#allocation2 + $0xe0] sm:$0xff] 0.0
        %645 = vst [vmem:[#allocation2 + $0xe8] sm:$0x3] 0.0
        %646 = vst [vmem:[#allocation2 + $0xf0] sm:$0xff] 0.0
        %647 = vst [vmem:[#allocation2 + $0xf8] sm:$0xff] 0.0
        %648 = vst [vmem:[#allocation2 + $0x100] sm:$0x3] 0.0
        %649 = vst [vmem:[#allocation2 + $0x108] sm:$0xff] 0.0
        %650 = vst [vmem:[#allocation2 + $0x110] sm:$0xff] 0.0
        %651 = vst [vmem:[#allocation2 + $0x118] sm:$0x3] 0.0
        %652 = vst [vmem:[#allocation2 + $0x120] sm:$0xff] 0.0
        %653 = vst [vmem:[#allocation2 + $0x128] sm:$0xff] 0.0
        %654 = vst [vmem:[#allocation2 + $0x130] sm:$0x3] 0.0
        %655 = vst [vmem:[#allocation2 + $0x138] sm:$0xff] 0.0
        %656 = vst [vmem:[#allocation2 + $0x140] sm:$0xff] 0.0
        %657 = vst [vmem:[#allocation2 + $0x148] sm:$0x3] 0.0
        %658 = vst [vmem:[#allocation2 + $0x150] sm:$0xff] 0.0
        %659 = vst [vmem:[#allocation2 + $0x158] sm:$0xff] 0.0
        %660 = vst [vmem:[#allocation2 + $0x160] sm:$0x3] 0.0
        %661 = vst [vmem:[#allocation2 + $0x168] sm:$0xff] 0.0
        %662 = vst [vmem:[#allocation2 + $0x170] sm:$0xff] 0.0
        %663 = vst [vmem:[#allocation2 + $0x178] sm:$0x3] 0.0
        %664 = vst [vmem:[#allocation2 + $0x180] sm:$0xff] 0.0
        %665 = vst [vmem:[#allocation2 + $0x188] sm:$0xff] 0.0
        %666 = vst [vmem:[#allocation2 + $0x190] sm:$0x3] 0.0
        %667 = vst [vmem:[#allocation2 + $0x198] sm:$0xff] 0.0
        %668 = vst [vmem:[#allocation2 + $0x1a0] sm:$0xff] 0.0
        %669 = vst [vmem:[#allocation2 + $0x1a8] sm:$0x3] 0.0
        %s670 = scalar_lea.vmem [#allocation2], 24
        %671 = vst [vmem:[%s670 + $0x1] sm:$0xff] %v584
        %672 = vst [vmem:[%s670 + $0x9] sm:$0xff] %v585
        %673 = vst [vmem:[%s670 + $0x19] sm:$0xff] %v586
        %674 = vst [vmem:[%s670 + $0x21] sm:$0xff] %v587
        %675 = vst [vmem:[%s670 + $0x31] sm:$0xff] %v588
        %676 = vst [vmem:[%s670 + $0x39] sm:$0xff] %v589
        %677 = vst [vmem:[%s670 + $0x49] sm:$0xff] %v590
        %678 = vst [vmem:[%s670 + $0x51] sm:$0xff] %v591
        %679 = vst [vmem:[%s670 + $0x61] sm:$0xff] %v592
        %680 = vst [vmem:[%s670 + $0x69] sm:$0xff] %v593
        %681 = vst [vmem:[%s670 + $0x79] sm:$0xff] %v594
        %682 = vst [vmem:[%s670 + $0x81] sm:$0xff] %v595
        %683 = vst [vmem:[%s670 + $0x91] sm:$0xff] %v596
        %684 = vst [vmem:[%s670 + $0x99] sm:$0xff] %v597
        %685 = vst [vmem:[%s670 + $0xa9] sm:$0xff] %v598
        %686 = vst [vmem:[%s670 + $0xb1] sm:$0xff] %v599
        %687 = vst [vmem:[%s670 + $0xc1] sm:$0xff] %v600
        %688 = vst [vmem:[%s670 + $0xc9] sm:$0xff] %v601
        %689 = vst [vmem:[%s670 + $0xd9] sm:$0xff] %v602
        %690 = vst [vmem:[%s670 + $0xe1] sm:$0xff] %v603
        %691 = vst [vmem:[%s670 + $0xf1] sm:$0xff] %v604
        %692 = vst [vmem:[%s670 + $0xf9] sm:$0xff] %v605
        %693 = vst [vmem:[%s670 + $0x109] sm:$0xff] %v606
        %694 = vst [vmem:[%s670 + $0x111] sm:$0xff] %v607
        %695 = vst [vmem:[%s670 + $0x121] sm:$0xff] %v608
        %696 = vst [vmem:[%s670 + $0x129] sm:$0xff] %v609
        %697 = vst [vmem:[%s670 + $0x139] sm:$0xff] %v610
        %698 = vst [vmem:[%s670 + $0x141] sm:$0xff] %v611
        %699 = vst [vmem:[%s670 + $0x151] sm:$0xff] %v612
        %700 = vst [vmem:[%s670 + $0x159] sm:$0xff] %v613
        %701 = vst [vmem:[%s670 + $0x169] sm:$0xff] %v614
        %702 = vst [vmem:[%s670 + $0x171] sm:$0xff] %v615
        %703 = vst [vmem:[#allocation3] sm:$0xff] 0.0
        %704 = vst [vmem:[#allocation3 + $0x8] sm:$0xff] 0.0
        %705 = vst [vmem:[#allocation3 + $0x10] sm:$0xff] 0.0
        %706 = vst [vmem:[#allocation3 + $0x18] sm:$0xff] 0.0
        %707 = vst [vmem:[#allocation3 + $0x20] sm:$0xff] 0.0
        %708 = vst [vmem:[#allocation3 + $0x28] sm:$0xff] 0.0
        %709 = vst [vmem:[#allocation3 + $0x30] sm:$0xff] 0.0
        %710 = vst [vmem:[#allocation3 + $0x38] sm:$0xff] 0.0
        %711 = vst [vmem:[#allocation3 + $0x40] sm:$0xff] 0.0
        %712 = vst [vmem:[#allocation3 + $0x48] sm:$0xff] 0.0
        %713 = vst [vmem:[#allocation3 + $0x50] sm:$0xff] 0.0
        %714 = vst [vmem:[#allocation3 + $0x58] sm:$0xff] 0.0
        %715 = vst [vmem:[#allocation3 + $0x60] sm:$0xff] 0.0
        %716 = vst [vmem:[#allocation3 + $0x68] sm:$0xff] 0.0
        %717 = vst [vmem:[#allocation3 + $0x70] sm:$0xff] 0.0
        %718 = vst [vmem:[#allocation3 + $0x78] sm:$0xff] 0.0
        %719 = vst [vmem:[#allocation3 + $0x80] sm:$0xff] 0.0
        %720 = vst [vmem:[#allocation3 + $0x88] sm:$0xff] 0.0
        %721 = vst [vmem:[#allocation3 + $0x90] sm:$0xff] 0.0
        %722 = vst [vmem:[#allocation3 + $0x98] sm:$0xff] 0.0
        %723 = vst [vmem:[#allocation3 + $0xa0] sm:$0xff] 0.0
        %724 = vst [vmem:[#allocation3 + $0xa8] sm:$0xff] 0.0
        %725 = vst [vmem:[#allocation3 + $0xb0] sm:$0xff] 0.0
        %726 = vst [vmem:[#allocation3 + $0xb8] sm:$0xff] 0.0
        %727 = vst [vmem:[#allocation3 + $0xc0] sm:$0xff] 0.0
        %728 = vst [vmem:[#allocation3 + $0xc8] sm:$0xff] 0.0
        %729 = vst [vmem:[#allocation3 + $0xd0] sm:$0xff] 0.0
        %730 = vst [vmem:[#allocation3 + $0xd8] sm:$0xff] 0.0
        %731 = vst [vmem:[#allocation3 + $0xe0] sm:$0xff] 0.0
        %732 = vst [vmem:[#allocation3 + $0xe8] sm:$0xff] 0.0
        %733 = vst [vmem:[#allocation3 + $0xf0] sm:$0xff] 0.0
        %734 = vst [vmem:[#allocation3 + $0xf8] sm:$0xff] 0.0
        %v735 = vld [vmem:[#allocation2] sm:$0xff]
        %v736 = vld [vmem:[#allocation2 + $0x8] sm:$0xff]
        %v737 = vld [vmem:[#allocation2 + $0x10] sm:$0x3]
        %v738 = vld [vmem:[#allocation2 + $0x18] sm:$0xff]
        %v739 = vld [vmem:[#allocation2 + $0x20] sm:$0xff]
        %v740 = vld [vmem:[#allocation2 + $0x28] sm:$0x3]
        %v741 = vld [vmem:[#allocation2 + $0x30] sm:$0xff]
        %v742 = vld [vmem:[#allocation2 + $0x38] sm:$0xff]
        %v743 = vld [vmem:[#allocation2 + $0x40] sm:$0x3]
        %v744 = vld [vmem:[#allocation2 + $0x48] sm:$0xff]
        %v745 = vld [vmem:[#allocation2 + $0x50] sm:$0xff]
        %v746 = vld [vmem:[#allocation2 + $0x58] sm:$0x3]
        %v747 = vld [vmem:[#allocation2 + $0x60] sm:$0xff]
        %v748 = vld [vmem:[#allocation2 + $0x68] sm:$0xff]
        %v749 = vld [vmem:[#allocation2 + $0x70] sm:$0x3]
        %v750 = vld [vmem:[#allocation2 + $0x78] sm:$0xff]
        %v751 = vld [vmem:[#allocation2 + $0x80] sm:$0xff]
        %v752 = vld [vmem:[#allocation2 + $0x88] sm:$0x3]
        %v753 = vld [vmem:[#allocation2 + $0x90] sm:$0xff]
        %v754 = vld [vmem:[#allocation2 + $0x98] sm:$0xff]
        %v755 = vld [vmem:[#allocation2 + $0xa0] sm:$0x3]
        %v756 = vld [vmem:[#allocation2 + $0xa8] sm:$0xff]
        %v757 = vld [vmem:[#allocation2 + $0xb0] sm:$0xff]
        %v758 = vld [vmem:[#allocation2 + $0xb8] sm:$0x3]
        %v759 = vld [vmem:[#allocation2 + $0xc0] sm:$0xff]
        %v760 = vld [vmem:[#allocation2 + $0xc8] sm:$0xff]
        %v761 = vld [vmem:[#allocation2 + $0xd0] sm:$0x3]
        %v762 = vld [vmem:[#allocation2 + $0xd8] sm:$0xff]
        %v763 = vld [vmem:[#allocation2 + $0xe0] sm:$0xff]
        %v764 = vld [vmem:[#allocation2 + $0xe8] sm:$0x3]
        %v765 = vld [vmem:[#allocation2 + $0xf0] sm:$0xff]
        %v766 = vld [vmem:[#allocation2 + $0xf8] sm:$0xff]
        %v767 = vld [vmem:[#allocation2 + $0x100] sm:$0x3]
        %v768 = vld [vmem:[#allocation2 + $0x108] sm:$0xff]
        %v769 = vld [vmem:[#allocation2 + $0x110] sm:$0xff]
        %v770 = vld [vmem:[#allocation2 + $0x118] sm:$0x3]
        %v771 = vld [vmem:[#allocation2 + $0x120] sm:$0xff]
        %v772 = vld [vmem:[#allocation2 + $0x128] sm:$0xff]
        %v773 = vld [vmem:[#allocation2 + $0x130] sm:$0x3]
        %v774 = vld [vmem:[#allocation2 + $0x138] sm:$0xff]
        %v775 = vld [vmem:[#allocation2 + $0x140] sm:$0xff]
        %v776 = vld [vmem:[#allocation2 + $0x148] sm:$0x3]
        %v777 = vld [vmem:[#allocation2 + $0x150] sm:$0xff]
        %v778 = vld [vmem:[#allocation2 + $0x158] sm:$0xff]
        %v779 = vld [vmem:[#allocation2 + $0x160] sm:$0x3]
        %v780 = vld [vmem:[#allocation2 + $0x168] sm:$0xff]
        %v781 = vld [vmem:[#allocation2 + $0x170] sm:$0xff]
        %v782 = vld [vmem:[#allocation2 + $0x178] sm:$0x3]
        %v783 = vld [vmem:[#allocation2 + $0x180] sm:$0xff]
        %v784 = vld [vmem:[#allocation2 + $0x188] sm:$0xff]
        %v785 = vld [vmem:[#allocation2 + $0x190] sm:$0x3]
        %v786 = vld [vmem:[#allocation2 + $0x198] sm:$0xff]
        %v787 = vld [vmem:[#allocation2 + $0x1a0] sm:$0xff]
        %v788 = vld [vmem:[#allocation2 + $0x1a8] sm:$0x3]
        %v789 = vld [vmem:[#allocation3] sm:$0xff]
        %v790 = vld [vmem:[#allocation3 + $0x8] sm:$0xff]
        %v791 = vld [vmem:[#allocation3 + $0x10] sm:$0xff]
        %v792 = vld [vmem:[#allocation3 + $0x18] sm:$0xff]
        %v793 = vld [vmem:[#allocation3 + $0x20] sm:$0xff]
        %v794 = vld [vmem:[#allocation3 + $0x28] sm:$0xff]
        %v795 = vld [vmem:[#allocation3 + $0x30] sm:$0xff]
        %v796 = vld [vmem:[#allocation3 + $0x38] sm:$0xff]
        %v797 = vld [vmem:[#allocation3 + $0x40] sm:$0xff]
        %v798 = vld [vmem:[#allocation3 + $0x48] sm:$0xff]
        %v799 = vld [vmem:[#allocation3 + $0x50] sm:$0xff]
        %v800 = vld [vmem:[#allocation3 + $0x58] sm:$0xff]
        %v801 = vld [vmem:[#allocation3 + $0x60] sm:$0xff]
        %v802 = vld [vmem:[#allocation3 + $0x68] sm:$0xff]
        %v803 = vld [vmem:[#allocation3 + $0x70] sm:$0xff]
        %v804 = vld [vmem:[#allocation3 + $0x78] sm:$0xff]
        %v805 = vld [vmem:[#allocation3 + $0x80] sm:$0xff]
        %v806 = vld [vmem:[#allocation3 + $0x88] sm:$0xff]
        %v807 = vld [vmem:[#allocation3 + $0x90] sm:$0xff]
        %v808 = vld [vmem:[#allocation3 + $0x98] sm:$0xff]
        %v809 = vld [vmem:[#allocation3 + $0xa0] sm:$0xff]
        %v810 = vld [vmem:[#allocation3 + $0xa8] sm:$0xff]
        %v811 = vld [vmem:[#allocation3 + $0xb0] sm:$0xff]
        %v812 = vld [vmem:[#allocation3 + $0xb8] sm:$0xff]
        %v813 = vld [vmem:[#allocation3 + $0xc0] sm:$0xff]
        %v814 = vld [vmem:[#allocation3 + $0xc8] sm:$0xff]
        %v815 = vld [vmem:[#allocation3 + $0xd0] sm:$0xff]
        %v816 = vld [vmem:[#allocation3 + $0xd8] sm:$0xff]
        %v817 = vld [vmem:[#allocation3 + $0xe0] sm:$0xff]
        %v818 = vld [vmem:[#allocation3 + $0xe8] sm:$0xff]
        %v819 = vld [vmem:[#allocation3 + $0xf0] sm:$0xff]
        %v820 = vld [vmem:[#allocation3 + $0xf8] sm:$0xff]
        %v821 = vld [vmem:[#allocation9] sm:$0xff]
        %v822 = vld [vmem:[#allocation9 + $0x8] sm:$0xff]
        %v823 = vld [vmem:[#allocation9 + $0x10] sm:$0xff]
        %v824 = vld [vmem:[#allocation9 + $0x18] sm:$0xff]
        %v825 = vld [vmem:[#allocation9 + $0x20] sm:$0xff]
        %v826 = vld [vmem:[#allocation9 + $0x28] sm:$0xff]
        %v827 = vld [vmem:[#allocation9 + $0x30] sm:$0xff]
        %v828 = vld [vmem:[#allocation9 + $0x38] sm:$0xff]
        %v829 = vld [vmem:[#allocation9 + $0x40] sm:$0xff]
        %v830 = vld [vmem:[#allocation9 + $0x48] sm:$0xff]
        %v831 = vld [vmem:[#allocation9 + $0x50] sm:$0xff]
        %v832 = vld [vmem:[#allocation9 + $0x58] sm:$0xff]
        %v833 = vld [vmem:[#allocation9 + $0x60] sm:$0xff]
        %v834 = vld [vmem:[#allocation9 + $0x68] sm:$0xff]
        %v835 = vld [vmem:[#allocation9 + $0x70] sm:$0xff]
        %v836 = vld [vmem:[#allocation9 + $0x78] sm:$0xff]
        %837 = vmatpush.msra.mxu0 %v836
        %838 = vmatpush.msra.mxu0 %v835
        %839 = vmatpush.msra.mxu0 %v834
        %840 = vmatpush.msra.mxu0 %v833
        %841 = vmatpush.msra.mxu0 %v832
        %842 = vmatpush.msra.mxu0 %v831
        %843 = vmatpush.msra.mxu0 %v830
        %844 = vmatpush.msra.mxu0 %v829
        %845 = vmatpush.msra.mxu0 %v828
        %846 = vmatpush.msra.mxu0 %v827
        %847 = vmatpush.msra.mxu0 %v826
        %848 = vmatpush.msra.mxu0 %v825
        %849 = vmatpush.msra.mxu0 %v824
        %850 = vmatpush.msra.mxu0 %v823
        %851 = vmatpush.msra.mxu0 %v822
        %852 = vmatpush.msra.mxu0 %v821
        %853 = vmatmul.f32.gmra.mxu0 %v735
        %v854 = vpop.f32.mrf.mxu0
        %v855 = vadd.f32 0.0, %v854
        %856 = vmatmul.f32.gmra.mxu0 %v736
        %v857 = vpop.f32.mrf.mxu0
        %v858 = vadd.f32 0.0, %v857
        %859 = vmatmul.f32.gmra.mxu0 %v738
        %v860 = vpop.f32.mrf.mxu0
        %v861 = vadd.f32 0.0, %v860
        %862 = vmatmul.f32.gmra.mxu0 %v739
        %v863 = vpop.f32.mrf.mxu0
        %v864 = vadd.f32 0.0, %v863
        %865 = vmatmul.f32.gmra.mxu0 %v741
        %v866 = vpop.f32.mrf.mxu0
        %v867 = vadd.f32 0.0, %v866
        %868 = vmatmul.f32.gmra.mxu0 %v742
        %v869 = vpop.f32.mrf.mxu0
        %v870 = vadd.f32 0.0, %v869
        %871 = vmatmul.f32.gmra.mxu0 %v744
        %v872 = vpop.f32.mrf.mxu0
        %v873 = vadd.f32 0.0, %v872
        %874 = vmatmul.f32.gmra.mxu0 %v745
        %v875 = vpop.f32.mrf.mxu0
        %v876 = vadd.f32 0.0, %v875
        %877 = vmatmul.f32.gmra.mxu0 %v747
        %v878 = vpop.f32.mrf.mxu0
        %v879 = vadd.f32 0.0, %v878
        %880 = vmatmul.f32.gmra.mxu0 %v748
        %v881 = vpop.f32.mrf.mxu0
        %v882 = vadd.f32 0.0, %v881
        %883 = vmatmul.f32.gmra.mxu0 %v750
        %v884 = vpop.f32.mrf.mxu0
        %v885 = vadd.f32 0.0, %v884
        %886 = vmatmul.f32.gmra.mxu0 %v751
        %v887 = vpop.f32.mrf.mxu0
        %v888 = vadd.f32 0.0, %v887
        %889 = vmatmul.f32.gmra.mxu0 %v753
        %v890 = vpop.f32.mrf.mxu0
        %v891 = vadd.f32 0.0, %v890
        %892 = vmatmul.f32.gmra.mxu0 %v754
        %v893 = vpop.f32.mrf.mxu0
        %v894 = vadd.f32 0.0, %v893
        %895 = vmatmul.f32.gmra.mxu0 %v756
        %v896 = vpop.f32.mrf.mxu0
        %v897 = vadd.f32 0.0, %v896
        %898 = vmatmul.f32.gmra.mxu0 %v757
        %v899 = vpop.f32.mrf.mxu0
        %v900 = vadd.f32 0.0, %v899
        %901 = vmatmul.f32.gmra.mxu0 %v759
        %v902 = vpop.f32.mrf.mxu0
        %v903 = vadd.f32 0.0, %v902
        %904 = vmatmul.f32.gmra.mxu0 %v760
        %v905 = vpop.f32.mrf.mxu0
        %v906 = vadd.f32 0.0, %v905
        %907 = vmatmul.f32.gmra.mxu0 %v762
        %v908 = vpop.f32.mrf.mxu0
        %v909 = vadd.f32 0.0, %v908
        %910 = vmatmul.f32.gmra.mxu0 %v763
        %v911 = vpop.f32.mrf.mxu0
        %v912 = vadd.f32 0.0, %v911
        %913 = vmatmul.f32.gmra.mxu0 %v765
        %v914 = vpop.f32.mrf.mxu0
        %v915 = vadd.f32 0.0, %v914
        %916 = vmatmul.f32.gmra.mxu0 %v766
        %v917 = vpop.f32.mrf.mxu0
        %v918 = vadd.f32 0.0, %v917
        %919 = vmatmul.f32.gmra.mxu0 %v768
        %v920 = vpop.f32.mrf.mxu0
        %v921 = vadd.f32 0.0, %v920
        %922 = vmatmul.f32.gmra.mxu0 %v769
        %v923 = vpop.f32.mrf.mxu0
        %v924 = vadd.f32 0.0, %v923
        %925 = vmatmul.f32.gmra.mxu0 %v771
        %v926 = vpop.f32.mrf.mxu0
        %v927 = vadd.f32 0.0, %v926
        %928 = vmatmul.f32.gmra.mxu0 %v772
        %v929 = vpop.f32.mrf.mxu0
        %v930 = vadd.f32 0.0, %v929
        %931 = vmatmul.f32.gmra.mxu0 %v774
        %v932 = vpop.f32.mrf.mxu0
        %v933 = vadd.f32 0.0, %v932
        %934 = vmatmul.f32.gmra.mxu0 %v775
        %v935 = vpop.f32.mrf.mxu0
        %v936 = vadd.f32 0.0, %v935
        %937 = vmatmul.f32.gmra.mxu0 %v777
        %v938 = vpop.f32.mrf.mxu0
        %v939 = vadd.f32 0.0, %v938
        %940 = vmatmul.f32.gmra.mxu0 %v778
        %v941 = vpop.f32.mrf.mxu0
        %v942 = vadd.f32 0.0, %v941
        %943 = vmatmul.f32.gmra.mxu0 %v780
        %v944 = vpop.f32.mrf.mxu0
        %v945 = vadd.f32 0.0, %v944
        %946 = vmatmul.f32.gmra.mxu0 %v781
        %v947 = vpop.f32.mrf.mxu0
        %v948 = vadd.f32 0.0, %v947
        %949 = vdwg.mxu0
        %v950 = vadd.f32 %v789, %v855
        %v951 = vadd.f32 %v790, %v858
        %v952 = vadd.f32 %v791, %v861
        %v953 = vadd.f32 %v792, %v864
        %v954 = vadd.f32 %v793, %v867
        %v955 = vadd.f32 %v794, %v870
        %v956 = vadd.f32 %v795, %v873
        %v957 = vadd.f32 %v796, %v876
        %v958 = vadd.f32 %v797, %v879
        %v959 = vadd.f32 %v798, %v882
        %v960 = vadd.f32 %v799, %v885
        %v961 = vadd.f32 %v800, %v888
        %v962 = vadd.f32 %v801, %v891
        %v963 = vadd.f32 %v802, %v894
        %v964 = vadd.f32 %v803, %v897
        %v965 = vadd.f32 %v804, %v900
        %v966 = vadd.f32 %v805, %v903
        %v967 = vadd.f32 %v806, %v906
        %v968 = vadd.f32 %v807, %v909
        %v969 = vadd.f32 %v808, %v912
        %v970 = vadd.f32 %v809, %v915
        %v971 = vadd.f32 %v810, %v918
        %v972 = vadd.f32 %v811, %v921
        %v973 = vadd.f32 %v812, %v924
        %v974 = vadd.f32 %v813, %v927
        %v975 = vadd.f32 %v814, %v930
        %v976 = vadd.f32 %v815, %v933
        %v977 = vadd.f32 %v816, %v936
        %v978 = vadd.f32 %v817, %v939
        %v979 = vadd.f32 %v818, %v942
        %v980 = vadd.f32 %v819, %v945
        %v981 = vadd.f32 %v820, %v948
        %982 = vst [vmem:[#allocation3] sm:$0xff] %v950
        %983 = vst [vmem:[#allocation3 + $0x8] sm:$0xff] %v951
        %984 = vst [vmem:[#allocation3 + $0x10] sm:$0xff] %v952
        %985 = vst [vmem:[#allocation3 + $0x18] sm:$0xff] %v953
        %986 = vst [vmem:[#allocation3 + $0x20] sm:$0xff] %v954
        %987 = vst [vmem:[#allocation3 + $0x28] sm:$0xff] %v955
        %988 = vst [vmem:[#allocation3 + $0x30] sm:$0xff] %v956
        %989 = vst [vmem:[#allocation3 + $0x38] sm:$0xff] %v957
        %990 = vst [vmem:[#allocation3 + $0x40] sm:$0xff] %v958
        %991 = vst [vmem:[#allocation3 + $0x48] sm:$0xff] %v959
        %992 = vst [vmem:[#allocation3 + $0x50] sm:$0xff] %v960
        %993 = vst [vmem:[#allocation3 + $0x58] sm:$0xff] %v961
        %994 = vst [vmem:[#allocation3 + $0x60] sm:$0xff] %v962
        %995 = vst [vmem:[#allocation3 + $0x68] sm:$0xff] %v963
        %996 = vst [vmem:[#allocation3 + $0x70] sm:$0xff] %v964
        %997 = vst [vmem:[#allocation3 + $0x78] sm:$0xff] %v965
        %998 = vst [vmem:[#allocation3 + $0x80] sm:$0xff] %v966
        %999 = vst [vmem:[#allocation3 + $0x88] sm:$0xff] %v967
        %1000 = vst [vmem:[#allocation3 + $0x90] sm:$0xff] %v968
        %1001 = vst [vmem:[#allocation3 + $0x98] sm:$0xff] %v969
        %1002 = vst [vmem:[#allocation3 + $0xa0] sm:$0xff] %v970
        %1003 = vst [vmem:[#allocation3 + $0xa8] sm:$0xff] %v971
        %1004 = vst [vmem:[#allocation3 + $0xb0] sm:$0xff] %v972
        %1005 = vst [vmem:[#allocation3 + $0xb8] sm:$0xff] %v973
        %1006 = vst [vmem:[#allocation3 + $0xc0] sm:$0xff] %v974
        %1007 = vst [vmem:[#allocation3 + $0xc8] sm:$0xff] %v975
        %1008 = vst [vmem:[#allocation3 + $0xd0] sm:$0xff] %v976
        %1009 = vst [vmem:[#allocation3 + $0xd8] sm:$0xff] %v977
        %1010 = vst [vmem:[#allocation3 + $0xe0] sm:$0xff] %v978
        %1011 = vst [vmem:[#allocation3 + $0xe8] sm:$0xff] %v979
        %1012 = vst [vmem:[#allocation3 + $0xf0] sm:$0xff] %v980
        %1013 = vst [vmem:[#allocation3 + $0xf8] sm:$0xff] %v981
        %v1014 = vld [vmem:[#allocation3] sm:$0xff]
        %v1015 = vld [vmem:[#allocation3 + $0x8] sm:$0xff]
        %v1016 = vld [vmem:[#allocation3 + $0x10] sm:$0xff]
        %v1017 = vld [vmem:[#allocation3 + $0x18] sm:$0xff]
        %v1018 = vld [vmem:[#allocation3 + $0x20] sm:$0xff]
        %v1019 = vld [vmem:[#allocation3 + $0x28] sm:$0xff]
        %v1020 = vld [vmem:[#allocation3 + $0x30] sm:$0xff]
        %v1021 = vld [vmem:[#allocation3 + $0x38] sm:$0xff]
        %v1022 = vld [vmem:[#allocation3 + $0x40] sm:$0xff]
        %v1023 = vld [vmem:[#allocation3 + $0x48] sm:$0xff]
        %v1024 = vld [vmem:[#allocation3 + $0x50] sm:$0xff]
        %v1025 = vld [vmem:[#allocation3 + $0x58] sm:$0xff]
        %v1026 = vld [vmem:[#allocation3 + $0x60] sm:$0xff]
        %v1027 = vld [vmem:[#allocation3 + $0x68] sm:$0xff]
        %v1028 = vld [vmem:[#allocation3 + $0x70] sm:$0xff]
        %v1029 = vld [vmem:[#allocation3 + $0x78] sm:$0xff]
        %v1030 = vld [vmem:[#allocation3 + $0x80] sm:$0xff]
        %v1031 = vld [vmem:[#allocation3 + $0x88] sm:$0xff]
        %v1032 = vld [vmem:[#allocation3 + $0x90] sm:$0xff]
        %v1033 = vld [vmem:[#allocation3 + $0x98] sm:$0xff]
        %v1034 = vld [vmem:[#allocation3 + $0xa0] sm:$0xff]
        %v1035 = vld [vmem:[#allocation3 + $0xa8] sm:$0xff]
        %v1036 = vld [vmem:[#allocation3 + $0xb0] sm:$0xff]
        %v1037 = vld [vmem:[#allocation3 + $0xb8] sm:$0xff]
        %v1038 = vld [vmem:[#allocation3 + $0xc0] sm:$0xff]
        %v1039 = vld [vmem:[#allocation3 + $0xc8] sm:$0xff]
        %v1040 = vld [vmem:[#allocation3 + $0xd0] sm:$0xff]
        %v1041 = vld [vmem:[#allocation3 + $0xd8] sm:$0xff]
        %v1042 = vld [vmem:[#allocation3 + $0xe0] sm:$0xff]
        %v1043 = vld [vmem:[#allocation3 + $0xe8] sm:$0xff]
        %v1044 = vld [vmem:[#allocation3 + $0xf0] sm:$0xff]
        %v1045 = vld [vmem:[#allocation3 + $0xf8] sm:$0xff]
        %vm1094 = vcmask 1046528
        %v1095 = vrot.slane %v735, 1
        %v1096 = vrot.slane %v736, 1
        %v1097 = vsel %vm1094, %v1095, %v1096
        %v1098 = vrot.slane %v737, 1
        %v1099 = vsel %vm1094, %v1096, %v1098
        %v1100 = vrot.slane %v738, 1
        %v1101 = vrot.slane %v739, 1
        %v1102 = vsel %vm1094, %v1100, %v1101
        %v1103 = vrot.slane %v740, 1
        %v1104 = vsel %vm1094, %v1101, %v1103
        %v1105 = vrot.slane %v741, 1
        %v1106 = vrot.slane %v742, 1
        %v1107 = vsel %vm1094, %v1105, %v1106
        %v1108 = vrot.slane %v743, 1
        %v1109 = vsel %vm1094, %v1106, %v1108
        %v1110 = vrot.slane %v744, 1
        %v1111 = vrot.slane %v745, 1
        %v1112 = vsel %vm1094, %v1110, %v1111
        %v1113 = vrot.slane %v746, 1
        %v1114 = vsel %vm1094, %v1111, %v1113
        %v1115 = vrot.slane %v747, 1
        %v1116 = vrot.slane %v748, 1
        %v1117 = vsel %vm1094, %v1115, %v1116
        %v1118 = vrot.slane %v749, 1
        %v1119 = vsel %vm1094, %v1116, %v1118
        %v1120 = vrot.slane %v750, 1
        %v1121 = vrot.slane %v751, 1
        %v1122 = vsel %vm1094, %v1120, %v1121
        %v1123 = vrot.slane %v752, 1
        %v1124 = vsel %vm1094, %v1121, %v1123
        %v1125 = vrot.slane %v753, 1
        %v1126 = vrot.slane %v754, 1
        %v1127 = vsel %vm1094, %v1125, %v1126
        %v1128 = vrot.slane %v755, 1
        %v1129 = vsel %vm1094, %v1126, %v1128
        %v1130 = vrot.slane %v756, 1
        %v1131 = vrot.slane %v757, 1
        %v1132 = vsel %vm1094, %v1130, %v1131
        %v1133 = vrot.slane %v758, 1
        %v1134 = vsel %vm1094, %v1131, %v1133
        %v1135 = vrot.slane %v759, 1
        %v1136 = vrot.slane %v760, 1
        %v1137 = vsel %vm1094, %v1135, %v1136
        %v1138 = vrot.slane %v761, 1
        %v1139 = vsel %vm1094, %v1136, %v1138
        %v1140 = vrot.slane %v762, 1
        %v1141 = vrot.slane %v763, 1
        %v1142 = vsel %vm1094, %v1140, %v1141
        %v1143 = vrot.slane %v764, 1
        %v1144 = vsel %vm1094, %v1141, %v1143
        %v1145 = vrot.slane %v765, 1
        %v1146 = vrot.slane %v766, 1
        %v1147 = vsel %vm1094, %v1145, %v1146
        %v1148 = vrot.slane %v767, 1
        %v1149 = vsel %vm1094, %v1146, %v1148
        %v1150 = vrot.slane %v768, 1
        %v1151 = vrot.slane %v769, 1
        %v1152 = vsel %vm1094, %v1150, %v1151
        %v1153 = vrot.slane %v770, 1
        %v1154 = vsel %vm1094, %v1151, %v1153
        %v1155 = vrot.slane %v771, 1
        %v1156 = vrot.slane %v772, 1
        %v1157 = vsel %vm1094, %v1155, %v1156
        %v1158 = vrot.slane %v773, 1
        %v1159 = vsel %vm1094, %v1156, %v1158
        %v1160 = vrot.slane %v774, 1
        %v1161 = vrot.slane %v775, 1
        %v1162 = vsel %vm1094, %v1160, %v1161
        %v1163 = vrot.slane %v776, 1
        %v1164 = vsel %vm1094, %v1161, %v1163
        %v1165 = vrot.slane %v777, 1
        %v1166 = vrot.slane %v778, 1
        %v1167 = vsel %vm1094, %v1165, %v1166
        %v1168 = vrot.slane %v779, 1
        %v1169 = vsel %vm1094, %v1166, %v1168
        %v1170 = vrot.slane %v780, 1
        %v1171 = vrot.slane %v781, 1
        %v1172 = vsel %vm1094, %v1170, %v1171
        %v1173 = vrot.slane %v782, 1
        %v1174 = vsel %vm1094, %v1171, %v1173
        %s1207 = scalar_lea.vmem [#allocation9], 128
        %v1208 = vld [vmem:[%s1207] sm:$0xff]
        %v1209 = vld [vmem:[%s1207 + $0x8] sm:$0xff]
        %v1210 = vld [vmem:[%s1207 + $0x10] sm:$0xff]
        %v1211 = vld [vmem:[%s1207 + $0x18] sm:$0xff]
        %v1212 = vld [vmem:[%s1207 + $0x20] sm:$0xff]
        %v1213 = vld [vmem:[%s1207 + $0x28] sm:$0xff]
        %v1214 = vld [vmem:[%s1207 + $0x30] sm:$0xff]
        %v1215 = vld [vmem:[%s1207 + $0x38] sm:$0xff]
        %v1216 = vld [vmem:[%s1207 + $0x40] sm:$0xff]
        %v1217 = vld [vmem:[%s1207 + $0x48] sm:$0xff]
        %v1218 = vld [vmem:[%s1207 + $0x50] sm:$0xff]
        %v1219 = vld [vmem:[%s1207 + $0x58] sm:$0xff]
        %v1220 = vld [vmem:[%s1207 + $0x60] sm:$0xff]
        %v1221 = vld [vmem:[%s1207 + $0x68] sm:$0xff]
        %v1222 = vld [vmem:[%s1207 + $0x70] sm:$0xff]
        %v1223 = vld [vmem:[%s1207 + $0x78] sm:$0xff]
        %1224 = vmatpush.msra.mxu0 %v1223
        %1225 = vmatpush.msra.mxu0 %v1222
        %1226 = vmatpush.msra.mxu0 %v1221
        %1227 = vmatpush.msra.mxu0 %v1220
        %1228 = vmatpush.msra.mxu0 %v1219
        %1229 = vmatpush.msra.mxu0 %v1218
        %1230 = vmatpush.msra.mxu0 %v1217
        %1231 = vmatpush.msra.mxu0 %v1216
        %1232 = vmatpush.msra.mxu0 %v1215
        %1233 = vmatpush.msra.mxu0 %v1214
        %1234 = vmatpush.msra.mxu0 %v1213
        %1235 = vmatpush.msra.mxu0 %v1212
        %1236 = vmatpush.msra.mxu0 %v1211
        %1237 = vmatpush.msra.mxu0 %v1210
        %1238 = vmatpush.msra.mxu0 %v1209
        %1239 = vmatpush.msra.mxu0 %v1208
        %1240 = vmatmul.f32.gmra.mxu0 %v1097
        %v1241 = vpop.f32.mrf.mxu0
        %v1242 = vadd.f32 0.0, %v1241
        %1243 = vmatmul.f32.gmra.mxu0 %v1099
        %v1244 = vpop.f32.mrf.mxu0
        %v1245 = vadd.f32 0.0, %v1244
        %1246 = vmatmul.f32.gmra.mxu0 %v1102
        %v1247 = vpop.f32.mrf.mxu0
        %v1248 = vadd.f32 0.0, %v1247
        %1249 = vmatmul.f32.gmra.mxu0 %v1104
        %v1250 = vpop.f32.mrf.mxu0
        %v1251 = vadd.f32 0.0, %v1250
        %1252 = vmatmul.f32.gmra.mxu0 %v1107
        %v1253 = vpop.f32.mrf.mxu0
        %v1254 = vadd.f32 0.0, %v1253
        %1255 = vmatmul.f32.gmra.mxu0 %v1109
        %v1256 = vpop.f32.mrf.mxu0
        %v1257 = vadd.f32 0.0, %v1256
        %1258 = vmatmul.f32.gmra.mxu0 %v1112
        %v1259 = vpop.f32.mrf.mxu0
        %v1260 = vadd.f32 0.0, %v1259
        %1261 = vmatmul.f32.gmra.mxu0 %v1114
        %v1262 = vpop.f32.mrf.mxu0
        %v1263 = vadd.f32 0.0, %v1262
        %1264 = vmatmul.f32.gmra.mxu0 %v1117
        %v1265 = vpop.f32.mrf.mxu0
        %v1266 = vadd.f32 0.0, %v1265
        %1267 = vmatmul.f32.gmra.mxu0 %v1119
        %v1268 = vpop.f32.mrf.mxu0
        %v1269 = vadd.f32 0.0, %v1268
        %1270 = vmatmul.f32.gmra.mxu0 %v1122
        %v1271 = vpop.f32.mrf.mxu0
        %v1272 = vadd.f32 0.0, %v1271
        %1273 = vmatmul.f32.gmra.mxu0 %v1124
        %v1274 = vpop.f32.mrf.mxu0
        %v1275 = vadd.f32 0.0, %v1274
        %1276 = vmatmul.f32.gmra.mxu0 %v1127
        %v1277 = vpop.f32.mrf.mxu0
        %v1278 = vadd.f32 0.0, %v1277
        %1279 = vmatmul.f32.gmra.mxu0 %v1129
        %v1280 = vpop.f32.mrf.mxu0
        %v1281 = vadd.f32 0.0, %v1280
        %1282 = vmatmul.f32.gmra.mxu0 %v1132
        %v1283 = vpop.f32.mrf.mxu0
        %v1284 = vadd.f32 0.0, %v1283
        %1285 = vmatmul.f32.gmra.mxu0 %v1134
        %v1286 = vpop.f32.mrf.mxu0
        %v1287 = vadd.f32 0.0, %v1286
        %1288 = vmatmul.f32.gmra.mxu0 %v1137
        %v1289 = vpop.f32.mrf.mxu0
        %v1290 = vadd.f32 0.0, %v1289
        %1291 = vmatmul.f32.gmra.mxu0 %v1139
        %v1292 = vpop.f32.mrf.mxu0
        %v1293 = vadd.f32 0.0, %v1292
        %1294 = vmatmul.f32.gmra.mxu0 %v1142
        %v1295 = vpop.f32.mrf.mxu0
        %v1296 = vadd.f32 0.0, %v1295
        %1297 = vmatmul.f32.gmra.mxu0 %v1144
        %v1298 = vpop.f32.mrf.mxu0
        %v1299 = vadd.f32 0.0, %v1298
        %1300 = vmatmul.f32.gmra.mxu0 %v1147
        %v1301 = vpop.f32.mrf.mxu0
        %v1302 = vadd.f32 0.0, %v1301
        %1303 = vmatmul.f32.gmra.mxu0 %v1149
        %v1304 = vpop.f32.mrf.mxu0
        %v1305 = vadd.f32 0.0, %v1304
        %1306 = vmatmul.f32.gmra.mxu0 %v1152
        %v1307 = vpop.f32.mrf.mxu0
        %v1308 = vadd.f32 0.0, %v1307
        %1309 = vmatmul.f32.gmra.mxu0 %v1154
        %v1310 = vpop.f32.mrf.mxu0
        %v1311 = vadd.f32 0.0, %v1310
        %1312 = vmatmul.f32.gmra.mxu0 %v1157
        %v1313 = vpop.f32.mrf.mxu0
        %v1314 = vadd.f32 0.0, %v1313
        %1315 = vmatmul.f32.gmra.mxu0 %v1159
        %v1316 = vpop.f32.mrf.mxu0
        %v1317 = vadd.f32 0.0, %v1316
        %1318 = vmatmul.f32.gmra.mxu0 %v1162
        %v1319 = vpop.f32.mrf.mxu0
        %v1320 = vadd.f32 0.0, %v1319
        %1321 = vmatmul.f32.gmra.mxu0 %v1164
        %v1322 = vpop.f32.mrf.mxu0
        %v1323 = vadd.f32 0.0, %v1322
        %1324 = vmatmul.f32.gmra.mxu0 %v1167
        %v1325 = vpop.f32.mrf.mxu0
        %v1326 = vadd.f32 0.0, %v1325
        %1327 = vmatmul.f32.gmra.mxu0 %v1169
        %v1328 = vpop.f32.mrf.mxu0
        %v1329 = vadd.f32 0.0, %v1328
        %1330 = vmatmul.f32.gmra.mxu0 %v1172
        %v1331 = vpop.f32.mrf.mxu0
        %v1332 = vadd.f32 0.0, %v1331
        %1333 = vmatmul.f32.gmra.mxu0 %v1174
        %v1334 = vpop.f32.mrf.mxu0
        %v1335 = vadd.f32 0.0, %v1334
        %1336 = vdwg.mxu0
        %v1337 = vadd.f32 %v1014, %v1242
        %v1338 = vadd.f32 %v1015, %v1245
        %v1339 = vadd.f32 %v1016, %v1248
        %v1340 = vadd.f32 %v1017, %v1251
        %v1341 = vadd.f32 %v1018, %v1254
        %v1342 = vadd.f32 %v1019, %v1257
        %v1343 = vadd.f32 %v1020, %v1260
        %v1344 = vadd.f32 %v1021, %v1263
        %v1345 = vadd.f32 %v1022, %v1266
        %v1346 = vadd.f32 %v1023, %v1269
        %v1347 = vadd.f32 %v1024, %v1272
        %v1348 = vadd.f32 %v1025, %v1275
        %v1349 = vadd.f32 %v1026, %v1278
        %v1350 = vadd.f32 %v1027, %v1281
        %v1351 = vadd.f32 %v1028, %v1284
        %v1352 = vadd.f32 %v1029, %v1287
        %v1353 = vadd.f32 %v1030, %v1290
        %v1354 = vadd.f32 %v1031, %v1293
        %v1355 = vadd.f32 %v1032, %v1296
        %v1356 = vadd.f32 %v1033, %v1299
        %v1357 = vadd.f32 %v1034, %v1302
        %v1358 = vadd.f32 %v1035, %v1305
        %v1359 = vadd.f32 %v1036, %v1308
        %v1360 = vadd.f32 %v1037, %v1311
        %v1361 = vadd.f32 %v1038, %v1314
        %v1362 = vadd.f32 %v1039, %v1317
        %v1363 = vadd.f32 %v1040, %v1320
        %v1364 = vadd.f32 %v1041, %v1323
        %v1365 = vadd.f32 %v1042, %v1326
        %v1366 = vadd.f32 %v1043, %v1329
        %v1367 = vadd.f32 %v1044, %v1332
        %v1368 = vadd.f32 %v1045, %v1335
        %1369 = vst [vmem:[#allocation3] sm:$0xff] %v1337
        %1370 = vst [vmem:[#allocation3 + $0x8] sm:$0xff] %v1338
        %1371 = vst [vmem:[#allocation3 + $0x10] sm:$0xff] %v1339
        %1372 = vst [vmem:[#allocation3 + $0x18] sm:$0xff] %v1340
        %1373 = vst [vmem:[#allocation3 + $0x20] sm:$0xff] %v1341
        %1374 = vst [vmem:[#allocation3 + $0x28] sm:$0xff] %v1342
        %1375 = vst [vmem:[#allocation3 + $0x30] sm:$0xff] %v1343
        %1376 = vst [vmem:[#allocation3 + $0x38] sm:$0xff] %v1344
        %1377 = vst [vmem:[#allocation3 + $0x40] sm:$0xff] %v1345
        %1378 = vst [vmem:[#allocation3 + $0x48] sm:$0xff] %v1346
        %1379 = vst [vmem:[#allocation3 + $0x50] sm:$0xff] %v1347
        %1380 = vst [vmem:[#allocation3 + $0x58] sm:$0xff] %v1348
        %1381 = vst [vmem:[#allocation3 + $0x60] sm:$0xff] %v1349
        %1382 = vst [vmem:[#allocation3 + $0x68] sm:$0xff] %v1350
        %1383 = vst [vmem:[#allocation3 + $0x70] sm:$0xff] %v1351
        %1384 = vst [vmem:[#allocation3 + $0x78] sm:$0xff] %v1352
        %1385 = vst [vmem:[#allocation3 + $0x80] sm:$0xff] %v1353
        %1386 = vst [vmem:[#allocation3 + $0x88] sm:$0xff] %v1354
        %1387 = vst [vmem:[#allocation3 + $0x90] sm:$0xff] %v1355
        %1388 = vst [vmem:[#allocation3 + $0x98] sm:$0xff] %v1356
        %1389 = vst [vmem:[#allocation3 + $0xa0] sm:$0xff] %v1357
        %1390 = vst [vmem:[#allocation3 + $0xa8] sm:$0xff] %v1358
        %1391 = vst [vmem:[#allocation3 + $0xb0] sm:$0xff] %v1359
        %1392 = vst [vmem:[#allocation3 + $0xb8] sm:$0xff] %v1360
        %1393 = vst [vmem:[#allocation3 + $0xc0] sm:$0xff] %v1361
        %1394 = vst [vmem:[#allocation3 + $0xc8] sm:$0xff] %v1362
        %1395 = vst [vmem:[#allocation3 + $0xd0] sm:$0xff] %v1363
        %1396 = vst [vmem:[#allocation3 + $0xd8] sm:$0xff] %v1364
        %1397 = vst [vmem:[#allocation3 + $0xe0] sm:$0xff] %v1365
        %1398 = vst [vmem:[#allocation3 + $0xe8] sm:$0xff] %v1366
        %1399 = vst [vmem:[#allocation3 + $0xf0] sm:$0xff] %v1367
        %1400 = vst [vmem:[#allocation3 + $0xf8] sm:$0xff] %v1368
        %v1401 = vld [vmem:[#allocation3] sm:$0xff]
        %v1402 = vld [vmem:[#allocation3 + $0x8] sm:$0xff]
        %v1403 = vld [vmem:[#allocation3 + $0x10] sm:$0xff]
        %v1404 = vld [vmem:[#allocation3 + $0x18] sm:$0xff]
        %v1405 = vld [vmem:[#allocation3 + $0x20] sm:$0xff]
        %v1406 = vld [vmem:[#allocation3 + $0x28] sm:$0xff]
        %v1407 = vld [vmem:[#allocation3 + $0x30] sm:$0xff]
        %v1408 = vld [vmem:[#allocation3 + $0x38] sm:$0xff]
        %v1409 = vld [vmem:[#allocation3 + $0x40] sm:$0xff]
        %v1410 = vld [vmem:[#allocation3 + $0x48] sm:$0xff]
        %v1411 = vld [vmem:[#allocation3 + $0x50] sm:$0xff]
        %v1412 = vld [vmem:[#allocation3 + $0x58] sm:$0xff]
        %v1413 = vld [vmem:[#allocation3 + $0x60] sm:$0xff]
        %v1414 = vld [vmem:[#allocation3 + $0x68] sm:$0xff]
        %v1415 = vld [vmem:[#allocation3 + $0x70] sm:$0xff]
        %v1416 = vld [vmem:[#allocation3 + $0x78] sm:$0xff]
        %v1417 = vld [vmem:[#allocation3 + $0x80] sm:$0xff]
        %v1418 = vld [vmem:[#allocation3 + $0x88] sm:$0xff]
        %v1419 = vld [vmem:[#allocation3 + $0x90] sm:$0xff]
        %v1420 = vld [vmem:[#allocation3 + $0x98] sm:$0xff]
        %v1421 = vld [vmem:[#allocation3 + $0xa0] sm:$0xff]
        %v1422 = vld [vmem:[#allocation3 + $0xa8] sm:$0xff]
        %v1423 = vld [vmem:[#allocation3 + $0xb0] sm:$0xff]
        %v1424 = vld [vmem:[#allocation3 + $0xb8] sm:$0xff]
        %v1425 = vld [vmem:[#allocation3 + $0xc0] sm:$0xff]
        %v1426 = vld [vmem:[#allocation3 + $0xc8] sm:$0xff]
        %v1427 = vld [vmem:[#allocation3 + $0xd0] sm:$0xff]
        %v1428 = vld [vmem:[#allocation3 + $0xd8] sm:$0xff]
        %v1429 = vld [vmem:[#allocation3 + $0xe0] sm:$0xff]
        %v1430 = vld [vmem:[#allocation3 + $0xe8] sm:$0xff]
        %v1431 = vld [vmem:[#allocation3 + $0xf0] sm:$0xff]
        %v1432 = vld [vmem:[#allocation3 + $0xf8] sm:$0xff]
        %vm1433 = vcmask 1045504
        %v1434 = vrot.slane %v735, 2
        %v1435 = vrot.slane %v736, 2
        %v1436 = vsel %vm1433, %v1434, %v1435
        %v1437 = vrot.slane %v737, 2
        %v1438 = vsel %vm1433, %v1435, %v1437
        %v1439 = vrot.slane %v738, 2
        %v1440 = vrot.slane %v739, 2
        %v1441 = vsel %vm1433, %v1439, %v1440
        %v1442 = vrot.slane %v740, 2
        %v1443 = vsel %vm1433, %v1440, %v1442
        %v1444 = vrot.slane %v741, 2
        %v1445 = vrot.slane %v742, 2
        %v1446 = vsel %vm1433, %v1444, %v1445
        %v1447 = vrot.slane %v743, 2
        %v1448 = vsel %vm1433, %v1445, %v1447
        %v1449 = vrot.slane %v744, 2
        %v1450 = vrot.slane %v745, 2
        %v1451 = vsel %vm1433, %v1449, %v1450
        %v1452 = vrot.slane %v746, 2
        %v1453 = vsel %vm1433, %v1450, %v1452
        %v1454 = vrot.slane %v747, 2
        %v1455 = vrot.slane %v748, 2
        %v1456 = vsel %vm1433, %v1454, %v1455
        %v1457 = vrot.slane %v749, 2
        %v1458 = vsel %vm1433, %v1455, %v1457
        %v1459 = vrot.slane %v750, 2
        %v1460 = vrot.slane %v751, 2
        %v1461 = vsel %vm1433, %v1459, %v1460
        %v1462 = vrot.slane %v752, 2
        %v1463 = vsel %vm1433, %v1460, %v1462
        %v1464 = vrot.slane %v753, 2
        %v1465 = vrot.slane %v754, 2
        %v1466 = vsel %vm1433, %v1464, %v1465
        %v1467 = vrot.slane %v755, 2
        %v1468 = vsel %vm1433, %v1465, %v1467
        %v1469 = vrot.slane %v756, 2
        %v1470 = vrot.slane %v757, 2
        %v1471 = vsel %vm1433, %v1469, %v1470
        %v1472 = vrot.slane %v758, 2
        %v1473 = vsel %vm1433, %v1470, %v1472
        %v1474 = vrot.slane %v759, 2
        %v1475 = vrot.slane %v760, 2
        %v1476 = vsel %vm1433, %v1474, %v1475
        %v1477 = vrot.slane %v761, 2
        %v1478 = vsel %vm1433, %v1475, %v1477
        %v1479 = vrot.slane %v762, 2
        %v1480 = vrot.slane %v763, 2
        %v1481 = vsel %vm1433, %v1479, %v1480
        %v1482 = vrot.slane %v764, 2
        %v1483 = vsel %vm1433, %v1480, %v1482
        %v1484 = vrot.slane %v765, 2
        %v1485 = vrot.slane %v766, 2
        %v1486 = vsel %vm1433, %v1484, %v1485
        %v1487 = vrot.slane %v767, 2
        %v1488 = vsel %vm1433, %v1485, %v1487
        %v1489 = vrot.slane %v768, 2
        %v1490 = vrot.slane %v769, 2
        %v1491 = vsel %vm1433, %v1489, %v1490
        %v1492 = vrot.slane %v770, 2
        %v1493 = vsel %vm1433, %v1490, %v1492
        %v1494 = vrot.slane %v771, 2
        %v1495 = vrot.slane %v772, 2
        %v1496 = vsel %vm1433, %v1494, %v1495
        %v1497 = vrot.slane %v773, 2
        %v1498 = vsel %vm1433, %v1495, %v1497
        %v1499 = vrot.slane %v774, 2
        %v1500 = vrot.slane %v775, 2
        %v1501 = vsel %vm1433, %v1499, %v1500
        %v1502 = vrot.slane %v776, 2
        %v1503 = vsel %vm1433, %v1500, %v1502
        %v1504 = vrot.slane %v777, 2
        %v1505 = vrot.slane %v778, 2
        %v1506 = vsel %vm1433, %v1504, %v1505
        %v1507 = vrot.slane %v779, 2
        %v1508 = vsel %vm1433, %v1505, %v1507
        %v1509 = vrot.slane %v780, 2
        %v1510 = vrot.slane %v781, 2
        %v1511 = vsel %vm1433, %v1509, %v1510
        %v1512 = vrot.slane %v782, 2
        %v1513 = vsel %vm1433, %v1510, %v1512
        %s1546 = scalar_lea.vmem [#allocation9], 256
        %v1547 = vld [vmem:[%s1546] sm:$0xff]
        %v1548 = vld [vmem:[%s1546 + $0x8] sm:$0xff]
        %v1549 = vld [vmem:[%s1546 + $0x10] sm:$0xff]
        %v1550 = vld [vmem:[%s1546 + $0x18] sm:$0xff]
        %v1551 = vld [vmem:[%s1546 + $0x20] sm:$0xff]
        %v1552 = vld [vmem:[%s1546 + $0x28] sm:$0xff]
        %v1553 = vld [vmem:[%s1546 + $0x30] sm:$0xff]
        %v1554 = vld [vmem:[%s1546 + $0x38] sm:$0xff]
        %v1555 = vld [vmem:[%s1546 + $0x40] sm:$0xff]
        %v1556 = vld [vmem:[%s1546 + $0x48] sm:$0xff]
        %v1557 = vld [vmem:[%s1546 + $0x50] sm:$0xff]
        %v1558 = vld [vmem:[%s1546 + $0x58] sm:$0xff]
        %v1559 = vld [vmem:[%s1546 + $0x60] sm:$0xff]
        %v1560 = vld [vmem:[%s1546 + $0x68] sm:$0xff]
        %v1561 = vld [vmem:[%s1546 + $0x70] sm:$0xff]
        %v1562 = vld [vmem:[%s1546 + $0x78] sm:$0xff]
        %1563 = vmatpush.msra.mxu0 %v1562
        %1564 = vmatpush.msra.mxu0 %v1561
        %1565 = vmatpush.msra.mxu0 %v1560
        %1566 = vmatpush.msra.mxu0 %v1559
        %1567 = vmatpush.msra.mxu0 %v1558
        %1568 = vmatpush.msra.mxu0 %v1557
        %1569 = vmatpush.msra.mxu0 %v1556
        %1570 = vmatpush.msra.mxu0 %v1555
        %1571 = vmatpush.msra.mxu0 %v1554
        %1572 = vmatpush.msra.mxu0 %v1553
        %1573 = vmatpush.msra.mxu0 %v1552
        %1574 = vmatpush.msra.mxu0 %v1551
        %1575 = vmatpush.msra.mxu0 %v1550
        %1576 = vmatpush.msra.mxu0 %v1549
        %1577 = vmatpush.msra.mxu0 %v1548
        %1578 = vmatpush.msra.mxu0 %v1547
        %1579 = vmatmul.f32.gmra.mxu0 %v1436
        %v1580 = vpop.f32.mrf.mxu0
        %v1581 = vadd.f32 0.0, %v1580
        %1582 = vmatmul.f32.gmra.mxu0 %v1438
        %v1583 = vpop.f32.mrf.mxu0
        %v1584 = vadd.f32 0.0, %v1583
        %1585 = vmatmul.f32.gmra.mxu0 %v1441
        %v1586 = vpop.f32.mrf.mxu0
        %v1587 = vadd.f32 0.0, %v1586
        %1588 = vmatmul.f32.gmra.mxu0 %v1443
        %v1589 = vpop.f32.mrf.mxu0
        %v1590 = vadd.f32 0.0, %v1589
        %1591 = vmatmul.f32.gmra.mxu0 %v1446
        %v1592 = vpop.f32.mrf.mxu0
        %v1593 = vadd.f32 0.0, %v1592
        %1594 = vmatmul.f32.gmra.mxu0 %v1448
        %v1595 = vpop.f32.mrf.mxu0
        %v1596 = vadd.f32 0.0, %v1595
        %1597 = vmatmul.f32.gmra.mxu0 %v1451
        %v1598 = vpop.f32.mrf.mxu0
        %v1599 = vadd.f32 0.0, %v1598
        %1600 = vmatmul.f32.gmra.mxu0 %v1453
        %v1601 = vpop.f32.mrf.mxu0
        %v1602 = vadd.f32 0.0, %v1601
        %1603 = vmatmul.f32.gmra.mxu0 %v1456
        %v1604 = vpop.f32.mrf.mxu0
        %v1605 = vadd.f32 0.0, %v1604
        %1606 = vmatmul.f32.gmra.mxu0 %v1458
        %v1607 = vpop.f32.mrf.mxu0
        %v1608 = vadd.f32 0.0, %v1607
        %1609 = vmatmul.f32.gmra.mxu0 %v1461
        %v1610 = vpop.f32.mrf.mxu0
        %v1611 = vadd.f32 0.0, %v1610
        %1612 = vmatmul.f32.gmra.mxu0 %v1463
        %v1613 = vpop.f32.mrf.mxu0
        %v1614 = vadd.f32 0.0, %v1613
        %1615 = vmatmul.f32.gmra.mxu0 %v1466
        %v1616 = vpop.f32.mrf.mxu0
        %v1617 = vadd.f32 0.0, %v1616
        %1618 = vmatmul.f32.gmra.mxu0 %v1468
        %v1619 = vpop.f32.mrf.mxu0
        %v1620 = vadd.f32 0.0, %v1619
        %1621 = vmatmul.f32.gmra.mxu0 %v1471
        %v1622 = vpop.f32.mrf.mxu0
        %v1623 = vadd.f32 0.0, %v1622
        %1624 = vmatmul.f32.gmra.mxu0 %v1473
        %v1625 = vpop.f32.mrf.mxu0
        %v1626 = vadd.f32 0.0, %v1625
        %1627 = vmatmul.f32.gmra.mxu0 %v1476
        %v1628 = vpop.f32.mrf.mxu0
        %v1629 = vadd.f32 0.0, %v1628
        %1630 = vmatmul.f32.gmra.mxu0 %v1478
        %v1631 = vpop.f32.mrf.mxu0
        %v1632 = vadd.f32 0.0, %v1631
        %1633 = vmatmul.f32.gmra.mxu0 %v1481
        %v1634 = vpop.f32.mrf.mxu0
        %v1635 = vadd.f32 0.0, %v1634
        %1636 = vmatmul.f32.gmra.mxu0 %v1483
        %v1637 = vpop.f32.mrf.mxu0
        %v1638 = vadd.f32 0.0, %v1637
        %1639 = vmatmul.f32.gmra.mxu0 %v1486
        %v1640 = vpop.f32.mrf.mxu0
        %v1641 = vadd.f32 0.0, %v1640
        %1642 = vmatmul.f32.gmra.mxu0 %v1488
        %v1643 = vpop.f32.mrf.mxu0
        %v1644 = vadd.f32 0.0, %v1643
        %1645 = vmatmul.f32.gmra.mxu0 %v1491
        %v1646 = vpop.f32.mrf.mxu0
        %v1647 = vadd.f32 0.0, %v1646
        %1648 = vmatmul.f32.gmra.mxu0 %v1493
        %v1649 = vpop.f32.mrf.mxu0
        %v1650 = vadd.f32 0.0, %v1649
        %1651 = vmatmul.f32.gmra.mxu0 %v1496
        %v1652 = vpop.f32.mrf.mxu0
        %v1653 = vadd.f32 0.0, %v1652
        %1654 = vmatmul.f32.gmra.mxu0 %v1498
        %v1655 = vpop.f32.mrf.mxu0
        %v1656 = vadd.f32 0.0, %v1655
        %1657 = vmatmul.f32.gmra.mxu0 %v1501
        %v1658 = vpop.f32.mrf.mxu0
        %v1659 = vadd.f32 0.0, %v1658
        %1660 = vmatmul.f32.gmra.mxu0 %v1503
        %v1661 = vpop.f32.mrf.mxu0
        %v1662 = vadd.f32 0.0, %v1661
        %1663 = vmatmul.f32.gmra.mxu0 %v1506
        %v1664 = vpop.f32.mrf.mxu0
        %v1665 = vadd.f32 0.0, %v1664
        %1666 = vmatmul.f32.gmra.mxu0 %v1508
        %v1667 = vpop.f32.mrf.mxu0
        %v1668 = vadd.f32 0.0, %v1667
        %1669 = vmatmul.f32.gmra.mxu0 %v1511
        %v1670 = vpop.f32.mrf.mxu0
        %v1671 = vadd.f32 0.0, %v1670
        %1672 = vmatmul.f32.gmra.mxu0 %v1513
        %v1673 = vpop.f32.mrf.mxu0
        %v1674 = vadd.f32 0.0, %v1673
        %1675 = vdwg.mxu0
        %v1676 = vadd.f32 %v1401, %v1581
        %v1677 = vadd.f32 %v1402, %v1584
        %v1678 = vadd.f32 %v1403, %v1587
        %v1679 = vadd.f32 %v1404, %v1590
        %v1680 = vadd.f32 %v1405, %v1593
        %v1681 = vadd.f32 %v1406, %v1596
        %v1682 = vadd.f32 %v1407, %v1599
        %v1683 = vadd.f32 %v1408, %v1602
        %v1684 = vadd.f32 %v1409, %v1605
        %v1685 = vadd.f32 %v1410, %v1608
        %v1686 = vadd.f32 %v1411, %v1611
        %v1687 = vadd.f32 %v1412, %v1614
        %v1688 = vadd.f32 %v1413, %v1617
        %v1689 = vadd.f32 %v1414, %v1620
        %v1690 = vadd.f32 %v1415, %v1623
        %v1691 = vadd.f32 %v1416, %v1626
        %v1692 = vadd.f32 %v1417, %v1629
        %v1693 = vadd.f32 %v1418, %v1632
        %v1694 = vadd.f32 %v1419, %v1635
        %v1695 = vadd.f32 %v1420, %v1638
        %v1696 = vadd.f32 %v1421, %v1641
        %v1697 = vadd.f32 %v1422, %v1644
        %v1698 = vadd.f32 %v1423, %v1647
        %v1699 = vadd.f32 %v1424, %v1650
        %v1700 = vadd.f32 %v1425, %v1653
        %v1701 = vadd.f32 %v1426, %v1656
        %v1702 = vadd.f32 %v1427, %v1659
        %v1703 = vadd.f32 %v1428, %v1662
        %v1704 = vadd.f32 %v1429, %v1665
        %v1705 = vadd.f32 %v1430, %v1668
        %v1706 = vadd.f32 %v1431, %v1671
        %v1707 = vadd.f32 %v1432, %v1674
        %1708 = vst [vmem:[#allocation3] sm:$0xff] %v1676
        %1709 = vst [vmem:[#allocation3 + $0x8] sm:$0xff] %v1677
        %1710 = vst [vmem:[#allocation3 + $0x10] sm:$0xff] %v1678
        %1711 = vst [vmem:[#allocation3 + $0x18] sm:$0xff] %v1679
        %1712 = vst [vmem:[#allocation3 + $0x20] sm:$0xff] %v1680
        %1713 = vst [vmem:[#allocation3 + $0x28] sm:$0xff] %v1681
        %1714 = vst [vmem:[#allocation3 + $0x30] sm:$0xff] %v1682
        %1715 = vst [vmem:[#allocation3 + $0x38] sm:$0xff] %v1683
        %1716 = vst [vmem:[#allocation3 + $0x40] sm:$0xff] %v1684
        %1717 = vst [vmem:[#allocation3 + $0x48] sm:$0xff] %v1685
        %1718 = vst [vmem:[#allocation3 + $0x50] sm:$0xff] %v1686
        %1719 = vst [vmem:[#allocation3 + $0x58] sm:$0xff] %v1687
        %1720 = vst [vmem:[#allocation3 + $0x60] sm:$0xff] %v1688
        %1721 = vst [vmem:[#allocation3 + $0x68] sm:$0xff] %v1689
        %1722 = vst [vmem:[#allocation3 + $0x70] sm:$0xff] %v1690
        %1723 = vst [vmem:[#allocation3 + $0x78] sm:$0xff] %v1691
        %1724 = vst [vmem:[#allocation3 + $0x80] sm:$0xff] %v1692
        %1725 = vst [vmem:[#allocation3 + $0x88] sm:$0xff] %v1693
        %1726 = vst [vmem:[#allocation3 + $0x90] sm:$0xff] %v1694
        %1727 = vst [vmem:[#allocation3 + $0x98] sm:$0xff] %v1695
        %1728 = vst [vmem:[#allocation3 + $0xa0] sm:$0xff] %v1696
        %1729 = vst [vmem:[#allocation3 + $0xa8] sm:$0xff] %v1697
        %1730 = vst [vmem:[#allocation3 + $0xb0] sm:$0xff] %v1698
        %1731 = vst [vmem:[#allocation3 + $0xb8] sm:$0xff] %v1699
        %1732 = vst [vmem:[#allocation3 + $0xc0] sm:$0xff] %v1700
        %1733 = vst [vmem:[#allocation3 + $0xc8] sm:$0xff] %v1701
        %1734 = vst [vmem:[#allocation3 + $0xd0] sm:$0xff] %v1702
        %1735 = vst [vmem:[#allocation3 + $0xd8] sm:$0xff] %v1703
        %1736 = vst [vmem:[#allocation3 + $0xe0] sm:$0xff] %v1704
        %1737 = vst [vmem:[#allocation3 + $0xe8] sm:$0xff] %v1705
        %1738 = vst [vmem:[#allocation3 + $0xf0] sm:$0xff] %v1706
        %1739 = vst [vmem:[#allocation3 + $0xf8] sm:$0xff] %v1707
        %v1740 = vld [vmem:[#allocation3] sm:$0xff]
        %v1741 = vld [vmem:[#allocation3 + $0x8] sm:$0xff]
        %v1742 = vld [vmem:[#allocation3 + $0x10] sm:$0xff]
        %v1743 = vld [vmem:[#allocation3 + $0x18] sm:$0xff]
        %v1744 = vld [vmem:[#allocation3 + $0x20] sm:$0xff]
        %v1745 = vld [vmem:[#allocation3 + $0x28] sm:$0xff]
        %v1746 = vld [vmem:[#allocation3 + $0x30] sm:$0xff]
        %v1747 = vld [vmem:[#allocation3 + $0x38] sm:$0xff]
        %v1748 = vld [vmem:[#allocation3 + $0x40] sm:$0xff]
        %v1749 = vld [vmem:[#allocation3 + $0x48] sm:$0xff]
        %v1750 = vld [vmem:[#allocation3 + $0x50] sm:$0xff]
        %v1751 = vld [vmem:[#allocation3 + $0x58] sm:$0xff]
        %v1752 = vld [vmem:[#allocation3 + $0x60] sm:$0xff]
        %v1753 = vld [vmem:[#allocation3 + $0x68] sm:$0xff]
        %v1754 = vld [vmem:[#allocation3 + $0x70] sm:$0xff]
        %v1755 = vld [vmem:[#allocation3 + $0x78] sm:$0xff]
        %v1756 = vld [vmem:[#allocation3 + $0x80] sm:$0xff]
        %v1757 = vld [vmem:[#allocation3 + $0x88] sm:$0xff]
        %v1758 = vld [vmem:[#allocation3 + $0x90] sm:$0xff]
        %v1759 = vld [vmem:[#allocation3 + $0x98] sm:$0xff]
        %v1760 = vld [vmem:[#allocation3 + $0xa0] sm:$0xff]
        %v1761 = vld [vmem:[#allocation3 + $0xa8] sm:$0xff]
        %v1762 = vld [vmem:[#allocation3 + $0xb0] sm:$0xff]
        %v1763 = vld [vmem:[#allocation3 + $0xb8] sm:$0xff]
        %v1764 = vld [vmem:[#allocation3 + $0xc0] sm:$0xff]
        %v1765 = vld [vmem:[#allocation3 + $0xc8] sm:$0xff]
        %v1766 = vld [vmem:[#allocation3 + $0xd0] sm:$0xff]
        %v1767 = vld [vmem:[#allocation3 + $0xd8] sm:$0xff]
        %v1768 = vld [vmem:[#allocation3 + $0xe0] sm:$0xff]
        %v1769 = vld [vmem:[#allocation3 + $0xe8] sm:$0xff]
        %v1770 = vld [vmem:[#allocation3 + $0xf0] sm:$0xff]
        %v1771 = vld [vmem:[#allocation3 + $0xf8] sm:$0xff]
        %s1772 = scalar_lea.vmem [#allocation9], 384
        %v1773 = vld [vmem:[%s1772] sm:$0xff]
        %v1774 = vld [vmem:[%s1772 + $0x8] sm:$0xff]
        %v1775 = vld [vmem:[%s1772 + $0x10] sm:$0xff]
        %v1776 = vld [vmem:[%s1772 + $0x18] sm:$0xff]
        %v1777 = vld [vmem:[%s1772 + $0x20] sm:$0xff]
        %v1778 = vld [vmem:[%s1772 + $0x28] sm:$0xff]
        %v1779 = vld [vmem:[%s1772 + $0x30] sm:$0xff]
        %v1780 = vld [vmem:[%s1772 + $0x38] sm:$0xff]
        %v1781 = vld [vmem:[%s1772 + $0x40] sm:$0xff]
        %v1782 = vld [vmem:[%s1772 + $0x48] sm:$0xff]
        %v1783 = vld [vmem:[%s1772 + $0x50] sm:$0xff]
        %v1784 = vld [vmem:[%s1772 + $0x58] sm:$0xff]
        %v1785 = vld [vmem:[%s1772 + $0x60] sm:$0xff]
        %v1786 = vld [vmem:[%s1772 + $0x68] sm:$0xff]
        %v1787 = vld [vmem:[%s1772 + $0x70] sm:$0xff]
        %v1788 = vld [vmem:[%s1772 + $0x78] sm:$0xff]
        %1789 = vmatpush.msra.mxu0 %v1788
        %1790 = vmatpush.msra.mxu0 %v1787
        %1791 = vmatpush.msra.mxu0 %v1786
        %1792 = vmatpush.msra.mxu0 %v1785
        %1793 = vmatpush.msra.mxu0 %v1784
        %1794 = vmatpush.msra.mxu0 %v1783
        %1795 = vmatpush.msra.mxu0 %v1782
        %1796 = vmatpush.msra.mxu0 %v1781
        %1797 = vmatpush.msra.mxu0 %v1780
        %1798 = vmatpush.msra.mxu0 %v1779
        %1799 = vmatpush.msra.mxu0 %v1778
        %1800 = vmatpush.msra.mxu0 %v1777
        %1801 = vmatpush.msra.mxu0 %v1776
        %1802 = vmatpush.msra.mxu0 %v1775
        %1803 = vmatpush.msra.mxu0 %v1774
        %1804 = vmatpush.msra.mxu0 %v1773
        %1805 = vmatmul.f32.gmra.mxu0 %v738
        %v1806 = vpop.f32.mrf.mxu0
        %v1807 = vadd.f32 0.0, %v1806
        %1808 = vmatmul.f32.gmra.mxu0 %v739
        %v1809 = vpop.f32.mrf.mxu0
        %v1810 = vadd.f32 0.0, %v1809
        %1811 = vmatmul.f32.gmra.mxu0 %v741
        %v1812 = vpop.f32.mrf.mxu0
        %v1813 = vadd.f32 0.0, %v1812
        %1814 = vmatmul.f32.gmra.mxu0 %v742
        %v1815 = vpop.f32.mrf.mxu0
        %v1816 = vadd.f32 0.0, %v1815
        %1817 = vmatmul.f32.gmra.mxu0 %v744
        %v1818 = vpop.f32.mrf.mxu0
        %v1819 = vadd.f32 0.0, %v1818
        %1820 = vmatmul.f32.gmra.mxu0 %v745
        %v1821 = vpop.f32.mrf.mxu0
        %v1822 = vadd.f32 0.0, %v1821
        %1823 = vmatmul.f32.gmra.mxu0 %v747
        %v1824 = vpop.f32.mrf.mxu0
        %v1825 = vadd.f32 0.0, %v1824
        %1826 = vmatmul.f32.gmra.mxu0 %v748
        %v1827 = vpop.f32.mrf.mxu0
        %v1828 = vadd.f32 0.0, %v1827
        %1829 = vmatmul.f32.gmra.mxu0 %v750
        %v1830 = vpop.f32.mrf.mxu0
        %v1831 = vadd.f32 0.0, %v1830
        %1832 = vmatmul.f32.gmra.mxu0 %v751
        %v1833 = vpop.f32.mrf.mxu0
        %v1834 = vadd.f32 0.0, %v1833
        %1835 = vmatmul.f32.gmra.mxu0 %v753
        %v1836 = vpop.f32.mrf.mxu0
        %v1837 = vadd.f32 0.0, %v1836
        %1838 = vmatmul.f32.gmra.mxu0 %v754
        %v1839 = vpop.f32.mrf.mxu0
        %v1840 = vadd.f32 0.0, %v1839
        %1841 = vmatmul.f32.gmra.mxu0 %v756
        %v1842 = vpop.f32.mrf.mxu0
        %v1843 = vadd.f32 0.0, %v1842
        %1844 = vmatmul.f32.gmra.mxu0 %v757
        %v1845 = vpop.f32.mrf.mxu0
        %v1846 = vadd.f32 0.0, %v1845
        %1847 = vmatmul.f32.gmra.mxu0 %v759
        %v1848 = vpop.f32.mrf.mxu0
        %v1849 = vadd.f32 0.0, %v1848
        %1850 = vmatmul.f32.gmra.mxu0 %v760
        %v1851 = vpop.f32.mrf.mxu0
        %v1852 = vadd.f32 0.0, %v1851
        %1853 = vmatmul.f32.gmra.mxu0 %v762
        %v1854 = vpop.f32.mrf.mxu0
        %v1855 = vadd.f32 0.0, %v1854
        %1856 = vmatmul.f32.gmra.mxu0 %v763
        %v1857 = vpop.f32.mrf.mxu0
        %v1858 = vadd.f32 0.0, %v1857
        %1859 = vmatmul.f32.gmra.mxu0 %v765
        %v1860 = vpop.f32.mrf.mxu0
        %v1861 = vadd.f32 0.0, %v1860
        %1862 = vmatmul.f32.gmra.mxu0 %v766
        %v1863 = vpop.f32.mrf.mxu0
        %v1864 = vadd.f32 0.0, %v1863
        %1865 = vmatmul.f32.gmra.mxu0 %v768
        %v1866 = vpop.f32.mrf.mxu0
        %v1867 = vadd.f32 0.0, %v1866
        %1868 = vmatmul.f32.gmra.mxu0 %v769
        %v1869 = vpop.f32.mrf.mxu0
        %v1870 = vadd.f32 0.0, %v1869
        %1871 = vmatmul.f32.gmra.mxu0 %v771
        %v1872 = vpop.f32.mrf.mxu0
        %v1873 = vadd.f32 0.0, %v1872
        %1874 = vmatmul.f32.gmra.mxu0 %v772
        %v1875 = vpop.f32.mrf.mxu0
        %v1876 = vadd.f32 0.0, %v1875
        %1877 = vmatmul.f32.gmra.mxu0 %v774
        %v1878 = vpop.f32.mrf.mxu0
        %v1879 = vadd.f32 0.0, %v1878
        %1880 = vmatmul.f32.gmra.mxu0 %v775
        %v1881 = vpop.f32.mrf.mxu0
        %v1882 = vadd.f32 0.0, %v1881
        %1883 = vmatmul.f32.gmra.mxu0 %v777
        %v1884 = vpop.f32.mrf.mxu0
        %v1885 = vadd.f32 0.0, %v1884
        %1886 = vmatmul.f32.gmra.mxu0 %v778
        %v1887 = vpop.f32.mrf.mxu0
        %v1888 = vadd.f32 0.0, %v1887
        %1889 = vmatmul.f32.gmra.mxu0 %v780
        %v1890 = vpop.f32.mrf.mxu0
        %v1891 = vadd.f32 0.0, %v1890
        %1892 = vmatmul.f32.gmra.mxu0 %v781
        %v1893 = vpop.f32.mrf.mxu0
        %v1894 = vadd.f32 0.0, %v1893
        %1895 = vmatmul.f32.gmra.mxu0 %v783
        %v1896 = vpop.f32.mrf.mxu0
        %v1897 = vadd.f32 0.0, %v1896
        %1898 = vmatmul.f32.gmra.mxu0 %v784
        %v1899 = vpop.f32.mrf.mxu0
        %v1900 = vadd.f32 0.0, %v1899
        %1901 = vdwg.mxu0
        %v1902 = vadd.f32 %v1740, %v1807
        %v1903 = vadd.f32 %v1741, %v1810
        %v1904 = vadd.f32 %v1742, %v1813
        %v1905 = vadd.f32 %v1743, %v1816
        %v1906 = vadd.f32 %v1744, %v1819
        %v1907 = vadd.f32 %v1745, %v1822
        %v1908 = vadd.f32 %v1746, %v1825
        %v1909 = vadd.f32 %v1747, %v1828
        %v1910 = vadd.f32 %v1748, %v1831
        %v1911 = vadd.f32 %v1749, %v1834
        %v1912 = vadd.f32 %v1750, %v1837
        %v1913 = vadd.f32 %v1751, %v1840
        %v1914 = vadd.f32 %v1752, %v1843
        %v1915 = vadd.f32 %v1753, %v1846
        %v1916 = vadd.f32 %v1754, %v1849
        %v1917 = vadd.f32 %v1755, %v1852
        %v1918 = vadd.f32 %v1756, %v1855
        %v1919 = vadd.f32 %v1757, %v1858
        %v1920 = vadd.f32 %v1758, %v1861
        %v1921 = vadd.f32 %v1759, %v1864
        %v1922 = vadd.f32 %v1760, %v1867
        %v1923 = vadd.f32 %v1761, %v1870
        %v1924 = vadd.f32 %v1762, %v1873
        %v1925 = vadd.f32 %v1763, %v1876
        %v1926 = vadd.f32 %v1764, %v1879
        %v1927 = vadd.f32 %v1765, %v1882
        %v1928 = vadd.f32 %v1766, %v1885
        %v1929 = vadd.f32 %v1767, %v1888
        %v1930 = vadd.f32 %v1768, %v1891
        %v1931 = vadd.f32 %v1769, %v1894
        %v1932 = vadd.f32 %v1770, %v1897
        %v1933 = vadd.f32 %v1771, %v1900
        %1934 = vst [vmem:[#allocation3] sm:$0xff] %v1902
        %1935 = vst [vmem:[#allocation3 + $0x8] sm:$0xff] %v1903
        %1936 = vst [vmem:[#allocation3 + $0x10] sm:$0xff] %v1904
        %1937 = vst [vmem:[#allocation3 + $0x18] sm:$0xff] %v1905
        %1938 = vst [vmem:[#allocation3 + $0x20] sm:$0xff] %v1906
        %1939 = vst [vmem:[#allocation3 + $0x28] sm:$0xff] %v1907
        %1940 = vst [vmem:[#allocation3 + $0x30] sm:$0xff] %v1908
        %1941 = vst [vmem:[#allocation3 + $0x38] sm:$0xff] %v1909
        %1942 = vst [vmem:[#allocation3 + $0x40] sm:$0xff] %v1910
        %1943 = vst [vmem:[#allocation3 + $0x48] sm:$0xff] %v1911
        %1944 = vst [vmem:[#allocation3 + $0x50] sm:$0xff] %v1912
        %1945 = vst [vmem:[#allocation3 + $0x58] sm:$0xff] %v1913
        %1946 = vst [vmem:[#allocation3 + $0x60] sm:$0xff] %v1914
        %1947 = vst [vmem:[#allocation3 + $0x68] sm:$0xff] %v1915
        %1948 = vst [vmem:[#allocation3 + $0x70] sm:$0xff] %v1916
        %1949 = vst [vmem:[#allocation3 + $0x78] sm:$0xff] %v1917
        %1950 = vst [vmem:[#allocation3 + $0x80] sm:$0xff] %v1918
        %1951 = vst [vmem:[#allocation3 + $0x88] sm:$0xff] %v1919
        %1952 = vst [vmem:[#allocation3 + $0x90] sm:$0xff] %v1920
        %1953 = vst [vmem:[#allocation3 + $0x98] sm:$0xff] %v1921
        %1954 = vst [vmem:[#allocation3 + $0xa0] sm:$0xff] %v1922
        %1955 = vst [vmem:[#allocation3 + $0xa8] sm:$0xff] %v1923
        %1956 = vst [vmem:[#allocation3 + $0xb0] sm:$0xff] %v1924
        %1957 = vst [vmem:[#allocation3 + $0xb8] sm:$0xff] %v1925
        %1958 = vst [vmem:[#allocation3 + $0xc0] sm:$0xff] %v1926
        %1959 = vst [vmem:[#allocation3 + $0xc8] sm:$0xff] %v1927
        %1960 = vst [vmem:[#allocation3 + $0xd0] sm:$0xff] %v1928
        %1961 = vst [vmem:[#allocation3 + $0xd8] sm:$0xff] %v1929
        %1962 = vst [vmem:[#allocation3 + $0xe0] sm:$0xff] %v1930
        %1963 = vst [vmem:[#allocation3 + $0xe8] sm:$0xff] %v1931
        %1964 = vst [vmem:[#allocation3 + $0xf0] sm:$0xff] %v1932
        %1965 = vst [vmem:[#allocation3 + $0xf8] sm:$0xff] %v1933
        %v1966 = vld [vmem:[#allocation3] sm:$0xff]
        %v1967 = vld [vmem:[#allocation3 + $0x8] sm:$0xff]
        %v1968 = vld [vmem:[#allocation3 + $0x10] sm:$0xff]
        %v1969 = vld [vmem:[#allocation3 + $0x18] sm:$0xff]
        %v1970 = vld [vmem:[#allocation3 + $0x20] sm:$0xff]
        %v1971 = vld [vmem:[#allocation3 + $0x28] sm:$0xff]
        %v1972 = vld [vmem:[#allocation3 + $0x30] sm:$0xff]
        %v1973 = vld [vmem:[#allocation3 + $0x38] sm:$0xff]
        %v1974 = vld [vmem:[#allocation3 + $0x40] sm:$0xff]
        %v1975 = vld [vmem:[#allocation3 + $0x48] sm:$0xff]
        %v1976 = vld [vmem:[#allocation3 + $0x50] sm:$0xff]
        %v1977 = vld [vmem:[#allocation3 + $0x58] sm:$0xff]
        %v1978 = vld [vmem:[#allocation3 + $0x60] sm:$0xff]
        %v1979 = vld [vmem:[#allocation3 + $0x68] sm:$0xff]
        %v1980 = vld [vmem:[#allocation3 + $0x70] sm:$0xff]
        %v1981 = vld [vmem:[#allocation3 + $0x78] sm:$0xff]
        %v1982 = vld [vmem:[#allocation3 + $0x80] sm:$0xff]
        %v1983 = vld [vmem:[#allocation3 + $0x88] sm:$0xff]
        %v1984 = vld [vmem:[#allocation3 + $0x90] sm:$0xff]
        %v1985 = vld [vmem:[#allocation3 + $0x98] sm:$0xff]
        %v1986 = vld [vmem:[#allocation3 + $0xa0] sm:$0xff]
        %v1987 = vld [vmem:[#allocation3 + $0xa8] sm:$0xff]
        %v1988 = vld [vmem:[#allocation3 + $0xb0] sm:$0xff]
        %v1989 = vld [vmem:[#allocation3 + $0xb8] sm:$0xff]
        %v1990 = vld [vmem:[#allocation3 + $0xc0] sm:$0xff]
        %v1991 = vld [vmem:[#allocation3 + $0xc8] sm:$0xff]
        %v1992 = vld [vmem:[#allocation3 + $0xd0] sm:$0xff]
        %v1993 = vld [vmem:[#allocation3 + $0xd8] sm:$0xff]
        %v1994 = vld [vmem:[#allocation3 + $0xe0] sm:$0xff]
        %v1995 = vld [vmem:[#allocation3 + $0xe8] sm:$0xff]
        %v1996 = vld [vmem:[#allocation3 + $0xf0] sm:$0xff]
        %v1997 = vld [vmem:[#allocation3 + $0xf8] sm:$0xff]
        %v2001 = vrot.slane %v783, 1
        %v2002 = vrot.slane %v784, 1
        %v2003 = vsel %vm1094, %v2001, %v2002
        %v2004 = vrot.slane %v785, 1
        %v2005 = vsel %vm1094, %v2002, %v2004
        %s2008 = scalar_lea.vmem [#allocation9], 512
        %v2009 = vld [vmem:[%s2008] sm:$0xff]
        %v2010 = vld [vmem:[%s2008 + $0x8] sm:$0xff]
        %v2011 = vld [vmem:[%s2008 + $0x10] sm:$0xff]
        %v2012 = vld [vmem:[%s2008 + $0x18] sm:$0xff]
        %v2013 = vld [vmem:[%s2008 + $0x20] sm:$0xff]
        %v2014 = vld [vmem:[%s2008 + $0x28] sm:$0xff]
        %v2015 = vld [vmem:[%s2008 + $0x30] sm:$0xff]
        %v2016 = vld [vmem:[%s2008 + $0x38] sm:$0xff]
        %v2017 = vld [vmem:[%s2008 + $0x40] sm:$0xff]
        %v2018 = vld [vmem:[%s2008 + $0x48] sm:$0xff]
        %v2019 = vld [vmem:[%s2008 + $0x50] sm:$0xff]
        %v2020 = vld [vmem:[%s2008 + $0x58] sm:$0xff]
        %v2021 = vld [vmem:[%s2008 + $0x60] sm:$0xff]
        %v2022 = vld [vmem:[%s2008 + $0x68] sm:$0xff]
        %v2023 = vld [vmem:[%s2008 + $0x70] sm:$0xff]
        %v2024 = vld [vmem:[%s2008 + $0x78] sm:$0xff]
        %2025 = vmatpush.msra.mxu0 %v2024
        %2026 = vmatpush.msra.mxu0 %v2023
        %2027 = vmatpush.msra.mxu0 %v2022
        %2028 = vmatpush.msra.mxu0 %v2021
        %2029 = vmatpush.msra.mxu0 %v2020
        %2030 = vmatpush.msra.mxu0 %v2019
        %2031 = vmatpush.msra.mxu0 %v2018
        %2032 = vmatpush.msra.mxu0 %v2017
        %2033 = vmatpush.msra.mxu0 %v2016
        %2034 = vmatpush.msra.mxu0 %v2015
        %2035 = vmatpush.msra.mxu0 %v2014
        %2036 = vmatpush.msra.mxu0 %v2013
        %2037 = vmatpush.msra.mxu0 %v2012
        %2038 = vmatpush.msra.mxu0 %v2011
        %2039 = vmatpush.msra.mxu0 %v2010
        %2040 = vmatpush.msra.mxu0 %v2009
        %2041 = vmatmul.f32.gmra.mxu0 %v1102
        %v2042 = vpop.f32.mrf.mxu0
        %v2043 = vadd.f32 0.0, %v2042
        %2044 = vmatmul.f32.gmra.mxu0 %v1104
        %v2045 = vpop.f32.mrf.mxu0
        %v2046 = vadd.f32 0.0, %v2045
        %2047 = vmatmul.f32.gmra.mxu0 %v1107
        %v2048 = vpop.f32.mrf.mxu0
        %v2049 = vadd.f32 0.0, %v2048
        %2050 = vmatmul.f32.gmra.mxu0 %v1109
        %v2051 = vpop.f32.mrf.mxu0
        %v2052 = vadd.f32 0.0, %v2051
        %2053 = vmatmul.f32.gmra.mxu0 %v1112
        %v2054 = vpop.f32.mrf.mxu0
        %v2055 = vadd.f32 0.0, %v2054
        %2056 = vmatmul.f32.gmra.mxu0 %v1114
        %v2057 = vpop.f32.mrf.mxu0
        %v2058 = vadd.f32 0.0, %v2057
        %2059 = vmatmul.f32.gmra.mxu0 %v1117
        %v2060 = vpop.f32.mrf.mxu0
        %v2061 = vadd.f32 0.0, %v2060
        %2062 = vmatmul.f32.gmra.mxu0 %v1119
        %v2063 = vpop.f32.mrf.mxu0
        %v2064 = vadd.f32 0.0, %v2063
        %2065 = vmatmul.f32.gmra.mxu0 %v1122
        %v2066 = vpop.f32.mrf.mxu0
        %v2067 = vadd.f32 0.0, %v2066
        %2068 = vmatmul.f32.gmra.mxu0 %v1124
        %v2069 = vpop.f32.mrf.mxu0
        %v2070 = vadd.f32 0.0, %v2069
        %2071 = vmatmul.f32.gmra.mxu0 %v1127
        %v2072 = vpop.f32.mrf.mxu0
        %v2073 = vadd.f32 0.0, %v2072
        %2074 = vmatmul.f32.gmra.mxu0 %v1129
        %v2075 = vpop.f32.mrf.mxu0
        %v2076 = vadd.f32 0.0, %v2075
        %2077 = vmatmul.f32.gmra.mxu0 %v1132
        %v2078 = vpop.f32.mrf.mxu0
        %v2079 = vadd.f32 0.0, %v2078
        %2080 = vmatmul.f32.gmra.mxu0 %v1134
        %v2081 = vpop.f32.mrf.mxu0
        %v2082 = vadd.f32 0.0, %v2081
        %2083 = vmatmul.f32.gmra.mxu0 %v1137
        %v2084 = vpop.f32.mrf.mxu0
        %v2085 = vadd.f32 0.0, %v2084
        %2086 = vmatmul.f32.gmra.mxu0 %v1139
        %v2087 = vpop.f32.mrf.mxu0
        %v2088 = vadd.f32 0.0, %v2087
        %2089 = vmatmul.f32.gmra.mxu0 %v1142
        %v2090 = vpop.f32.mrf.mxu0
        %v2091 = vadd.f32 0.0, %v2090
        %2092 = vmatmul.f32.gmra.mxu0 %v1144
        %v2093 = vpop.f32.mrf.mxu0
        %v2094 = vadd.f32 0.0, %v2093
        %2095 = vmatmul.f32.gmra.mxu0 %v1147
        %v2096 = vpop.f32.mrf.mxu0
        %v2097 = vadd.f32 0.0, %v2096
        %2098 = vmatmul.f32.gmra.mxu0 %v1149
        %v2099 = vpop.f32.mrf.mxu0
        %v2100 = vadd.f32 0.0, %v2099
        %2101 = vmatmul.f32.gmra.mxu0 %v1152
        %v2102 = vpop.f32.mrf.mxu0
        %v2103 = vadd.f32 0.0, %v2102
        %2104 = vmatmul.f32.gmra.mxu0 %v1154
        %v2105 = vpop.f32.mrf.mxu0
        %v2106 = vadd.f32 0.0, %v2105
        %2107 = vmatmul.f32.gmra.mxu0 %v1157
        %v2108 = vpop.f32.mrf.mxu0
        %v2109 = vadd.f32 0.0, %v2108
        %2110 = vmatmul.f32.gmra.mxu0 %v1159
        %v2111 = vpop.f32.mrf.mxu0
        %v2112 = vadd.f32 0.0, %v2111
        %2113 = vmatmul.f32.gmra.mxu0 %v1162
        %v2114 = vpop.f32.mrf.mxu0
        %v2115 = vadd.f32 0.0, %v2114
        %2116 = vmatmul.f32.gmra.mxu0 %v1164
        %v2117 = vpop.f32.mrf.mxu0
        %v2118 = vadd.f32 0.0, %v2117
        %2119 = vmatmul.f32.gmra.mxu0 %v1167
        %v2120 = vpop.f32.mrf.mxu0
        %v2121 = vadd.f32 0.0, %v2120
        %2122 = vmatmul.f32.gmra.mxu0 %v1169
        %v2123 = vpop.f32.mrf.mxu0
        %v2124 = vadd.f32 0.0, %v2123
        %2125 = vmatmul.f32.gmra.mxu0 %v1172
        %v2126 = vpop.f32.mrf.mxu0
        %v2127 = vadd.f32 0.0, %v2126
        %2128 = vmatmul.f32.gmra.mxu0 %v1174
        %v2129 = vpop.f32.mrf.mxu0
        %v2130 = vadd.f32 0.0, %v2129
        %2131 = vmatmul.f32.gmra.mxu0 %v2003
        %v2132 = vpop.f32.mrf.mxu0
        %v2133 = vadd.f32 0.0, %v2132
        %2134 = vmatmul.f32.gmra.mxu0 %v2005
        %v2135 = vpop.f32.mrf.mxu0
        %v2136 = vadd.f32 0.0, %v2135
        %2137 = vdwg.mxu0
        %v2138 = vadd.f32 %v1966, %v2043
        %v2139 = vadd.f32 %v1967, %v2046
        %v2140 = vadd.f32 %v1968, %v2049
        %v2141 = vadd.f32 %v1969, %v2052
        %v2142 = vadd.f32 %v1970, %v2055
        %v2143 = vadd.f32 %v1971, %v2058
        %v2144 = vadd.f32 %v1972, %v2061
        %v2145 = vadd.f32 %v1973, %v2064
        %v2146 = vadd.f32 %v1974, %v2067
        %v2147 = vadd.f32 %v1975, %v2070
        %v2148 = vadd.f32 %v1976, %v2073
        %v2149 = vadd.f32 %v1977, %v2076
        %v2150 = vadd.f32 %v1978, %v2079
        %v2151 = vadd.f32 %v1979, %v2082
        %v2152 = vadd.f32 %v1980, %v2085
        %v2153 = vadd.f32 %v1981, %v2088
        %v2154 = vadd.f32 %v1982, %v2091
        %v2155 = vadd.f32 %v1983, %v2094
        %v2156 = vadd.f32 %v1984, %v2097
        %v2157 = vadd.f32 %v1985, %v2100
        %v2158 = vadd.f32 %v1986, %v2103
        %v2159 = vadd.f32 %v1987, %v2106
        %v2160 = vadd.f32 %v1988, %v2109
        %v2161 = vadd.f32 %v1989, %v2112
        %v2162 = vadd.f32 %v1990, %v2115
        %v2163 = vadd.f32 %v1991, %v2118
        %v2164 = vadd.f32 %v1992, %v2121
        %v2165 = vadd.f32 %v1993, %v2124
        %v2166 = vadd.f32 %v1994, %v2127
        %v2167 = vadd.f32 %v1995, %v2130
        %v2168 = vadd.f32 %v1996, %v2133
        %v2169 = vadd.f32 %v1997, %v2136
        %2170 = vst [vmem:[#allocation3] sm:$0xff] %v2138
        %2171 = vst [vmem:[#allocation3 + $0x8] sm:$0xff] %v2139
        %2172 = vst [vmem:[#allocation3 + $0x10] sm:$0xff] %v2140
        %2173 = vst [vmem:[#allocation3 + $0x18] sm:$0xff] %v2141
        %2174 = vst [vmem:[#allocation3 + $0x20] sm:$0xff] %v2142
        %2175 = vst [vmem:[#allocation3 + $0x28] sm:$0xff] %v2143
        %2176 = vst [vmem:[#allocation3 + $0x30] sm:$0xff] %v2144
        %2177 = vst [vmem:[#allocation3 + $0x38] sm:$0xff] %v2145
        %2178 = vst [vmem:[#allocation3 + $0x40] sm:$0xff] %v2146
        %2179 = vst [vmem:[#allocation3 + $0x48] sm:$0xff] %v2147
        %2180 = vst [vmem:[#allocation3 + $0x50] sm:$0xff] %v2148
        %2181 = vst [vmem:[#allocation3 + $0x58] sm:$0xff] %v2149
        %2182 = vst [vmem:[#allocation3 + $0x60] sm:$0xff] %v2150
        %2183 = vst [vmem:[#allocation3 + $0x68] sm:$0xff] %v2151
        %2184 = vst [vmem:[#allocation3 + $0x70] sm:$0xff] %v2152
        %2185 = vst [vmem:[#allocation3 + $0x78] sm:$0xff] %v2153
        %2186 = vst [vmem:[#allocation3 + $0x80] sm:$0xff] %v2154
        %2187 = vst [vmem:[#allocation3 + $0x88] sm:$0xff] %v2155
        %2188 = vst [vmem:[#allocation3 + $0x90] sm:$0xff] %v2156
        %2189 = vst [vmem:[#allocation3 + $0x98] sm:$0xff] %v2157
        %2190 = vst [vmem:[#allocation3 + $0xa0] sm:$0xff] %v2158
        %2191 = vst [vmem:[#allocation3 + $0xa8] sm:$0xff] %v2159
        %2192 = vst [vmem:[#allocation3 + $0xb0] sm:$0xff] %v2160
        %2193 = vst [vmem:[#allocation3 + $0xb8] sm:$0xff] %v2161
        %2194 = vst [vmem:[#allocation3 + $0xc0] sm:$0xff] %v2162
        %2195 = vst [vmem:[#allocation3 + $0xc8] sm:$0xff] %v2163
        %2196 = vst [vmem:[#allocation3 + $0xd0] sm:$0xff] %v2164
        %2197 = vst [vmem:[#allocation3 + $0xd8] sm:$0xff] %v2165
        %2198 = vst [vmem:[#allocation3 + $0xe0] sm:$0xff] %v2166
        %2199 = vst [vmem:[#allocation3 + $0xe8] sm:$0xff] %v2167
        %2200 = vst [vmem:[#allocation3 + $0xf0] sm:$0xff] %v2168
        %2201 = vst [vmem:[#allocation3 + $0xf8] sm:$0xff] %v2169
        %v2202 = vld [vmem:[#allocation3] sm:$0xff]
        %v2203 = vld [vmem:[#allocation3 + $0x8] sm:$0xff]
        %v2204 = vld [vmem:[#allocation3 + $0x10] sm:$0xff]
        %v2205 = vld [vmem:[#allocation3 + $0x18] sm:$0xff]
        %v2206 = vld [vmem:[#allocation3 + $0x20] sm:$0xff]
        %v2207 = vld [vmem:[#allocation3 + $0x28] sm:$0xff]
        %v2208 = vld [vmem:[#allocation3 + $0x30] sm:$0xff]
        %v2209 = vld [vmem:[#allocation3 + $0x38] sm:$0xff]
        %v2210 = vld [vmem:[#allocation3 + $0x40] sm:$0xff]
        %v2211 = vld [vmem:[#allocation3 + $0x48] sm:$0xff]
        %v2212 = vld [vmem:[#allocation3 + $0x50] sm:$0xff]
        %v2213 = vld [vmem:[#allocation3 + $0x58] sm:$0xff]
        %v2214 = vld [vmem:[#allocation3 + $0x60] sm:$0xff]
        %v2215 = vld [vmem:[#allocation3 + $0x68] sm:$0xff]
        %v2216 = vld [vmem:[#allocation3 + $0x70] sm:$0xff]
        %v2217 = vld [vmem:[#allocation3 + $0x78] sm:$0xff]
        %v2218 = vld [vmem:[#allocation3 + $0x80] sm:$0xff]
        %v2219 = vld [vmem:[#allocation3 + $0x88] sm:$0xff]
        %v2220 = vld [vmem:[#allocation3 + $0x90] sm:$0xff]
        %v2221 = vld [vmem:[#allocation3 + $0x98] sm:$0xff]
        %v2222 = vld [vmem:[#allocation3 + $0xa0] sm:$0xff]
        %v2223 = vld [vmem:[#allocation3 + $0xa8] sm:$0xff]
        %v2224 = vld [vmem:[#allocation3 + $0xb0] sm:$0xff]
        %v2225 = vld [vmem:[#allocation3 + $0xb8] sm:$0xff]
        %v2226 = vld [vmem:[#allocation3 + $0xc0] sm:$0xff]
        %v2227 = vld [vmem:[#allocation3 + $0xc8] sm:$0xff]
        %v2228 = vld [vmem:[#allocation3 + $0xd0] sm:$0xff]
        %v2229 = vld [vmem:[#allocation3 + $0xd8] sm:$0xff]
        %v2230 = vld [vmem:[#allocation3 + $0xe0] sm:$0xff]
        %v2231 = vld [vmem:[#allocation3 + $0xe8] sm:$0xff]
        %v2232 = vld [vmem:[#allocation3 + $0xf0] sm:$0xff]
        %v2233 = vld [vmem:[#allocation3 + $0xf8] sm:$0xff]
        %v2234 = vrot.slane %v783, 2
        %v2235 = vrot.slane %v784, 2
        %v2236 = vsel %vm1433, %v2234, %v2235
        %v2237 = vrot.slane %v785, 2
        %v2238 = vsel %vm1433, %v2235, %v2237
        %s2241 = scalar_lea.vmem [#allocation9], 640
        %v2242 = vld [vmem:[%s2241] sm:$0xff]
        %v2243 = vld [vmem:[%s2241 + $0x8] sm:$0xff]
        %v2244 = vld [vmem:[%s2241 + $0x10] sm:$0xff]
        %v2245 = vld [vmem:[%s2241 + $0x18] sm:$0xff]
        %v2246 = vld [vmem:[%s2241 + $0x20] sm:$0xff]
        %v2247 = vld [vmem:[%s2241 + $0x28] sm:$0xff]
        %v2248 = vld [vmem:[%s2241 + $0x30] sm:$0xff]
        %v2249 = vld [vmem:[%s2241 + $0x38] sm:$0xff]
        %v2250 = vld [vmem:[%s2241 + $0x40] sm:$0xff]
        %v2251 = vld [vmem:[%s2241 + $0x48] sm:$0xff]
        %v2252 = vld [vmem:[%s2241 + $0x50] sm:$0xff]
        %v2253 = vld [vmem:[%s2241 + $0x58] sm:$0xff]
        %v2254 = vld [vmem:[%s2241 + $0x60] sm:$0xff]
        %v2255 = vld [vmem:[%s2241 + $0x68] sm:$0xff]
        %v2256 = vld [vmem:[%s2241 + $0x70] sm:$0xff]
        %v2257 = vld [vmem:[%s2241 + $0x78] sm:$0xff]
        %2258 = vmatpush.msra.mxu0 %v2257
        %2259 = vmatpush.msra.mxu0 %v2256
        %2260 = vmatpush.msra.mxu0 %v2255
        %2261 = vmatpush.msra.mxu0 %v2254
        %2262 = vmatpush.msra.mxu0 %v2253
        %2263 = vmatpush.msra.mxu0 %v2252
        %2264 = vmatpush.msra.mxu0 %v2251
        %2265 = vmatpush.msra.mxu0 %v2250
        %2266 = vmatpush.msra.mxu0 %v2249
        %2267 = vmatpush.msra.mxu0 %v2248
        %2268 = vmatpush.msra.mxu0 %v2247
        %2269 = vmatpush.msra.mxu0 %v2246
        %2270 = vmatpush.msra.mxu0 %v2245
        %2271 = vmatpush.msra.mxu0 %v2244
        %2272 = vmatpush.msra.mxu0 %v2243
        %2273 = vmatpush.msra.mxu0 %v2242
        %2274 = vmatmul.f32.gmra.mxu0 %v1441
        %v2275 = vpop.f32.mrf.mxu0
        %v2276 = vadd.f32 0.0, %v2275
        %2277 = vmatmul.f32.gmra.mxu0 %v1443
        %v2278 = vpop.f32.mrf.mxu0
        %v2279 = vadd.f32 0.0, %v2278
        %2280 = vmatmul.f32.gmra.mxu0 %v1446
        %v2281 = vpop.f32.mrf.mxu0
        %v2282 = vadd.f32 0.0, %v2281
        %2283 = vmatmul.f32.gmra.mxu0 %v1448
        %v2284 = vpop.f32.mrf.mxu0
        %v2285 = vadd.f32 0.0, %v2284
        %2286 = vmatmul.f32.gmra.mxu0 %v1451
        %v2287 = vpop.f32.mrf.mxu0
        %v2288 = vadd.f32 0.0, %v2287
        %2289 = vmatmul.f32.gmra.mxu0 %v1453
        %v2290 = vpop.f32.mrf.mxu0
        %v2291 = vadd.f32 0.0, %v2290
        %2292 = vmatmul.f32.gmra.mxu0 %v1456
        %v2293 = vpop.f32.mrf.mxu0
        %v2294 = vadd.f32 0.0, %v2293
        %2295 = vmatmul.f32.gmra.mxu0 %v1458
        %v2296 = vpop.f32.mrf.mxu0
        %v2297 = vadd.f32 0.0, %v2296
        %2298 = vmatmul.f32.gmra.mxu0 %v1461
        %v2299 = vpop.f32.mrf.mxu0
        %v2300 = vadd.f32 0.0, %v2299
        %2301 = vmatmul.f32.gmra.mxu0 %v1463
        %v2302 = vpop.f32.mrf.mxu0
        %v2303 = vadd.f32 0.0, %v2302
        %2304 = vmatmul.f32.gmra.mxu0 %v1466
        %v2305 = vpop.f32.mrf.mxu0
        %v2306 = vadd.f32 0.0, %v2305
        %2307 = vmatmul.f32.gmra.mxu0 %v1468
        %v2308 = vpop.f32.mrf.mxu0
        %v2309 = vadd.f32 0.0, %v2308
        %2310 = vmatmul.f32.gmra.mxu0 %v1471
        %v2311 = vpop.f32.mrf.mxu0
        %v2312 = vadd.f32 0.0, %v2311
        %2313 = vmatmul.f32.gmra.mxu0 %v1473
        %v2314 = vpop.f32.mrf.mxu0
        %v2315 = vadd.f32 0.0, %v2314
        %2316 = vmatmul.f32.gmra.mxu0 %v1476
        %v2317 = vpop.f32.mrf.mxu0
        %v2318 = vadd.f32 0.0, %v2317
        %2319 = vmatmul.f32.gmra.mxu0 %v1478
        %v2320 = vpop.f32.mrf.mxu0
        %v2321 = vadd.f32 0.0, %v2320
        %2322 = vmatmul.f32.gmra.mxu0 %v1481
        %v2323 = vpop.f32.mrf.mxu0
        %v2324 = vadd.f32 0.0, %v2323
        %2325 = vmatmul.f32.gmra.mxu0 %v1483
        %v2326 = vpop.f32.mrf.mxu0
        %v2327 = vadd.f32 0.0, %v2326
        %2328 = vmatmul.f32.gmra.mxu0 %v1486
        %v2329 = vpop.f32.mrf.mxu0
        %v2330 = vadd.f32 0.0, %v2329
        %2331 = vmatmul.f32.gmra.mxu0 %v1488
        %v2332 = vpop.f32.mrf.mxu0
        %v2333 = vadd.f32 0.0, %v2332
        %2334 = vmatmul.f32.gmra.mxu0 %v1491
        %v2335 = vpop.f32.mrf.mxu0
        %v2336 = vadd.f32 0.0, %v2335
        %2337 = vmatmul.f32.gmra.mxu0 %v1493
        %v2338 = vpop.f32.mrf.mxu0
        %v2339 = vadd.f32 0.0, %v2338
        %2340 = vmatmul.f32.gmra.mxu0 %v1496
        %v2341 = vpop.f32.mrf.mxu0
        %v2342 = vadd.f32 0.0, %v2341
        %2343 = vmatmul.f32.gmra.mxu0 %v1498
        %v2344 = vpop.f32.mrf.mxu0
        %v2345 = vadd.f32 0.0, %v2344
        %2346 = vmatmul.f32.gmra.mxu0 %v1501
        %v2347 = vpop.f32.mrf.mxu0
        %v2348 = vadd.f32 0.0, %v2347
        %2349 = vmatmul.f32.gmra.mxu0 %v1503
        %v2350 = vpop.f32.mrf.mxu0
        %v2351 = vadd.f32 0.0, %v2350
        %2352 = vmatmul.f32.gmra.mxu0 %v1506
        %v2353 = vpop.f32.mrf.mxu0
        %v2354 = vadd.f32 0.0, %v2353
        %2355 = vmatmul.f32.gmra.mxu0 %v1508
        %v2356 = vpop.f32.mrf.mxu0
        %v2357 = vadd.f32 0.0, %v2356
        %2358 = vmatmul.f32.gmra.mxu0 %v1511
        %v2359 = vpop.f32.mrf.mxu0
        %v2360 = vadd.f32 0.0, %v2359
        %2361 = vmatmul.f32.gmra.mxu0 %v1513
        %v2362 = vpop.f32.mrf.mxu0
        %v2363 = vadd.f32 0.0, %v2362
        %2364 = vmatmul.f32.gmra.mxu0 %v2236
        %v2365 = vpop.f32.mrf.mxu0
        %v2366 = vadd.f32 0.0, %v2365
        %2367 = vmatmul.f32.gmra.mxu0 %v2238
        %v2368 = vpop.f32.mrf.mxu0
        %v2369 = vadd.f32 0.0, %v2368
        %2370 = vdwg.mxu0
        %v2371 = vadd.f32 %v2202, %v2276
        %v2372 = vadd.f32 %v2203, %v2279
        %v2373 = vadd.f32 %v2204, %v2282
        %v2374 = vadd.f32 %v2205, %v2285
        %v2375 = vadd.f32 %v2206, %v2288
        %v2376 = vadd.f32 %v2207, %v2291
        %v2377 = vadd.f32 %v2208, %v2294
        %v2378 = vadd.f32 %v2209, %v2297
        %v2379 = vadd.f32 %v2210, %v2300
        %v2380 = vadd.f32 %v2211, %v2303
        %v2381 = vadd.f32 %v2212, %v2306
        %v2382 = vadd.f32 %v2213, %v2309
        %v2383 = vadd.f32 %v2214, %v2312
        %v2384 = vadd.f32 %v2215, %v2315
        %v2385 = vadd.f32 %v2216, %v2318
        %v2386 = vadd.f32 %v2217, %v2321
        %v2387 = vadd.f32 %v2218, %v2324
        %v2388 = vadd.f32 %v2219, %v2327
        %v2389 = vadd.f32 %v2220, %v2330
        %v2390 = vadd.f32 %v2221, %v2333
        %v2391 = vadd.f32 %v2222, %v2336
        %v2392 = vadd.f32 %v2223, %v2339
        %v2393 = vadd.f32 %v2224, %v2342
        %v2394 = vadd.f32 %v2225, %v2345
        %v2395 = vadd.f32 %v2226, %v2348
        %v2396 = vadd.f32 %v2227, %v2351
        %v2397 = vadd.f32 %v2228, %v2354
        %v2398 = vadd.f32 %v2229, %v2357
        %v2399 = vadd.f32 %v2230, %v2360
        %v2400 = vadd.f32 %v2231, %v2363
        %v2401 = vadd.f32 %v2232, %v2366
        %v2402 = vadd.f32 %v2233, %v2369
        %2403 = vst [vmem:[#allocation3] sm:$0xff] %v2371
        %2404 = vst [vmem:[#allocation3 + $0x8] sm:$0xff] %v2372
        %2405 = vst [vmem:[#allocation3 + $0x10] sm:$0xff] %v2373
        %2406 = vst [vmem:[#allocation3 + $0x18] sm:$0xff] %v2374
        %2407 = vst [vmem:[#allocation3 + $0x20] sm:$0xff] %v2375
        %2408 = vst [vmem:[#allocation3 + $0x28] sm:$0xff] %v2376
        %2409 = vst [vmem:[#allocation3 + $0x30] sm:$0xff] %v2377
        %2410 = vst [vmem:[#allocation3 + $0x38] sm:$0xff] %v2378
        %2411 = vst [vmem:[#allocation3 + $0x40] sm:$0xff] %v2379
        %2412 = vst [vmem:[#allocation3 + $0x48] sm:$0xff] %v2380
        %2413 = vst [vmem:[#allocation3 + $0x50] sm:$0xff] %v2381
        %2414 = vst [vmem:[#allocation3 + $0x58] sm:$0xff] %v2382
        %2415 = vst [vmem:[#allocation3 + $0x60] sm:$0xff] %v2383
        %2416 = vst [vmem:[#allocation3 + $0x68] sm:$0xff] %v2384
        %2417 = vst [vmem:[#allocation3 + $0x70] sm:$0xff] %v2385
        %2418 = vst [vmem:[#allocation3 + $0x78] sm:$0xff] %v2386
        %2419 = vst [vmem:[#allocation3 + $0x80] sm:$0xff] %v2387
        %2420 = vst [vmem:[#allocation3 + $0x88] sm:$0xff] %v2388
        %2421 = vst [vmem:[#allocation3 + $0x90] sm:$0xff] %v2389
        %2422 = vst [vmem:[#allocation3 + $0x98] sm:$0xff] %v2390
        %2423 = vst [vmem:[#allocation3 + $0xa0] sm:$0xff] %v2391
        %2424 = vst [vmem:[#allocation3 + $0xa8] sm:$0xff] %v2392
        %2425 = vst [vmem:[#allocation3 + $0xb0] sm:$0xff] %v2393
        %2426 = vst [vmem:[#allocation3 + $0xb8] sm:$0xff] %v2394
        %2427 = vst [vmem:[#allocation3 + $0xc0] sm:$0xff] %v2395
        %2428 = vst [vmem:[#allocation3 + $0xc8] sm:$0xff] %v2396
        %2429 = vst [vmem:[#allocation3 + $0xd0] sm:$0xff] %v2397
        %2430 = vst [vmem:[#allocation3 + $0xd8] sm:$0xff] %v2398
        %2431 = vst [vmem:[#allocation3 + $0xe0] sm:$0xff] %v2399
        %2432 = vst [vmem:[#allocation3 + $0xe8] sm:$0xff] %v2400
        %2433 = vst [vmem:[#allocation3 + $0xf0] sm:$0xff] %v2401
        %2434 = vst [vmem:[#allocation3 + $0xf8] sm:$0xff] %v2402
        %v2435 = vld [vmem:[#allocation3] sm:$0xff]
        %v2436 = vld [vmem:[#allocation3 + $0x8] sm:$0xff]
        %v2437 = vld [vmem:[#allocation3 + $0x10] sm:$0xff]
        %v2438 = vld [vmem:[#allocation3 + $0x18] sm:$0xff]
        %v2439 = vld [vmem:[#allocation3 + $0x20] sm:$0xff]
        %v2440 = vld [vmem:[#allocation3 + $0x28] sm:$0xff]
        %v2441 = vld [vmem:[#allocation3 + $0x30] sm:$0xff]
        %v2442 = vld [vmem:[#allocation3 + $0x38] sm:$0xff]
        %v2443 = vld [vmem:[#allocation3 + $0x40] sm:$0xff]
        %v2444 = vld [vmem:[#allocation3 + $0x48] sm:$0xff]
        %v2445 = vld [vmem:[#allocation3 + $0x50] sm:$0xff]
        %v2446 = vld [vmem:[#allocation3 + $0x58] sm:$0xff]
        %v2447 = vld [vmem:[#allocation3 + $0x60] sm:$0xff]
        %v2448 = vld [vmem:[#allocation3 + $0x68] sm:$0xff]
        %v2449 = vld [vmem:[#allocation3 + $0x70] sm:$0xff]
        %v2450 = vld [vmem:[#allocation3 + $0x78] sm:$0xff]
        %v2451 = vld [vmem:[#allocation3 + $0x80] sm:$0xff]
        %v2452 = vld [vmem:[#allocation3 + $0x88] sm:$0xff]
        %v2453 = vld [vmem:[#allocation3 + $0x90] sm:$0xff]
        %v2454 = vld [vmem:[#allocation3 + $0x98] sm:$0xff]
        %v2455 = vld [vmem:[#allocation3 + $0xa0] sm:$0xff]
        %v2456 = vld [vmem:[#allocation3 + $0xa8] sm:$0xff]
        %v2457 = vld [vmem:[#allocation3 + $0xb0] sm:$0xff]
        %v2458 = vld [vmem:[#allocation3 + $0xb8] sm:$0xff]
        %v2459 = vld [vmem:[#allocation3 + $0xc0] sm:$0xff]
        %v2460 = vld [vmem:[#allocation3 + $0xc8] sm:$0xff]
        %v2461 = vld [vmem:[#allocation3 + $0xd0] sm:$0xff]
        %v2462 = vld [vmem:[#allocation3 + $0xd8] sm:$0xff]
        %v2463 = vld [vmem:[#allocation3 + $0xe0] sm:$0xff]
        %v2464 = vld [vmem:[#allocation3 + $0xe8] sm:$0xff]
        %v2465 = vld [vmem:[#allocation3 + $0xf0] sm:$0xff]
        %v2466 = vld [vmem:[#allocation3 + $0xf8] sm:$0xff]
        %s2467 = scalar_lea.vmem [#allocation9], 768
        %v2468 = vld [vmem:[%s2467] sm:$0xff]
        %v2469 = vld [vmem:[%s2467 + $0x8] sm:$0xff]
        %v2470 = vld [vmem:[%s2467 + $0x10] sm:$0xff]
        %v2471 = vld [vmem:[%s2467 + $0x18] sm:$0xff]
        %v2472 = vld [vmem:[%s2467 + $0x20] sm:$0xff]
        %v2473 = vld [vmem:[%s2467 + $0x28] sm:$0xff]
        %v2474 = vld [vmem:[%s2467 + $0x30] sm:$0xff]
        %v2475 = vld [vmem:[%s2467 + $0x38] sm:$0xff]
        %v2476 = vld [vmem:[%s2467 + $0x40] sm:$0xff]
        %v2477 = vld [vmem:[%s2467 + $0x48] sm:$0xff]
        %v2478 = vld [vmem:[%s2467 + $0x50] sm:$0xff]
        %v2479 = vld [vmem:[%s2467 + $0x58] sm:$0xff]
        %v2480 = vld [vmem:[%s2467 + $0x60] sm:$0xff]
        %v2481 = vld [vmem:[%s2467 + $0x68] sm:$0xff]
        %v2482 = vld [vmem:[%s2467 + $0x70] sm:$0xff]
        %v2483 = vld [vmem:[%s2467 + $0x78] sm:$0xff]
        %2484 = vmatpush.msra.mxu0 %v2483
        %2485 = vmatpush.msra.mxu0 %v2482
        %2486 = vmatpush.msra.mxu0 %v2481
        %2487 = vmatpush.msra.mxu0 %v2480
        %2488 = vmatpush.msra.mxu0 %v2479
        %2489 = vmatpush.msra.mxu0 %v2478
        %2490 = vmatpush.msra.mxu0 %v2477
        %2491 = vmatpush.msra.mxu0 %v2476
        %2492 = vmatpush.msra.mxu0 %v2475
        %2493 = vmatpush.msra.mxu0 %v2474
        %2494 = vmatpush.msra.mxu0 %v2473
        %2495 = vmatpush.msra.mxu0 %v2472
        %2496 = vmatpush.msra.mxu0 %v2471
        %2497 = vmatpush.msra.mxu0 %v2470
        %2498 = vmatpush.msra.mxu0 %v2469
        %2499 = vmatpush.msra.mxu0 %v2468
        %2500 = vmatmul.f32.gmra.mxu0 %v741
        %v2501 = vpop.f32.mrf.mxu0
        %v2502 = vadd.f32 0.0, %v2501
        %2503 = vmatmul.f32.gmra.mxu0 %v742
        %v2504 = vpop.f32.mrf.mxu0
        %v2505 = vadd.f32 0.0, %v2504
        %2506 = vmatmul.f32.gmra.mxu0 %v744
        %v2507 = vpop.f32.mrf.mxu0
        %v2508 = vadd.f32 0.0, %v2507
        %2509 = vmatmul.f32.gmra.mxu0 %v745
        %v2510 = vpop.f32.mrf.mxu0
        %v2511 = vadd.f32 0.0, %v2510
        %2512 = vmatmul.f32.gmra.mxu0 %v747
        %v2513 = vpop.f32.mrf.mxu0
        %v2514 = vadd.f32 0.0, %v2513
        %2515 = vmatmul.f32.gmra.mxu0 %v748
        %v2516 = vpop.f32.mrf.mxu0
        %v2517 = vadd.f32 0.0, %v2516
        %2518 = vmatmul.f32.gmra.mxu0 %v750
        %v2519 = vpop.f32.mrf.mxu0
        %v2520 = vadd.f32 0.0, %v2519
        %2521 = vmatmul.f32.gmra.mxu0 %v751
        %v2522 = vpop.f32.mrf.mxu0
        %v2523 = vadd.f32 0.0, %v2522
        %2524 = vmatmul.f32.gmra.mxu0 %v753
        %v2525 = vpop.f32.mrf.mxu0
        %v2526 = vadd.f32 0.0, %v2525
        %2527 = vmatmul.f32.gmra.mxu0 %v754
        %v2528 = vpop.f32.mrf.mxu0
        %v2529 = vadd.f32 0.0, %v2528
        %2530 = vmatmul.f32.gmra.mxu0 %v756
        %v2531 = vpop.f32.mrf.mxu0
        %v2532 = vadd.f32 0.0, %v2531
        %2533 = vmatmul.f32.gmra.mxu0 %v757
        %v2534 = vpop.f32.mrf.mxu0
        %v2535 = vadd.f32 0.0, %v2534
        %2536 = vmatmul.f32.gmra.mxu0 %v759
        %v2537 = vpop.f32.mrf.mxu0
        %v2538 = vadd.f32 0.0, %v2537
        %2539 = vmatmul.f32.gmra.mxu0 %v760
        %v2540 = vpop.f32.mrf.mxu0
        %v2541 = vadd.f32 0.0, %v2540
        %2542 = vmatmul.f32.gmra.mxu0 %v762
        %v2543 = vpop.f32.mrf.mxu0
        %v2544 = vadd.f32 0.0, %v2543
        %2545 = vmatmul.f32.gmra.mxu0 %v763
        %v2546 = vpop.f32.mrf.mxu0
        %v2547 = vadd.f32 0.0, %v2546
        %2548 = vmatmul.f32.gmra.mxu0 %v765
        %v2549 = vpop.f32.mrf.mxu0
        %v2550 = vadd.f32 0.0, %v2549
        %2551 = vmatmul.f32.gmra.mxu0 %v766
        %v2552 = vpop.f32.mrf.mxu0
        %v2553 = vadd.f32 0.0, %v2552
        %2554 = vmatmul.f32.gmra.mxu0 %v768
        %v2555 = vpop.f32.mrf.mxu0
        %v2556 = vadd.f32 0.0, %v2555
        %2557 = vmatmul.f32.gmra.mxu0 %v769
        %v2558 = vpop.f32.mrf.mxu0
        %v2559 = vadd.f32 0.0, %v2558
        %2560 = vmatmul.f32.gmra.mxu0 %v771
        %v2561 = vpop.f32.mrf.mxu0
        %v2562 = vadd.f32 0.0, %v2561
        %2563 = vmatmul.f32.gmra.mxu0 %v772
        %v2564 = vpop.f32.mrf.mxu0
        %v2565 = vadd.f32 0.0, %v2564
        %2566 = vmatmul.f32.gmra.mxu0 %v774
        %v2567 = vpop.f32.mrf.mxu0
        %v2568 = vadd.f32 0.0, %v2567
        %2569 = vmatmul.f32.gmra.mxu0 %v775
        %v2570 = vpop.f32.mrf.mxu0
        %v2571 = vadd.f32 0.0, %v2570
        %2572 = vmatmul.f32.gmra.mxu0 %v777
        %v2573 = vpop.f32.mrf.mxu0
        %v2574 = vadd.f32 0.0, %v2573
        %2575 = vmatmul.f32.gmra.mxu0 %v778
        %v2576 = vpop.f32.mrf.mxu0
        %v2577 = vadd.f32 0.0, %v2576
        %2578 = vmatmul.f32.gmra.mxu0 %v780
        %v2579 = vpop.f32.mrf.mxu0
        %v2580 = vadd.f32 0.0, %v2579
        %2581 = vmatmul.f32.gmra.mxu0 %v781
        %v2582 = vpop.f32.mrf.mxu0
        %v2583 = vadd.f32 0.0, %v2582
        %2584 = vmatmul.f32.gmra.mxu0 %v783
        %v2585 = vpop.f32.mrf.mxu0
        %v2586 = vadd.f32 0.0, %v2585
        %2587 = vmatmul.f32.gmra.mxu0 %v784
        %v2588 = vpop.f32.mrf.mxu0
        %v2589 = vadd.f32 0.0, %v2588
        %2590 = vmatmul.f32.gmra.mxu0 %v786
        %v2591 = vpop.f32.mrf.mxu0
        %v2592 = vadd.f32 0.0, %v2591
        %2593 = vmatmul.f32.gmra.mxu0 %v787
        %v2594 = vpop.f32.mrf.mxu0
        %v2595 = vadd.f32 0.0, %v2594
        %2596 = vdwg.mxu0
        %v2597 = vadd.f32 %v2435, %v2502
        %v2598 = vadd.f32 %v2436, %v2505
        %v2599 = vadd.f32 %v2437, %v2508
        %v2600 = vadd.f32 %v2438, %v2511
        %v2601 = vadd.f32 %v2439, %v2514
        %v2602 = vadd.f32 %v2440, %v2517
        %v2603 = vadd.f32 %v2441, %v2520
        %v2604 = vadd.f32 %v2442, %v2523
        %v2605 = vadd.f32 %v2443, %v2526
        %v2606 = vadd.f32 %v2444, %v2529
        %v2607 = vadd.f32 %v2445, %v2532
        %v2608 = vadd.f32 %v2446, %v2535
        %v2609 = vadd.f32 %v2447, %v2538
        %v2610 = vadd.f32 %v2448, %v2541
        %v2611 = vadd.f32 %v2449, %v2544
        %v2612 = vadd.f32 %v2450, %v2547
        %v2613 = vadd.f32 %v2451, %v2550
        %v2614 = vadd.f32 %v2452, %v2553
        %v2615 = vadd.f32 %v2453, %v2556
        %v2616 = vadd.f32 %v2454, %v2559
        %v2617 = vadd.f32 %v2455, %v2562
        %v2618 = vadd.f32 %v2456, %v2565
        %v2619 = vadd.f32 %v2457, %v2568
        %v2620 = vadd.f32 %v2458, %v2571
        %v2621 = vadd.f32 %v2459, %v2574
        %v2622 = vadd.f32 %v2460, %v2577
        %v2623 = vadd.f32 %v2461, %v2580
        %v2624 = vadd.f32 %v2462, %v2583
        %v2625 = vadd.f32 %v2463, %v2586
        %v2626 = vadd.f32 %v2464, %v2589
        %v2627 = vadd.f32 %v2465, %v2592
        %v2628 = vadd.f32 %v2466, %v2595
        %2629 = vst [vmem:[#allocation3] sm:$0xff] %v2597
        %2630 = vst [vmem:[#allocation3 + $0x8] sm:$0xff] %v2598
        %2631 = vst [vmem:[#allocation3 + $0x10] sm:$0xff] %v2599
        %2632 = vst [vmem:[#allocation3 + $0x18] sm:$0xff] %v2600
        %2633 = vst [vmem:[#allocation3 + $0x20] sm:$0xff] %v2601
        %2634 = vst [vmem:[#allocation3 + $0x28] sm:$0xff] %v2602
        %2635 = vst [vmem:[#allocation3 + $0x30] sm:$0xff] %v2603
        %2636 = vst [vmem:[#allocation3 + $0x38] sm:$0xff] %v2604
        %2637 = vst [vmem:[#allocation3 + $0x40] sm:$0xff] %v2605
        %2638 = vst [vmem:[#allocation3 + $0x48] sm:$0xff] %v2606
        %2639 = vst [vmem:[#allocation3 + $0x50] sm:$0xff] %v2607
        %2640 = vst [vmem:[#allocation3 + $0x58] sm:$0xff] %v2608
        %2641 = vst [vmem:[#allocation3 + $0x60] sm:$0xff] %v2609
        %2642 = vst [vmem:[#allocation3 + $0x68] sm:$0xff] %v2610
        %2643 = vst [vmem:[#allocation3 + $0x70] sm:$0xff] %v2611
        %2644 = vst [vmem:[#allocation3 + $0x78] sm:$0xff] %v2612
        %2645 = vst [vmem:[#allocation3 + $0x80] sm:$0xff] %v2613
        %2646 = vst [vmem:[#allocation3 + $0x88] sm:$0xff] %v2614
        %2647 = vst [vmem:[#allocation3 + $0x90] sm:$0xff] %v2615
        %2648 = vst [vmem:[#allocation3 + $0x98] sm:$0xff] %v2616
        %2649 = vst [vmem:[#allocation3 + $0xa0] sm:$0xff] %v2617
        %2650 = vst [vmem:[#allocation3 + $0xa8] sm:$0xff] %v2618
        %2651 = vst [vmem:[#allocation3 + $0xb0] sm:$0xff] %v2619
        %2652 = vst [vmem:[#allocation3 + $0xb8] sm:$0xff] %v2620
        %2653 = vst [vmem:[#allocation3 + $0xc0] sm:$0xff] %v2621
        %2654 = vst [vmem:[#allocation3 + $0xc8] sm:$0xff] %v2622
        %2655 = vst [vmem:[#allocation3 + $0xd0] sm:$0xff] %v2623
        %2656 = vst [vmem:[#allocation3 + $0xd8] sm:$0xff] %v2624
        %2657 = vst [vmem:[#allocation3 + $0xe0] sm:$0xff] %v2625
        %2658 = vst [vmem:[#allocation3 + $0xe8] sm:$0xff] %v2626
        %2659 = vst [vmem:[#allocation3 + $0xf0] sm:$0xff] %v2627
        %2660 = vst [vmem:[#allocation3 + $0xf8] sm:$0xff] %v2628
        %v2661 = vld [vmem:[#allocation3] sm:$0xff]
        %v2662 = vld [vmem:[#allocation3 + $0x8] sm:$0xff]
        %v2663 = vld [vmem:[#allocation3 + $0x10] sm:$0xff]
        %v2664 = vld [vmem:[#allocation3 + $0x18] sm:$0xff]
        %v2665 = vld [vmem:[#allocation3 + $0x20] sm:$0xff]
        %v2666 = vld [vmem:[#allocation3 + $0x28] sm:$0xff]
        %v2667 = vld [vmem:[#allocation3 + $0x30] sm:$0xff]
        %v2668 = vld [vmem:[#allocation3 + $0x38] sm:$0xff]
        %v2669 = vld [vmem:[#allocation3 + $0x40] sm:$0xff]
        %v2670 = vld [vmem:[#allocation3 + $0x48] sm:$0xff]
        %v2671 = vld [vmem:[#allocation3 + $0x50] sm:$0xff]
        %v2672 = vld [vmem:[#allocation3 + $0x58] sm:$0xff]
        %v2673 = vld [vmem:[#allocation3 + $0x60] sm:$0xff]
        %v2674 = vld [vmem:[#allocation3 + $0x68] sm:$0xff]
        %v2675 = vld [vmem:[#allocation3 + $0x70] sm:$0xff]
        %v2676 = vld [vmem:[#allocation3 + $0x78] sm:$0xff]
        %v2677 = vld [vmem:[#allocation3 + $0x80] sm:$0xff]
        %v2678 = vld [vmem:[#allocation3 + $0x88] sm:$0xff]
        %v2679 = vld [vmem:[#allocation3 + $0x90] sm:$0xff]
        %v2680 = vld [vmem:[#allocation3 + $0x98] sm:$0xff]
        %v2681 = vld [vmem:[#allocation3 + $0xa0] sm:$0xff]
        %v2682 = vld [vmem:[#allocation3 + $0xa8] sm:$0xff]
        %v2683 = vld [vmem:[#allocation3 + $0xb0] sm:$0xff]
        %v2684 = vld [vmem:[#allocation3 + $0xb8] sm:$0xff]
        %v2685 = vld [vmem:[#allocation3 + $0xc0] sm:$0xff]
        %v2686 = vld [vmem:[#allocation3 + $0xc8] sm:$0xff]
        %v2687 = vld [vmem:[#allocation3 + $0xd0] sm:$0xff]
        %v2688 = vld [vmem:[#allocation3 + $0xd8] sm:$0xff]
        %v2689 = vld [vmem:[#allocation3 + $0xe0] sm:$0xff]
        %v2690 = vld [vmem:[#allocation3 + $0xe8] sm:$0xff]
        %v2691 = vld [vmem:[#allocation3 + $0xf0] sm:$0xff]
        %v2692 = vld [vmem:[#allocation3 + $0xf8] sm:$0xff]
        %v2696 = vrot.slane %v786, 1
        %v2697 = vrot.slane %v787, 1
        %v2698 = vsel %vm1094, %v2696, %v2697
        %v2699 = vrot.slane %v788, 1
        %v2700 = vsel %vm1094, %v2697, %v2699
        %s2703 = scalar_lea.vmem [#allocation9], 896
        %v2704 = vld [vmem:[%s2703] sm:$0xff]
        %v2705 = vld [vmem:[%s2703 + $0x8] sm:$0xff]
        %v2706 = vld [vmem:[%s2703 + $0x10] sm:$0xff]
        %v2707 = vld [vmem:[%s2703 + $0x18] sm:$0xff]
        %v2708 = vld [vmem:[%s2703 + $0x20] sm:$0xff]
        %v2709 = vld [vmem:[%s2703 + $0x28] sm:$0xff]
        %v2710 = vld [vmem:[%s2703 + $0x30] sm:$0xff]
        %v2711 = vld [vmem:[%s2703 + $0x38] sm:$0xff]
        %v2712 = vld [vmem:[%s2703 + $0x40] sm:$0xff]
        %v2713 = vld [vmem:[%s2703 + $0x48] sm:$0xff]
        %v2714 = vld [vmem:[%s2703 + $0x50] sm:$0xff]
        %v2715 = vld [vmem:[%s2703 + $0x58] sm:$0xff]
        %v2716 = vld [vmem:[%s2703 + $0x60] sm:$0xff]
        %v2717 = vld [vmem:[%s2703 + $0x68] sm:$0xff]
        %v2718 = vld [vmem:[%s2703 + $0x70] sm:$0xff]
        %v2719 = vld [vmem:[%s2703 + $0x78] sm:$0xff]
        %2720 = vmatpush.msra.mxu0 %v2719
        %2721 = vmatpush.msra.mxu0 %v2718
        %2722 = vmatpush.msra.mxu0 %v2717
        %2723 = vmatpush.msra.mxu0 %v2716
        %2724 = vmatpush.msra.mxu0 %v2715
        %2725 = vmatpush.msra.mxu0 %v2714
        %2726 = vmatpush.msra.mxu0 %v2713
        %2727 = vmatpush.msra.mxu0 %v2712
        %2728 = vmatpush.msra.mxu0 %v2711
        %2729 = vmatpush.msra.mxu0 %v2710
        %2730 = vmatpush.msra.mxu0 %v2709
        %2731 = vmatpush.msra.mxu0 %v2708
        %2732 = vmatpush.msra.mxu0 %v2707
        %2733 = vmatpush.msra.mxu0 %v2706
        %2734 = vmatpush.msra.mxu0 %v2705
        %2735 = vmatpush.msra.mxu0 %v2704
        %2736 = vmatmul.f32.gmra.mxu0 %v1107
        %v2737 = vpop.f32.mrf.mxu0
        %v2738 = vadd.f32 0.0, %v2737
        %2739 = vmatmul.f32.gmra.mxu0 %v1109
        %v2740 = vpop.f32.mrf.mxu0
        %v2741 = vadd.f32 0.0, %v2740
        %2742 = vmatmul.f32.gmra.mxu0 %v1112
        %v2743 = vpop.f32.mrf.mxu0
        %v2744 = vadd.f32 0.0, %v2743
        %2745 = vmatmul.f32.gmra.mxu0 %v1114
        %v2746 = vpop.f32.mrf.mxu0
        %v2747 = vadd.f32 0.0, %v2746
        %2748 = vmatmul.f32.gmra.mxu0 %v1117
        %v2749 = vpop.f32.mrf.mxu0
        %v2750 = vadd.f32 0.0, %v2749
        %2751 = vmatmul.f32.gmra.mxu0 %v1119
        %v2752 = vpop.f32.mrf.mxu0
        %v2753 = vadd.f32 0.0, %v2752
        %2754 = vmatmul.f32.gmra.mxu0 %v1122
        %v2755 = vpop.f32.mrf.mxu0
        %v2756 = vadd.f32 0.0, %v2755
        %2757 = vmatmul.f32.gmra.mxu0 %v1124
        %v2758 = vpop.f32.mrf.mxu0
        %v2759 = vadd.f32 0.0, %v2758
        %2760 = vmatmul.f32.gmra.mxu0 %v1127
        %v2761 = vpop.f32.mrf.mxu0
        %v2762 = vadd.f32 0.0, %v2761
        %2763 = vmatmul.f32.gmra.mxu0 %v1129
        %v2764 = vpop.f32.mrf.mxu0
        %v2765 = vadd.f32 0.0, %v2764
        %2766 = vmatmul.f32.gmra.mxu0 %v1132
        %v2767 = vpop.f32.mrf.mxu0
        %v2768 = vadd.f32 0.0, %v2767
        %2769 = vmatmul.f32.gmra.mxu0 %v1134
        %v2770 = vpop.f32.mrf.mxu0
        %v2771 = vadd.f32 0.0, %v2770
        %2772 = vmatmul.f32.gmra.mxu0 %v1137
        %v2773 = vpop.f32.mrf.mxu0
        %v2774 = vadd.f32 0.0, %v2773
        %2775 = vmatmul.f32.gmra.mxu0 %v1139
        %v2776 = vpop.f32.mrf.mxu0
        %v2777 = vadd.f32 0.0, %v2776
        %2778 = vmatmul.f32.gmra.mxu0 %v1142
        %v2779 = vpop.f32.mrf.mxu0
        %v2780 = vadd.f32 0.0, %v2779
        %2781 = vmatmul.f32.gmra.mxu0 %v1144
        %v2782 = vpop.f32.mrf.mxu0
        %v2783 = vadd.f32 0.0, %v2782
        %2784 = vmatmul.f32.gmra.mxu0 %v1147
        %v2785 = vpop.f32.mrf.mxu0
        %v2786 = vadd.f32 0.0, %v2785
        %2787 = vmatmul.f32.gmra.mxu0 %v1149
        %v2788 = vpop.f32.mrf.mxu0
        %v2789 = vadd.f32 0.0, %v2788
        %2790 = vmatmul.f32.gmra.mxu0 %v1152
        %v2791 = vpop.f32.mrf.mxu0
        %v2792 = vadd.f32 0.0, %v2791
        %2793 = vmatmul.f32.gmra.mxu0 %v1154
        %v2794 = vpop.f32.mrf.mxu0
        %v2795 = vadd.f32 0.0, %v2794
        %2796 = vmatmul.f32.gmra.mxu0 %v1157
        %v2797 = vpop.f32.mrf.mxu0
        %v2798 = vadd.f32 0.0, %v2797
        %2799 = vmatmul.f32.gmra.mxu0 %v1159
        %v2800 = vpop.f32.mrf.mxu0
        %v2801 = vadd.f32 0.0, %v2800
        %2802 = vmatmul.f32.gmra.mxu0 %v1162
        %v2803 = vpop.f32.mrf.mxu0
        %v2804 = vadd.f32 0.0, %v2803
        %2805 = vmatmul.f32.gmra.mxu0 %v1164
        %v2806 = vpop.f32.mrf.mxu0
        %v2807 = vadd.f32 0.0, %v2806
        %2808 = vmatmul.f32.gmra.mxu0 %v1167
        %v2809 = vpop.f32.mrf.mxu0
        %v2810 = vadd.f32 0.0, %v2809
        %2811 = vmatmul.f32.gmra.mxu0 %v1169
        %v2812 = vpop.f32.mrf.mxu0
        %v2813 = vadd.f32 0.0, %v2812
        %2814 = vmatmul.f32.gmra.mxu0 %v1172
        %v2815 = vpop.f32.mrf.mxu0
        %v2816 = vadd.f32 0.0, %v2815
        %2817 = vmatmul.f32.gmra.mxu0 %v1174
        %v2818 = vpop.f32.mrf.mxu0
        %v2819 = vadd.f32 0.0, %v2818
        %2820 = vmatmul.f32.gmra.mxu0 %v2003
        %v2821 = vpop.f32.mrf.mxu0
        %v2822 = vadd.f32 0.0, %v2821
        %2823 = vmatmul.f32.gmra.mxu0 %v2005
        %v2824 = vpop.f32.mrf.mxu0
        %v2825 = vadd.f32 0.0, %v2824
        %2826 = vmatmul.f32.gmra.mxu0 %v2698
        %v2827 = vpop.f32.mrf.mxu0
        %v2828 = vadd.f32 0.0, %v2827
        %2829 = vmatmul.f32.gmra.mxu0 %v2700
        %v2830 = vpop.f32.mrf.mxu0
        %v2831 = vadd.f32 0.0, %v2830
        %2832 = vdwg.mxu0
        %v2833 = vadd.f32 %v2661, %v2738
        %v2834 = vadd.f32 %v2662, %v2741
        %v2835 = vadd.f32 %v2663, %v2744
        %v2836 = vadd.f32 %v2664, %v2747
        %v2837 = vadd.f32 %v2665, %v2750
        %v2838 = vadd.f32 %v2666, %v2753
        %v2839 = vadd.f32 %v2667, %v2756
        %v2840 = vadd.f32 %v2668, %v2759
        %v2841 = vadd.f32 %v2669, %v2762
        %v2842 = vadd.f32 %v2670, %v2765
        %v2843 = vadd.f32 %v2671, %v2768
        %v2844 = vadd.f32 %v2672, %v2771
        %v2845 = vadd.f32 %v2673, %v2774
        %v2846 = vadd.f32 %v2674, %v2777
        %v2847 = vadd.f32 %v2675, %v2780
        %v2848 = vadd.f32 %v2676, %v2783
        %v2849 = vadd.f32 %v2677, %v2786
        %v2850 = vadd.f32 %v2678, %v2789
        %v2851 = vadd.f32 %v2679, %v2792
        %v2852 = vadd.f32 %v2680, %v2795
        %v2853 = vadd.f32 %v2681, %v2798
        %v2854 = vadd.f32 %v2682, %v2801
        %v2855 = vadd.f32 %v2683, %v2804
        %v2856 = vadd.f32 %v2684, %v2807
        %v2857 = vadd.f32 %v2685, %v2810
        %v2858 = vadd.f32 %v2686, %v2813
        %v2859 = vadd.f32 %v2687, %v2816
        %v2860 = vadd.f32 %v2688, %v2819
        %v2861 = vadd.f32 %v2689, %v2822
        %v2862 = vadd.f32 %v2690, %v2825
        %v2863 = vadd.f32 %v2691, %v2828
        %v2864 = vadd.f32 %v2692, %v2831
        %2865 = vst [vmem:[#allocation3] sm:$0xff] %v2833
        %2866 = vst [vmem:[#allocation3 + $0x8] sm:$0xff] %v2834
        %2867 = vst [vmem:[#allocation3 + $0x10] sm:$0xff] %v2835
        %2868 = vst [vmem:[#allocation3 + $0x18] sm:$0xff] %v2836
        %2869 = vst [vmem:[#allocation3 + $0x20] sm:$0xff] %v2837
        %2870 = vst [vmem:[#allocation3 + $0x28] sm:$0xff] %v2838
        %2871 = vst [vmem:[#allocation3 + $0x30] sm:$0xff] %v2839
        %2872 = vst [vmem:[#allocation3 + $0x38] sm:$0xff] %v2840
        %2873 = vst [vmem:[#allocation3 + $0x40] sm:$0xff] %v2841
        %2874 = vst [vmem:[#allocation3 + $0x48] sm:$0xff] %v2842
        %2875 = vst [vmem:[#allocation3 + $0x50] sm:$0xff] %v2843
        %2876 = vst [vmem:[#allocation3 + $0x58] sm:$0xff] %v2844
        %2877 = vst [vmem:[#allocation3 + $0x60] sm:$0xff] %v2845
        %2878 = vst [vmem:[#allocation3 + $0x68] sm:$0xff] %v2846
        %2879 = vst [vmem:[#allocation3 + $0x70] sm:$0xff] %v2847
        %2880 = vst [vmem:[#allocation3 + $0x78] sm:$0xff] %v2848
        %2881 = vst [vmem:[#allocation3 + $0x80] sm:$0xff] %v2849
        %2882 = vst [vmem:[#allocation3 + $0x88] sm:$0xff] %v2850
        %2883 = vst [vmem:[#allocation3 + $0x90] sm:$0xff] %v2851
        %2884 = vst [vmem:[#allocation3 + $0x98] sm:$0xff] %v2852
        %2885 = vst [vmem:[#allocation3 + $0xa0] sm:$0xff] %v2853
        %2886 = vst [vmem:[#allocation3 + $0xa8] sm:$0xff] %v2854
        %2887 = vst [vmem:[#allocation3 + $0xb0] sm:$0xff] %v2855
        %2888 = vst [vmem:[#allocation3 + $0xb8] sm:$0xff] %v2856
        %2889 = vst [vmem:[#allocation3 + $0xc0] sm:$0xff] %v2857
        %2890 = vst [vmem:[#allocation3 + $0xc8] sm:$0xff] %v2858
        %2891 = vst [vmem:[#allocation3 + $0xd0] sm:$0xff] %v2859
        %2892 = vst [vmem:[#allocation3 + $0xd8] sm:$0xff] %v2860
        %2893 = vst [vmem:[#allocation3 + $0xe0] sm:$0xff] %v2861
        %2894 = vst [vmem:[#allocation3 + $0xe8] sm:$0xff] %v2862
        %2895 = vst [vmem:[#allocation3 + $0xf0] sm:$0xff] %v2863
        %2896 = vst [vmem:[#allocation3 + $0xf8] sm:$0xff] %v2864
        %v2897 = vld [vmem:[#allocation3] sm:$0xff]
        %v2898 = vld [vmem:[#allocation3 + $0x8] sm:$0xff]
        %v2899 = vld [vmem:[#allocation3 + $0x10] sm:$0xff]
        %v2900 = vld [vmem:[#allocation3 + $0x18] sm:$0xff]
        %v2901 = vld [vmem:[#allocation3 + $0x20] sm:$0xff]
        %v2902 = vld [vmem:[#allocation3 + $0x28] sm:$0xff]
        %v2903 = vld [vmem:[#allocation3 + $0x30] sm:$0xff]
        %v2904 = vld [vmem:[#allocation3 + $0x38] sm:$0xff]
        %v2905 = vld [vmem:[#allocation3 + $0x40] sm:$0xff]
        %v2906 = vld [vmem:[#allocation3 + $0x48] sm:$0xff]
        %v2907 = vld [vmem:[#allocation3 + $0x50] sm:$0xff]
        %v2908 = vld [vmem:[#allocation3 + $0x58] sm:$0xff]
        %v2909 = vld [vmem:[#allocation3 + $0x60] sm:$0xff]
        %v2910 = vld [vmem:[#allocation3 + $0x68] sm:$0xff]
        %v2911 = vld [vmem:[#allocation3 + $0x70] sm:$0xff]
        %v2912 = vld [vmem:[#allocation3 + $0x78] sm:$0xff]
        %v2913 = vld [vmem:[#allocation3 + $0x80] sm:$0xff]
        %v2914 = vld [vmem:[#allocation3 + $0x88] sm:$0xff]
        %v2915 = vld [vmem:[#allocation3 + $0x90] sm:$0xff]
        %v2916 = vld [vmem:[#allocation3 + $0x98] sm:$0xff]
        %v2917 = vld [vmem:[#allocation3 + $0xa0] sm:$0xff]
        %v2918 = vld [vmem:[#allocation3 + $0xa8] sm:$0xff]
        %v2919 = vld [vmem:[#allocation3 + $0xb0] sm:$0xff]
        %v2920 = vld [vmem:[#allocation3 + $0xb8] sm:$0xff]
        %v2921 = vld [vmem:[#allocation3 + $0xc0] sm:$0xff]
        %v2922 = vld [vmem:[#allocation3 + $0xc8] sm:$0xff]
        %v2923 = vld [vmem:[#allocation3 + $0xd0] sm:$0xff]
        %v2924 = vld [vmem:[#allocation3 + $0xd8] sm:$0xff]
        %v2925 = vld [vmem:[#allocation3 + $0xe0] sm:$0xff]
        %v2926 = vld [vmem:[#allocation3 + $0xe8] sm:$0xff]
        %v2927 = vld [vmem:[#allocation3 + $0xf0] sm:$0xff]
        %v2928 = vld [vmem:[#allocation3 + $0xf8] sm:$0xff]
        %v2929 = vrot.slane %v786, 2
        %v2930 = vrot.slane %v787, 2
        %v2931 = vsel %vm1433, %v2929, %v2930
        %v2932 = vrot.slane %v788, 2
        %v2933 = vsel %vm1433, %v2930, %v2932
        %s2936 = scalar_lea.vmem [#allocation9], 1024
        %v2937 = vld [vmem:[%s2936] sm:$0xff]
        %v2938 = vld [vmem:[%s2936 + $0x8] sm:$0xff]
        %v2939 = vld [vmem:[%s2936 + $0x10] sm:$0xff]
        %v2940 = vld [vmem:[%s2936 + $0x18] sm:$0xff]
        %v2941 = vld [vmem:[%s2936 + $0x20] sm:$0xff]
        %v2942 = vld [vmem:[%s2936 + $0x28] sm:$0xff]
        %v2943 = vld [vmem:[%s2936 + $0x30] sm:$0xff]
        %v2944 = vld [vmem:[%s2936 + $0x38] sm:$0xff]
        %v2945 = vld [vmem:[%s2936 + $0x40] sm:$0xff]
        %v2946 = vld [vmem:[%s2936 + $0x48] sm:$0xff]
        %v2947 = vld [vmem:[%s2936 + $0x50] sm:$0xff]
        %v2948 = vld [vmem:[%s2936 + $0x58] sm:$0xff]
        %v2949 = vld [vmem:[%s2936 + $0x60] sm:$0xff]
        %v2950 = vld [vmem:[%s2936 + $0x68] sm:$0xff]
        %v2951 = vld [vmem:[%s2936 + $0x70] sm:$0xff]
        %v2952 = vld [vmem:[%s2936 + $0x78] sm:$0xff]
        %2953 = vmatpush.msra.mxu0 %v2952
        %2954 = vmatpush.msra.mxu0 %v2951
        %2955 = vmatpush.msra.mxu0 %v2950
        %2956 = vmatpush.msra.mxu0 %v2949
        %2957 = vmatpush.msra.mxu0 %v2948
        %2958 = vmatpush.msra.mxu0 %v2947
        %2959 = vmatpush.msra.mxu0 %v2946
        %2960 = vmatpush.msra.mxu0 %v2945
        %2961 = vmatpush.msra.mxu0 %v2944
        %2962 = vmatpush.msra.mxu0 %v2943
        %2963 = vmatpush.msra.mxu0 %v2942
        %2964 = vmatpush.msra.mxu0 %v2941
        %2965 = vmatpush.msra.mxu0 %v2940
        %2966 = vmatpush.msra.mxu0 %v2939
        %2967 = vmatpush.msra.mxu0 %v2938
        %2968 = vmatpush.msra.mxu0 %v2937
        %2969 = vmatmul.f32.gmra.mxu0 %v1446
        %v2970 = vpop.f32.mrf.mxu0
        %v2971 = vadd.f32 0.0, %v2970
        %2972 = vmatmul.f32.gmra.mxu0 %v1448
        %v2973 = vpop.f32.mrf.mxu0
        %v2974 = vadd.f32 0.0, %v2973
        %2975 = vmatmul.f32.gmra.mxu0 %v1451
        %v2976 = vpop.f32.mrf.mxu0
        %v2977 = vadd.f32 0.0, %v2976
        %2978 = vmatmul.f32.gmra.mxu0 %v1453
        %v2979 = vpop.f32.mrf.mxu0
        %v2980 = vadd.f32 0.0, %v2979
        %2981 = vmatmul.f32.gmra.mxu0 %v1456
        %v2982 = vpop.f32.mrf.mxu0
        %v2983 = vadd.f32 0.0, %v2982
        %2984 = vmatmul.f32.gmra.mxu0 %v1458
        %v2985 = vpop.f32.mrf.mxu0
        %v2986 = vadd.f32 0.0, %v2985
        %2987 = vmatmul.f32.gmra.mxu0 %v1461
        %v2988 = vpop.f32.mrf.mxu0
        %v2989 = vadd.f32 0.0, %v2988
        %2990 = vmatmul.f32.gmra.mxu0 %v1463
        %v2991 = vpop.f32.mrf.mxu0
        %v2992 = vadd.f32 0.0, %v2991
        %2993 = vmatmul.f32.gmra.mxu0 %v1466
        %v2994 = vpop.f32.mrf.mxu0
        %v2995 = vadd.f32 0.0, %v2994
        %2996 = vmatmul.f32.gmra.mxu0 %v1468
        %v2997 = vpop.f32.mrf.mxu0
        %v2998 = vadd.f32 0.0, %v2997
        %2999 = vmatmul.f32.gmra.mxu0 %v1471
        %v3000 = vpop.f32.mrf.mxu0
        %v3001 = vadd.f32 0.0, %v3000
        %3002 = vmatmul.f32.gmra.mxu0 %v1473
        %v3003 = vpop.f32.mrf.mxu0
        %v3004 = vadd.f32 0.0, %v3003
        %3005 = vmatmul.f32.gmra.mxu0 %v1476
        %v3006 = vpop.f32.mrf.mxu0
        %v3007 = vadd.f32 0.0, %v3006
        %3008 = vmatmul.f32.gmra.mxu0 %v1478
        %v3009 = vpop.f32.mrf.mxu0
        %v3010 = vadd.f32 0.0, %v3009
        %3011 = vmatmul.f32.gmra.mxu0 %v1481
        %v3012 = vpop.f32.mrf.mxu0
        %v3013 = vadd.f32 0.0, %v3012
        %3014 = vmatmul.f32.gmra.mxu0 %v1483
        %v3015 = vpop.f32.mrf.mxu0
        %v3016 = vadd.f32 0.0, %v3015
        %3017 = vmatmul.f32.gmra.mxu0 %v1486
        %v3018 = vpop.f32.mrf.mxu0
        %v3019 = vadd.f32 0.0, %v3018
        %3020 = vmatmul.f32.gmra.mxu0 %v1488
        %v3021 = vpop.f32.mrf.mxu0
        %v3022 = vadd.f32 0.0, %v3021
        %3023 = vmatmul.f32.gmra.mxu0 %v1491
        %v3024 = vpop.f32.mrf.mxu0
        %v3025 = vadd.f32 0.0, %v3024
        %3026 = vmatmul.f32.gmra.mxu0 %v1493
        %v3027 = vpop.f32.mrf.mxu0
        %v3028 = vadd.f32 0.0, %v3027
        %3029 = vmatmul.f32.gmra.mxu0 %v1496
        %v3030 = vpop.f32.mrf.mxu0
        %v3031 = vadd.f32 0.0, %v3030
        %3032 = vmatmul.f32.gmra.mxu0 %v1498
        %v3033 = vpop.f32.mrf.mxu0
        %v3034 = vadd.f32 0.0, %v3033
        %3035 = vmatmul.f32.gmra.mxu0 %v1501
        %v3036 = vpop.f32.mrf.mxu0
        %v3037 = vadd.f32 0.0, %v3036
        %3038 = vmatmul.f32.gmra.mxu0 %v1503
        %v3039 = vpop.f32.mrf.mxu0
        %v3040 = vadd.f32 0.0, %v3039
        %3041 = vmatmul.f32.gmra.mxu0 %v1506
        %v3042 = vpop.f32.mrf.mxu0
        %v3043 = vadd.f32 0.0, %v3042
        %3044 = vmatmul.f32.gmra.mxu0 %v1508
        %v3045 = vpop.f32.mrf.mxu0
        %v3046 = vadd.f32 0.0, %v3045
        %3047 = vmatmul.f32.gmra.mxu0 %v1511
        %v3048 = vpop.f32.mrf.mxu0
        %v3049 = vadd.f32 0.0, %v3048
        %3050 = vmatmul.f32.gmra.mxu0 %v1513
        %v3051 = vpop.f32.mrf.mxu0
        %v3052 = vadd.f32 0.0, %v3051
        %3053 = vmatmul.f32.gmra.mxu0 %v2236
        %v3054 = vpop.f32.mrf.mxu0
        %v3055 = vadd.f32 0.0, %v3054
        %3056 = vmatmul.f32.gmra.mxu0 %v2238
        %v3057 = vpop.f32.mrf.mxu0
        %v3058 = vadd.f32 0.0, %v3057
        %3059 = vmatmul.f32.gmra.mxu0 %v2931
        %v3060 = vpop.f32.mrf.mxu0
        %v3061 = vadd.f32 0.0, %v3060
        %3062 = vmatmul.f32.gmra.mxu0 %v2933
        %v3063 = vpop.f32.mrf.mxu0
        %v3064 = vadd.f32 0.0, %v3063
        %3065 = vdwg.mxu0
        %v3066 = vadd.f32 %v2897, %v2971
        %v3067 = vadd.f32 %v2898, %v2974
        %v3068 = vadd.f32 %v2899, %v2977
        %v3069 = vadd.f32 %v2900, %v2980
        %v3070 = vadd.f32 %v2901, %v2983
        %v3071 = vadd.f32 %v2902, %v2986
        %v3072 = vadd.f32 %v2903, %v2989
        %v3073 = vadd.f32 %v2904, %v2992
        %v3074 = vadd.f32 %v2905, %v2995
        %v3075 = vadd.f32 %v2906, %v2998
        %v3076 = vadd.f32 %v2907, %v3001
        %v3077 = vadd.f32 %v2908, %v3004
        %v3078 = vadd.f32 %v2909, %v3007
        %v3079 = vadd.f32 %v2910, %v3010
        %v3080 = vadd.f32 %v2911, %v3013
        %v3081 = vadd.f32 %v2912, %v3016
        %v3082 = vadd.f32 %v2913, %v3019
        %v3083 = vadd.f32 %v2914, %v3022
        %v3084 = vadd.f32 %v2915, %v3025
        %v3085 = vadd.f32 %v2916, %v3028
        %v3086 = vadd.f32 %v2917, %v3031
        %v3087 = vadd.f32 %v2918, %v3034
        %v3088 = vadd.f32 %v2919, %v3037
        %v3089 = vadd.f32 %v2920, %v3040
        %v3090 = vadd.f32 %v2921, %v3043
        %v3091 = vadd.f32 %v2922, %v3046
        %v3092 = vadd.f32 %v2923, %v3049
        %v3093 = vadd.f32 %v2924, %v3052
        %v3094 = vadd.f32 %v2925, %v3055
        %v3095 = vadd.f32 %v2926, %v3058
        %v3096 = vadd.f32 %v2927, %v3061
        %v3097 = vadd.f32 %v2928, %v3064
        %3098 = vst [vmem:[#allocation3] sm:$0xff] %v3066
        %3099 = vst [vmem:[#allocation3 + $0x8] sm:$0xff] %v3067
        %3100 = vst [vmem:[#allocation3 + $0x10] sm:$0xff] %v3068
        %3101 = vst [vmem:[#allocation3 + $0x18] sm:$0xff] %v3069
        %3102 = vst [vmem:[#allocation3 + $0x20] sm:$0xff] %v3070
        %3103 = vst [vmem:[#allocation3 + $0x28] sm:$0xff] %v3071
        %3104 = vst [vmem:[#allocation3 + $0x30] sm:$0xff] %v3072
        %3105 = vst [vmem:[#allocation3 + $0x38] sm:$0xff] %v3073
        %3106 = vst [vmem:[#allocation3 + $0x40] sm:$0xff] %v3074
        %3107 = vst [vmem:[#allocation3 + $0x48] sm:$0xff] %v3075
        %3108 = vst [vmem:[#allocation3 + $0x50] sm:$0xff] %v3076
        %3109 = vst [vmem:[#allocation3 + $0x58] sm:$0xff] %v3077
        %3110 = vst [vmem:[#allocation3 + $0x60] sm:$0xff] %v3078
        %3111 = vst [vmem:[#allocation3 + $0x68] sm:$0xff] %v3079
        %3112 = vst [vmem:[#allocation3 + $0x70] sm:$0xff] %v3080
        %3113 = vst [vmem:[#allocation3 + $0x78] sm:$0xff] %v3081
        %3114 = vst [vmem:[#allocation3 + $0x80] sm:$0xff] %v3082
        %3115 = vst [vmem:[#allocation3 + $0x88] sm:$0xff] %v3083
        %3116 = vst [vmem:[#allocation3 + $0x90] sm:$0xff] %v3084
        %3117 = vst [vmem:[#allocation3 + $0x98] sm:$0xff] %v3085
        %3118 = vst [vmem:[#allocation3 + $0xa0] sm:$0xff] %v3086
        %3119 = vst [vmem:[#allocation3 + $0xa8] sm:$0xff] %v3087
        %3120 = vst [vmem:[#allocation3 + $0xb0] sm:$0xff] %v3088
        %3121 = vst [vmem:[#allocation3 + $0xb8] sm:$0xff] %v3089
        %3122 = vst [vmem:[#allocation3 + $0xc0] sm:$0xff] %v3090
        %3123 = vst [vmem:[#allocation3 + $0xc8] sm:$0xff] %v3091
        %3124 = vst [vmem:[#allocation3 + $0xd0] sm:$0xff] %v3092
        %3125 = vst [vmem:[#allocation3 + $0xd8] sm:$0xff] %v3093
        %3126 = vst [vmem:[#allocation3 + $0xe0] sm:$0xff] %v3094
        %3127 = vst [vmem:[#allocation3 + $0xe8] sm:$0xff] %v3095
        %3128 = vst [vmem:[#allocation3 + $0xf0] sm:$0xff] %v3096
        %3129 = vst [vmem:[#allocation3 + $0xf8] sm:$0xff] %v3097
        %v3130 = vld [vmem:[#allocation3] sm:$0xff]
        %v3131 = vld [vmem:[#allocation3 + $0x8] sm:$0xff]
        %v3132 = vld [vmem:[#allocation3 + $0x10] sm:$0xff]
        %v3133 = vld [vmem:[#allocation3 + $0x18] sm:$0xff]
        %v3134 = vld [vmem:[#allocation3 + $0x20] sm:$0xff]
        %v3135 = vld [vmem:[#allocation3 + $0x28] sm:$0xff]
        %v3136 = vld [vmem:[#allocation3 + $0x30] sm:$0xff]
        %v3137 = vld [vmem:[#allocation3 + $0x38] sm:$0xff]
        %v3138 = vld [vmem:[#allocation3 + $0x40] sm:$0xff]
        %v3139 = vld [vmem:[#allocation3 + $0x48] sm:$0xff]
        %v3140 = vld [vmem:[#allocation3 + $0x50] sm:$0xff]
        %v3141 = vld [vmem:[#allocation3 + $0x58] sm:$0xff]
        %v3142 = vld [vmem:[#allocation3 + $0x60] sm:$0xff]
        %v3143 = vld [vmem:[#allocation3 + $0x68] sm:$0xff]
        %v3144 = vld [vmem:[#allocation3 + $0x70] sm:$0xff]
        %v3145 = vld [vmem:[#allocation3 + $0x78] sm:$0xff]
        %v3146 = vld [vmem:[#allocation3 + $0x80] sm:$0xff]
        %v3147 = vld [vmem:[#allocation3 + $0x88] sm:$0xff]
        %v3148 = vld [vmem:[#allocation3 + $0x90] sm:$0xff]
        %v3149 = vld [vmem:[#allocation3 + $0x98] sm:$0xff]
        %v3150 = vld [vmem:[#allocation3 + $0xa0] sm:$0xff]
        %v3151 = vld [vmem:[#allocation3 + $0xa8] sm:$0xff]
        %v3152 = vld [vmem:[#allocation3 + $0xb0] sm:$0xff]
        %v3153 = vld [vmem:[#allocation3 + $0xb8] sm:$0xff]
        %v3154 = vld [vmem:[#allocation3 + $0xc0] sm:$0xff]
        %v3155 = vld [vmem:[#allocation3 + $0xc8] sm:$0xff]
        %v3156 = vld [vmem:[#allocation3 + $0xd0] sm:$0xff]
        %v3157 = vld [vmem:[#allocation3 + $0xd8] sm:$0xff]
        %v3158 = vld [vmem:[#allocation3 + $0xe0] sm:$0xff]
        %v3159 = vld [vmem:[#allocation3 + $0xe8] sm:$0xff]
        %v3160 = vld [vmem:[#allocation3 + $0xf0] sm:$0xff]
        %v3161 = vld [vmem:[#allocation3 + $0xf8] sm:$0xff]
        %v3162 = vld [vmem:[%s4] sm:$0x1]
        %v3164 = vperm.slane %v3162, 0
        %v3166 = vadd.f32 %v3130, %v3164
        %v3167 = vadd.f32 %v3131, %v3164
        %v3168 = vadd.f32 %v3132, %v3164
        %v3169 = vadd.f32 %v3133, %v3164
        %v3170 = vadd.f32 %v3134, %v3164
        %v3171 = vadd.f32 %v3135, %v3164
        %v3172 = vadd.f32 %v3136, %v3164
        %v3173 = vadd.f32 %v3137, %v3164
        %v3174 = vadd.f32 %v3138, %v3164
        %v3175 = vadd.f32 %v3139, %v3164
        %v3176 = vadd.f32 %v3140, %v3164
        %v3177 = vadd.f32 %v3141, %v3164
        %v3178 = vadd.f32 %v3142, %v3164
        %v3179 = vadd.f32 %v3143, %v3164
        %v3180 = vadd.f32 %v3144, %v3164
        %v3181 = vadd.f32 %v3145, %v3164
        %v3182 = vadd.f32 %v3146, %v3164
        %v3183 = vadd.f32 %v3147, %v3164
        %v3184 = vadd.f32 %v3148, %v3164
        %v3185 = vadd.f32 %v3149, %v3164
        %v3186 = vadd.f32 %v3150, %v3164
        %v3187 = vadd.f32 %v3151, %v3164
        %v3188 = vadd.f32 %v3152, %v3164
        %v3189 = vadd.f32 %v3153, %v3164
        %v3190 = vadd.f32 %v3154, %v3164
        %v3191 = vadd.f32 %v3155, %v3164
        %v3192 = vadd.f32 %v3156, %v3164
        %v3193 = vadd.f32 %v3157, %v3164
        %v3194 = vadd.f32 %v3158, %v3164
        %v3195 = vadd.f32 %v3159, %v3164
        %v3196 = vadd.f32 %v3160, %v3164
        %v3197 = vadd.f32 %v3161, %v3164
        %v3198 = vmax.f32 %v3166, 0.0
        %v3199 = vmax.f32 %v3167, 0.0
        %v3200 = vmax.f32 %v3168, 0.0
        %v3201 = vmax.f32 %v3169, 0.0
        %v3202 = vmax.f32 %v3170, 0.0
        %v3203 = vmax.f32 %v3171, 0.0
        %v3204 = vmax.f32 %v3172, 0.0
        %v3205 = vmax.f32 %v3173, 0.0
        %v3206 = vmax.f32 %v3174, 0.0
        %v3207 = vmax.f32 %v3175, 0.0
        %v3208 = vmax.f32 %v3176, 0.0
        %v3209 = vmax.f32 %v3177, 0.0
        %v3210 = vmax.f32 %v3178, 0.0
        %v3211 = vmax.f32 %v3179, 0.0
        %v3212 = vmax.f32 %v3180, 0.0
        %v3213 = vmax.f32 %v3181, 0.0
        %v3214 = vmax.f32 %v3182, 0.0
        %v3215 = vmax.f32 %v3183, 0.0
        %v3216 = vmax.f32 %v3184, 0.0
        %v3217 = vmax.f32 %v3185, 0.0
        %v3218 = vmax.f32 %v3186, 0.0
        %v3219 = vmax.f32 %v3187, 0.0
        %v3220 = vmax.f32 %v3188, 0.0
        %v3221 = vmax.f32 %v3189, 0.0
        %v3222 = vmax.f32 %v3190, 0.0
        %v3223 = vmax.f32 %v3191, 0.0
        %v3224 = vmax.f32 %v3192, 0.0
        %v3225 = vmax.f32 %v3193, 0.0
        %v3226 = vmax.f32 %v3194, 0.0
        %v3227 = vmax.f32 %v3195, 0.0
        %v3228 = vmax.f32 %v3196, 0.0
        %v3229 = vmax.f32 %v3197, 0.0
        %v3230 = vld [vmem:[#allocation10] sm:$0xff]
        %v3231 = vld [vmem:[#allocation10 + $0x8] sm:$0xff]
        %v3232 = vld [vmem:[#allocation10 + $0x10] sm:$0xff]
        %v3233 = vld [vmem:[#allocation10 + $0x18] sm:$0xff]
        %v3234 = vld [vmem:[#allocation10 + $0x20] sm:$0xff]
        %v3235 = vld [vmem:[#allocation10 + $0x28] sm:$0xff]
        %v3236 = vld [vmem:[#allocation10 + $0x30] sm:$0xff]
        %v3237 = vld [vmem:[#allocation10 + $0x38] sm:$0xff]
        %v3238 = vld [vmem:[#allocation10 + $0x40] sm:$0xff]
        %v3239 = vld [vmem:[#allocation10 + $0x48] sm:$0xff]
        %v3240 = vld [vmem:[#allocation10 + $0x50] sm:$0xff]
        %v3241 = vld [vmem:[#allocation10 + $0x58] sm:$0xff]
        %v3242 = vld [vmem:[#allocation10 + $0x60] sm:$0xff]
        %v3243 = vld [vmem:[#allocation10 + $0x68] sm:$0xff]
        %v3244 = vld [vmem:[#allocation10 + $0x70] sm:$0xff]
        %v3245 = vld [vmem:[#allocation10 + $0x78] sm:$0xff]
        %v3246 = vld [vmem:[%s6] sm:$0x1]
        %v3248 = vperm.slane %v3246, 0
        %3250 = vmatpush.msra.mxu0 %v3245
        %3251 = vmatpush.msra.mxu0 %v3244
        %3252 = vmatpush.msra.mxu0 %v3243
        %3253 = vmatpush.msra.mxu0 %v3242
        %3254 = vmatpush.msra.mxu0 %v3241
        %3255 = vmatpush.msra.mxu0 %v3240
        %3256 = vmatpush.msra.mxu0 %v3239
        %3257 = vmatpush.msra.mxu0 %v3238
        %3258 = vmatpush.msra.mxu0 %v3237
        %3259 = vmatpush.msra.mxu0 %v3236
        %3260 = vmatpush.msra.mxu0 %v3235
        %3261 = vmatpush.msra.mxu0 %v3234
        %3262 = vmatpush.msra.mxu0 %v3233
        %3263 = vmatpush.msra.mxu0 %v3232
        %3264 = vmatpush.msra.mxu0 %v3231
        %3265 = vmatpush.msra.mxu0 %v3230
        %3266 = vmatmul.f32.gmra.mxu0 %v3198
        %v3267 = vpop.f32.mrf.mxu0
        %v3268 = vadd.f32 %v3248, %v3267
        %3269 = vmatmul.f32.gmra.mxu0 %v3199
        %v3270 = vpop.f32.mrf.mxu0
        %v3271 = vadd.f32 %v3248, %v3270
        %3272 = vmatmul.f32.gmra.mxu0 %v3200
        %v3273 = vpop.f32.mrf.mxu0
        %v3274 = vadd.f32 %v3248, %v3273
        %3275 = vmatmul.f32.gmra.mxu0 %v3201
        %v3276 = vpop.f32.mrf.mxu0
        %v3277 = vadd.f32 %v3248, %v3276
        %3278 = vmatmul.f32.gmra.mxu0 %v3202
        %v3279 = vpop.f32.mrf.mxu0
        %v3280 = vadd.f32 %v3248, %v3279
        %3281 = vmatmul.f32.gmra.mxu0 %v3203
        %v3282 = vpop.f32.mrf.mxu0
        %v3283 = vadd.f32 %v3248, %v3282
        %3284 = vmatmul.f32.gmra.mxu0 %v3204
        %v3285 = vpop.f32.mrf.mxu0
        %v3286 = vadd.f32 %v3248, %v3285
        %3287 = vmatmul.f32.gmra.mxu0 %v3205
        %v3288 = vpop.f32.mrf.mxu0
        %v3289 = vadd.f32 %v3248, %v3288
        %3290 = vmatmul.f32.gmra.mxu0 %v3206
        %v3291 = vpop.f32.mrf.mxu0
        %v3292 = vadd.f32 %v3248, %v3291
        %3293 = vmatmul.f32.gmra.mxu0 %v3207
        %v3294 = vpop.f32.mrf.mxu0
        %v3295 = vadd.f32 %v3248, %v3294
        %3296 = vmatmul.f32.gmra.mxu0 %v3208
        %v3297 = vpop.f32.mrf.mxu0
        %v3298 = vadd.f32 %v3248, %v3297
        %3299 = vmatmul.f32.gmra.mxu0 %v3209
        %v3300 = vpop.f32.mrf.mxu0
        %v3301 = vadd.f32 %v3248, %v3300
        %3302 = vmatmul.f32.gmra.mxu0 %v3210
        %v3303 = vpop.f32.mrf.mxu0
        %v3304 = vadd.f32 %v3248, %v3303
        %3305 = vmatmul.f32.gmra.mxu0 %v3211
        %v3306 = vpop.f32.mrf.mxu0
        %v3307 = vadd.f32 %v3248, %v3306
        %3308 = vmatmul.f32.gmra.mxu0 %v3212
        %v3309 = vpop.f32.mrf.mxu0
        %v3310 = vadd.f32 %v3248, %v3309
        %3311 = vmatmul.f32.gmra.mxu0 %v3213
        %v3312 = vpop.f32.mrf.mxu0
        %v3313 = vadd.f32 %v3248, %v3312
        %3314 = vmatmul.f32.gmra.mxu0 %v3214
        %v3315 = vpop.f32.mrf.mxu0
        %v3316 = vadd.f32 %v3248, %v3315
        %3317 = vmatmul.f32.gmra.mxu0 %v3215
        %v3318 = vpop.f32.mrf.mxu0
        %v3319 = vadd.f32 %v3248, %v3318
        %3320 = vmatmul.f32.gmra.mxu0 %v3216
        %v3321 = vpop.f32.mrf.mxu0
        %v3322 = vadd.f32 %v3248, %v3321
        %3323 = vmatmul.f32.gmra.mxu0 %v3217
        %v3324 = vpop.f32.mrf.mxu0
        %v3325 = vadd.f32 %v3248, %v3324
        %3326 = vmatmul.f32.gmra.mxu0 %v3218
        %v3327 = vpop.f32.mrf.mxu0
        %v3328 = vadd.f32 %v3248, %v3327
        %3329 = vmatmul.f32.gmra.mxu0 %v3219
        %v3330 = vpop.f32.mrf.mxu0
        %v3331 = vadd.f32 %v3248, %v3330
        %3332 = vmatmul.f32.gmra.mxu0 %v3220
        %v3333 = vpop.f32.mrf.mxu0
        %v3334 = vadd.f32 %v3248, %v3333
        %3335 = vmatmul.f32.gmra.mxu0 %v3221
        %v3336 = vpop.f32.mrf.mxu0
        %v3337 = vadd.f32 %v3248, %v3336
        %3338 = vmatmul.f32.gmra.mxu0 %v3222
        %v3339 = vpop.f32.mrf.mxu0
        %v3340 = vadd.f32 %v3248, %v3339
        %3341 = vmatmul.f32.gmra.mxu0 %v3223
        %v3342 = vpop.f32.mrf.mxu0
        %v3343 = vadd.f32 %v3248, %v3342
        %3344 = vmatmul.f32.gmra.mxu0 %v3224
        %v3345 = vpop.f32.mrf.mxu0
        %v3346 = vadd.f32 %v3248, %v3345
        %3347 = vmatmul.f32.gmra.mxu0 %v3225
        %v3348 = vpop.f32.mrf.mxu0
        %v3349 = vadd.f32 %v3248, %v3348
        %3350 = vmatmul.f32.gmra.mxu0 %v3226
        %v3351 = vpop.f32.mrf.mxu0
        %v3352 = vadd.f32 %v3248, %v3351
        %3353 = vmatmul.f32.gmra.mxu0 %v3227
        %v3354 = vpop.f32.mrf.mxu0
        %v3355 = vadd.f32 %v3248, %v3354
        %3356 = vmatmul.f32.gmra.mxu0 %v3228
        %v3357 = vpop.f32.mrf.mxu0
        %v3358 = vadd.f32 %v3248, %v3357
        %3359 = vmatmul.f32.gmra.mxu0 %v3229
        %v3360 = vpop.f32.mrf.mxu0
        %v3361 = vadd.f32 %v3248, %v3360
        %3362 = vdwg.mxu0
        %v3363 = vld [vmem:[#allocation12] sm:$0xff]
        %v3364 = vld [vmem:[#allocation12 + $0x8] sm:$0xff]
        %v3365 = vld [vmem:[#allocation12 + $0x10] sm:$0xff]
        %v3366 = vld [vmem:[#allocation12 + $0x18] sm:$0xff]
        %v3367 = vld [vmem:[#allocation12 + $0x20] sm:$0xff]
        %v3368 = vld [vmem:[#allocation12 + $0x28] sm:$0xff]
        %v3369 = vld [vmem:[#allocation12 + $0x30] sm:$0xff]
        %v3370 = vld [vmem:[#allocation12 + $0x38] sm:$0xff]
        %v3371 = vld [vmem:[#allocation12 + $0x40] sm:$0xff]
        %v3372 = vld [vmem:[#allocation12 + $0x48] sm:$0xff]
        %v3373 = vld [vmem:[#allocation12 + $0x50] sm:$0xff]
        %v3374 = vld [vmem:[#allocation12 + $0x58] sm:$0xff]
        %v3375 = vld [vmem:[#allocation12 + $0x60] sm:$0xff]
        %v3376 = vld [vmem:[#allocation12 + $0x68] sm:$0xff]
        %v3377 = vld [vmem:[#allocation12 + $0x70] sm:$0xff]
        %v3378 = vld [vmem:[#allocation12 + $0x78] sm:$0xff]
        %v3379 = vld [vmem:[%s8] sm:$0x1]
        %v3381 = vperm.slane %v3379, 0
        %3383 = vmatpush.msra.mxu0 %v3378
        %3384 = vmatpush.msra.mxu0 %v3377
        %3385 = vmatpush.msra.mxu0 %v3376
        %3386 = vmatpush.msra.mxu0 %v3375
        %3387 = vmatpush.msra.mxu0 %v3374
        %3388 = vmatpush.msra.mxu0 %v3373
        %3389 = vmatpush.msra.mxu0 %v3372
        %3390 = vmatpush.msra.mxu0 %v3371
        %3391 = vmatpush.msra.mxu0 %v3370
        %3392 = vmatpush.msra.mxu0 %v3369
        %3393 = vmatpush.msra.mxu0 %v3368
        %3394 = vmatpush.msra.mxu0 %v3367
        %3395 = vmatpush.msra.mxu0 %v3366
        %3396 = vmatpush.msra.mxu0 %v3365
        %3397 = vmatpush.msra.mxu0 %v3364
        %3398 = vmatpush.msra.mxu0 %v3363
        %3399 = vmatmul.f32.gmra.mxu0 %v419
        %v3400 = vpop.f32.mrf.mxu0
        %v3401 = vadd.f32 %v3381, %v3400
        %3402 = vmatmul.f32.gmra.mxu0 %v420
        %v3403 = vpop.f32.mrf.mxu0
        %v3404 = vadd.f32 %v3381, %v3403
        %3405 = vmatmul.f32.gmra.mxu0 %v421
        %v3406 = vpop.f32.mrf.mxu0
        %v3407 = vadd.f32 %v3381, %v3406
        %3408 = vmatmul.f32.gmra.mxu0 %v422
        %v3409 = vpop.f32.mrf.mxu0
        %v3410 = vadd.f32 %v3381, %v3409
        %3411 = vmatmul.f32.gmra.mxu0 %v423
        %v3412 = vpop.f32.mrf.mxu0
        %v3413 = vadd.f32 %v3381, %v3412
        %3414 = vmatmul.f32.gmra.mxu0 %v424
        %v3415 = vpop.f32.mrf.mxu0
        %v3416 = vadd.f32 %v3381, %v3415
        %3417 = vmatmul.f32.gmra.mxu0 %v425
        %v3418 = vpop.f32.mrf.mxu0
        %v3419 = vadd.f32 %v3381, %v3418
        %3420 = vmatmul.f32.gmra.mxu0 %v426
        %v3421 = vpop.f32.mrf.mxu0
        %v3422 = vadd.f32 %v3381, %v3421
        %3423 = vmatmul.f32.gmra.mxu0 %v427
        %v3424 = vpop.f32.mrf.mxu0
        %v3425 = vadd.f32 %v3381, %v3424
        %3426 = vmatmul.f32.gmra.mxu0 %v428
        %v3427 = vpop.f32.mrf.mxu0
        %v3428 = vadd.f32 %v3381, %v3427
        %3429 = vmatmul.f32.gmra.mxu0 %v429
        %v3430 = vpop.f32.mrf.mxu0
        %v3431 = vadd.f32 %v3381, %v3430
        %3432 = vmatmul.f32.gmra.mxu0 %v430
        %v3433 = vpop.f32.mrf.mxu0
        %v3434 = vadd.f32 %v3381, %v3433
        %3435 = vmatmul.f32.gmra.mxu0 %v431
        %v3436 = vpop.f32.mrf.mxu0
        %v3437 = vadd.f32 %v3381, %v3436
        %3438 = vmatmul.f32.gmra.mxu0 %v432
        %v3439 = vpop.f32.mrf.mxu0
        %v3440 = vadd.f32 %v3381, %v3439
        %3441 = vmatmul.f32.gmra.mxu0 %v433
        %v3442 = vpop.f32.mrf.mxu0
        %v3443 = vadd.f32 %v3381, %v3442
        %3444 = vmatmul.f32.gmra.mxu0 %v434
        %v3445 = vpop.f32.mrf.mxu0
        %v3446 = vadd.f32 %v3381, %v3445
        %3447 = vmatmul.f32.gmra.mxu0 %v435
        %v3448 = vpop.f32.mrf.mxu0
        %v3449 = vadd.f32 %v3381, %v3448
        %3450 = vmatmul.f32.gmra.mxu0 %v436
        %v3451 = vpop.f32.mrf.mxu0
        %v3452 = vadd.f32 %v3381, %v3451
        %3453 = vmatmul.f32.gmra.mxu0 %v437
        %v3454 = vpop.f32.mrf.mxu0
        %v3455 = vadd.f32 %v3381, %v3454
        %3456 = vmatmul.f32.gmra.mxu0 %v438
        %v3457 = vpop.f32.mrf.mxu0
        %v3458 = vadd.f32 %v3381, %v3457
        %3459 = vmatmul.f32.gmra.mxu0 %v439
        %v3460 = vpop.f32.mrf.mxu0
        %v3461 = vadd.f32 %v3381, %v3460
        %3462 = vmatmul.f32.gmra.mxu0 %v440
        %v3463 = vpop.f32.mrf.mxu0
        %v3464 = vadd.f32 %v3381, %v3463
        %3465 = vmatmul.f32.gmra.mxu0 %v441
        %v3466 = vpop.f32.mrf.mxu0
        %v3467 = vadd.f32 %v3381, %v3466
        %3468 = vmatmul.f32.gmra.mxu0 %v442
        %v3469 = vpop.f32.mrf.mxu0
        %v3470 = vadd.f32 %v3381, %v3469
        %3471 = vmatmul.f32.gmra.mxu0 %v443
        %v3472 = vpop.f32.mrf.mxu0
        %v3473 = vadd.f32 %v3381, %v3472
        %3474 = vmatmul.f32.gmra.mxu0 %v444
        %v3475 = vpop.f32.mrf.mxu0
        %v3476 = vadd.f32 %v3381, %v3475
        %3477 = vmatmul.f32.gmra.mxu0 %v445
        %v3478 = vpop.f32.mrf.mxu0
        %v3479 = vadd.f32 %v3381, %v3478
        %3480 = vmatmul.f32.gmra.mxu0 %v446
        %v3481 = vpop.f32.mrf.mxu0
        %v3482 = vadd.f32 %v3381, %v3481
        %3483 = vmatmul.f32.gmra.mxu0 %v447
        %v3484 = vpop.f32.mrf.mxu0
        %v3485 = vadd.f32 %v3381, %v3484
        %3486 = vmatmul.f32.gmra.mxu0 %v448
        %v3487 = vpop.f32.mrf.mxu0
        %v3488 = vadd.f32 %v3381, %v3487
        %3489 = vmatmul.f32.gmra.mxu0 %v449
        %v3490 = vpop.f32.mrf.mxu0
        %v3491 = vadd.f32 %v3381, %v3490
        %3492 = vmatmul.f32.gmra.mxu0 %v450
        %v3493 = vpop.f32.mrf.mxu0
        %v3494 = vadd.f32 %v3381, %v3493
        %3495 = vdwg.mxu0
        %v3496 = vadd.f32 %v3268, %v3401
        %v3497 = vadd.f32 %v3271, %v3404
        %v3498 = vadd.f32 %v3274, %v3407
        %v3499 = vadd.f32 %v3277, %v3410
        %v3500 = vadd.f32 %v3280, %v3413
        %v3501 = vadd.f32 %v3283, %v3416
        %v3502 = vadd.f32 %v3286, %v3419
        %v3503 = vadd.f32 %v3289, %v3422
        %v3504 = vadd.f32 %v3292, %v3425
        %v3505 = vadd.f32 %v3295, %v3428
        %v3506 = vadd.f32 %v3298, %v3431
        %v3507 = vadd.f32 %v3301, %v3434
        %v3508 = vadd.f32 %v3304, %v3437
        %v3509 = vadd.f32 %v3307, %v3440
        %v3510 = vadd.f32 %v3310, %v3443
        %v3511 = vadd.f32 %v3313, %v3446
        %v3512 = vadd.f32 %v3316, %v3449
        %v3513 = vadd.f32 %v3319, %v3452
        %v3514 = vadd.f32 %v3322, %v3455
        %v3515 = vadd.f32 %v3325, %v3458
        %v3516 = vadd.f32 %v3328, %v3461
        %v3517 = vadd.f32 %v3331, %v3464
        %v3518 = vadd.f32 %v3334, %v3467
        %v3519 = vadd.f32 %v3337, %v3470
        %v3520 = vadd.f32 %v3340, %v3473
        %v3521 = vadd.f32 %v3343, %v3476
        %v3522 = vadd.f32 %v3346, %v3479
        %v3523 = vadd.f32 %v3349, %v3482
        %v3524 = vadd.f32 %v3352, %v3485
        %v3525 = vadd.f32 %v3355, %v3488
        %v3526 = vadd.f32 %v3358, %v3491
        %v3527 = vadd.f32 %v3361, %v3494
        %v3528 = vmax.f32 %v3496, 0.0
        %v3529 = vmax.f32 %v3497, 0.0
        %v3530 = vmax.f32 %v3498, 0.0
        %v3531 = vmax.f32 %v3499, 0.0
        %v3532 = vmax.f32 %v3500, 0.0
        %v3533 = vmax.f32 %v3501, 0.0
        %v3534 = vmax.f32 %v3502, 0.0
        %v3535 = vmax.f32 %v3503, 0.0
        %v3536 = vmax.f32 %v3504, 0.0
        %v3537 = vmax.f32 %v3505, 0.0
        %v3538 = vmax.f32 %v3506, 0.0
        %v3539 = vmax.f32 %v3507, 0.0
        %v3540 = vmax.f32 %v3508, 0.0
        %v3541 = vmax.f32 %v3509, 0.0
        %v3542 = vmax.f32 %v3510, 0.0
        %v3543 = vmax.f32 %v3511, 0.0
        %v3544 = vmax.f32 %v3512, 0.0
        %v3545 = vmax.f32 %v3513, 0.0
        %v3546 = vmax.f32 %v3514, 0.0
        %v3547 = vmax.f32 %v3515, 0.0
        %v3548 = vmax.f32 %v3516, 0.0
        %v3549 = vmax.f32 %v3517, 0.0
        %v3550 = vmax.f32 %v3518, 0.0
        %v3551 = vmax.f32 %v3519, 0.0
        %v3552 = vmax.f32 %v3520, 0.0
        %v3553 = vmax.f32 %v3521, 0.0
        %v3554 = vmax.f32 %v3522, 0.0
        %v3555 = vmax.f32 %v3523, 0.0
        %v3556 = vmax.f32 %v3524, 0.0
        %v3557 = vmax.f32 %v3525, 0.0
        %v3558 = vmax.f32 %v3526, 0.0
        %v3559 = vmax.f32 %v3527, 0.0
        %3560 = vst [vmem:[%s418] sm:$0xff] %v3528
        %3561 = vst [vmem:[%s418 + $0x8] sm:$0xff] %v3529
        %3562 = vst [vmem:[%s418 + $0x10] sm:$0xff] %v3530
        %3563 = vst [vmem:[%s418 + $0x18] sm:$0xff] %v3531
        %3564 = vst [vmem:[%s418 + $0x20] sm:$0xff] %v3532
        %3565 = vst [vmem:[%s418 + $0x28] sm:$0xff] %v3533
        %3566 = vst [vmem:[%s418 + $0x30] sm:$0xff] %v3534
        %3567 = vst [vmem:[%s418 + $0x38] sm:$0xff] %v3535
        %3568 = vst [vmem:[%s418 + $0x40] sm:$0xff] %v3536
        %3569 = vst [vmem:[%s418 + $0x48] sm:$0xff] %v3537
        %3570 = vst [vmem:[%s418 + $0x50] sm:$0xff] %v3538
        %3571 = vst [vmem:[%s418 + $0x58] sm:$0xff] %v3539
        %3572 = vst [vmem:[%s418 + $0x60] sm:$0xff] %v3540
        %3573 = vst [vmem:[%s418 + $0x68] sm:$0xff] %v3541
        %3574 = vst [vmem:[%s418 + $0x70] sm:$0xff] %v3542
        %3575 = vst [vmem:[%s418 + $0x78] sm:$0xff] %v3543
        %3576 = vst [vmem:[%s418 + $0x80] sm:$0xff] %v3544
        %3577 = vst [vmem:[%s418 + $0x88] sm:$0xff] %v3545
        %3578 = vst [vmem:[%s418 + $0x90] sm:$0xff] %v3546
        %3579 = vst [vmem:[%s418 + $0x98] sm:$0xff] %v3547
        %3580 = vst [vmem:[%s418 + $0xa0] sm:$0xff] %v3548
        %3581 = vst [vmem:[%s418 + $0xa8] sm:$0xff] %v3549
        %3582 = vst [vmem:[%s418 + $0xb0] sm:$0xff] %v3550
        %3583 = vst [vmem:[%s418 + $0xb8] sm:$0xff] %v3551
        %3584 = vst [vmem:[%s418 + $0xc0] sm:$0xff] %v3552
        %3585 = vst [vmem:[%s418 + $0xc8] sm:$0xff] %v3553
        %3586 = vst [vmem:[%s418 + $0xd0] sm:$0xff] %v3554
        %3587 = vst [vmem:[%s418 + $0xd8] sm:$0xff] %v3555
        %3588 = vst [vmem:[%s418 + $0xe0] sm:$0xff] %v3556
        %3589 = vst [vmem:[%s418 + $0xe8] sm:$0xff] %v3557
        %3590 = vst [vmem:[%s418 + $0xf0] sm:$0xff] %v3558
        %3591 = vst [vmem:[%s418 + $0xf8] sm:$0xff] %v3559
        %s3592 = sand.u32 %s230, 1
        %s3593 = scalar_lea.sflag [#allocation6], %s3592
        %s3594 = sand.u32 %s230, 1
        %s3595 = smul.addr %s3594, 256
        %s3596 = scalar_lea.vmem [#allocation13], %s3595
        // Predicated region
        $region77: #{tpu_custom_call.1} parent=55 // pred_check
          %p3597 = pneg %p240
        $region78: #{tpu_custom_call.1} parent=55 // pred_check_branch
          %3599 = sbr.rel (%p3597) target = $region80
        $region79: #{tpu_custom_call.1} parent=55 // pred_region
          %3601 = vsyncadd %s3593, 0
          %s3602 = smul.addr %s28, 32
          %s3603 = smul.addr %s3602, 8
          %s3604 = scalar_lea.hbm %s9, %s3603
          %s3605 = sshll.u32 %s3596, 4
          %s3606 = int_to_ptr.vmem [resolvable:$true] %s3605
          %s3607 = sshll.u32 %s3604, 4
          %s3608 = int_to_ptr.hbm [resolvable:$true] %s3607
          %3613 = dma.vmem_to_hbm [thread:$0]  %s3606, 4096, %s3608, %s3593, 128, 128, 8
        $region80: #{tpu_custom_call.1} parent=55 // pred_fallthru
          _
      $region56: #{tpu_custom_call.1} parent=5 // pred_fallthru
        _
      %p3614 = scmp.le.s32.totalorder 2, %s23
      // Predicated region
      $region81: #{tpu_custom_call.1} parent=5 // pred_check
        %p3615 = pneg %p3614
      $region82: #{tpu_custom_call.1} parent=5 // pred_check_branch
        %3617 = sbr.rel (%p3615) target = $region84
      $region83: #{tpu_custom_call.1} parent=5 // pred_region
        %s3618 = ssub.s32 %s23, 2
        // Predicated region
        $region85: #{tpu_custom_call.1} parent=83 // pred_check
          %p3619 = pneg %p246
        $region86: #{tpu_custom_call.1} parent=83 // pred_check_branch
          %3621 = sbr.rel (%p3619) target = $region88
        $region87: #{tpu_custom_call.1} parent=83 // pred_region
          %s3622 = sand.u32 %s231, 1
          %s3623 = scalar_lea.sflag [#allocation6], %s3622
          %s3624 = sand.u32 %s231, 1
          %s3625 = smul.addr %s3624, 256
          %s3626 = scalar_lea.vmem [#allocation13], %s3625
          %3628 = dma.done %s3623, 4096
        $region88: #{tpu_custom_call.1} parent=83 // pred_fallthru
          _
      $region84: #{tpu_custom_call.1} parent=5 // pred_fallthru
        _
    $region6: #{tpu_custom_call.1} parent=1 // loop_footer
      %s27 = sadd.s32 1, %s23
    $region7: #{tpu_custom_call.1} parent=1 // loop_footer_branch
      %22 = sbr.rel target = $region3
    $region8: #{tpu_custom_call.1} parent=1 // loop_exit
      _
    %3629 = vsyncpa [#allocation5], 1
    %s3630 = scalar_lea.sflag [#allocation5], 1
    %3631 = vsyncpa %s3630, 1
    %3632 = vsyncpa [#allocation8], 1
    %3633 = vsyncpa [#allocation11], 1
    %3634 = vsyncpa [#allocation6], 1
    %s3635 = scalar_lea.sflag [#allocation6], 1
    %3636 = vsyncpa %s3635, 1

</llo_original>
